<compile_context>
chip_gen: v6e
topology: v6e:2x2x1
jax: 0.10.0
libtpu: 0.0.40
codegen_flags: <defaults>
</compile_context>

<pallas_src>
import functools
import math

import jax
import jax.numpy as jnp
from jax import lax
from jax.experimental import pallas as pl
from jax.experimental.pallas import tpu as pltpu

# ----------------------------- hyperparameters -----------------------------
NUM_SERIES = 4
SERIES_EMB_DIM = 5
ATTN_LAYERS = 2
ATTN_HEADS = 2
ATTN_DIM = 16
EMBED_DIM = ATTN_HEADS * ATTN_DIM          # 32
FFN_DIM = 64
MATRIX_RANK = 4
DEC_MLP_DIM = 32
MIN_D = 0.01
MAX_V = 50.0
MAX_POS_ENCODING = 128


# ------------------------------ kernel helpers ------------------------------
def _layernorm(x, gamma, beta, eps=1e-5):
    mu = jnp.mean(x, axis=-1, keepdims=True)
    var = jnp.mean((x - mu) ** 2, axis=-1, keepdims=True)
    return (x - mu) * lax.rsqrt(var + eps) * gamma + beta


def _softplus(x):
    # numerically stable softplus (matches torch.nn.functional.softplus)
    return jnp.maximum(x, 0.0) + jnp.log(1.0 + jnp.exp(-jnp.abs(x)))


# ------------------------------ fused kernel -------------------------------
def fused_tactis_kernel(
        allval_ref, maskp_ref, base_ref, pe_ref,
        ie_w0v_ref, ie_w1_ref, ie_b1_ref,
        wqkv_ref, bqkv_ref, wo_ref, bo_ref, ln1g_ref, ln1b_ref,
        wf1_ref, bf1_ref, wf2_ref, bf2_ref, ln2g_ref, ln2b_ref,
        dw0_ref, db0_ref, dw1_ref, db1_ref, dw2_ref, db2_ref,
        cap_ref, wdd_ref, sc_ref,
        *, num_layers, num_heads, head_dim, rank):
    """One batch element per grid step; everything stays in VMEM."""
    f32 = jnp.float32
    av = allval_ref[0]           # [L, 1]  values in token order (hist then pred per series)
    mp = maskp_ref[...]          # [L, 1]  1.0 for prediction tokens
    mh = 1.0 - mp                # 1.0 for history tokens

    # ---- input encoder (token features built in VMEM) + sqrt(D) scale + PE ----
    # layer 0 = value-column contribution + precomputed (series-emb/mask/bias) slab
    h0 = jnp.maximum((av * mh) * ie_w0v_ref[...] + base_ref[...], 0.0)       # [L, D]
    h1 = jnp.dot(h0, ie_w1_ref[...], preferred_element_type=f32) + ie_b1_ref[...]
    h1 = jnp.maximum(h1, 0.0)
    D = h1.shape[-1]
    x = h1 * (float(D) ** 0.5) + pe_ref[...]                                  # [L, D]

    # ---- transformer encoder (post-LN, ReLU FFN, dropout=0) ----
    for l in range(num_layers):
        qkv = jnp.dot(x, wqkv_ref[l], preferred_element_type=f32) + bqkv_ref[l]
        q = qkv[:, 0:D]                      # 1/sqrt(head_dim) already folded into Wq
        k = qkv[:, D:2 * D]
        v = qkv[:, 2 * D:3 * D]
        heads = []
        for h in range(num_heads):
            lo, hi = h * head_dim, (h + 1) * head_dim
            qh = q[:, lo:hi]
            kh = k[:, lo:hi]
            vh = v[:, lo:hi]
            s = lax.dot_general(qh, kh, (((1,), (1,)), ((), ())),
                                preferred_element_type=f32)                   # [L, L]
            s = s - jnp.max(s, axis=-1, keepdims=True)
            p = jnp.exp(s)
            p = p * pl.reciprocal(jnp.sum(p, axis=-1, keepdims=True), approx=True)
            heads.append(jnp.dot(p, vh, preferred_element_type=f32))
        attn = jnp.concatenate(heads, axis=-1)                                # [L, D]
        attn = jnp.dot(attn, wo_ref[l], preferred_element_type=f32) + bo_ref[l]
        x = _layernorm(x + attn, ln1g_ref[l], ln1b_ref[l])
        ff = jnp.maximum(
            jnp.dot(x, wf1_ref[l], preferred_element_type=f32) + bf1_ref[l], 0.0)
        ff = jnp.dot(ff, wf2_ref[l], preferred_element_type=f32) + bf2_ref[l]
        x = _layernorm(x + ff, ln2g_ref[l], ln2b_ref[l])

    # ---- Gaussian decoder heads (mean | d | V fused via block-diagonal MLP) ----
    g = jnp.maximum(jnp.dot(x, dw0_ref[...], preferred_element_type=f32) + db0_ref[...], 0.0)
    g = jnp.maximum(jnp.dot(g, dw1_ref[...], preferred_element_type=f32) + db1_ref[...], 0.0)
    out = jnp.dot(g, dw2_ref[...], preferred_element_type=f32) + db2_ref[...]  # [L, 2+rank]

    mean = out[:, 0:1]
    d_raw = out[:, 1:2]
    v_raw = out[:, 2:2 + rank]
    d = _softplus(d_raw) + MIN_D
    V = MAX_V * jnp.tanh(v_raw * (1.0 / MAX_V))

    # ---- LowRankMultivariateNormal NLL prep over prediction tokens only ----
    dinv = mp / d                        # masked 1/d (zero for history tokens)
    diff = (av - mean) * mp              # masked residual
    Vd = V * dinv                        # [L, rank]  (masked)

    cap_rows = []
    for r in range(rank):
        cap_rows.append(jnp.sum(Vd[:, r:r + 1] * V, axis=0, keepdims=True))   # [1, rank]
    cap = jnp.concatenate(cap_rows, axis=0)                                   # [rank, rank]
    wdd = jnp.sum(Vd * diff, axis=0, keepdims=True)                           # [1, rank]
    maha_diag = jnp.sum(diff * diff * dinv, axis=0, keepdims=True)            # [1, 1]
    logd = jnp.sum(mp * jnp.log(d), axis=0, keepdims=True)                    # [1, 1]

    cap_ref[0] = cap                           # W^T D^-1 W   (identity added in glue)
    wdd_ref[0] = wdd                           # W^T D^-1 (x - mu)
    sc_ref[0] = jnp.concatenate([maha_diag, logd], axis=1)


# ------------------------------- glue pieces --------------------------------
def _solve_lower(Lc, y):
    """Forward substitution for a small lower-triangular system (rank=4)."""
    R = y.shape[0]
    xs = []
    for i in range(R):
        s = y[i]
        for j in range(i):
            s = s - Lc[i, j] * xs[j]
        xs.append(s / Lc[i, i])
    return jnp.stack(xs)


def tactis_training_loss(past_target_norm, future_target_norm, params):
    """Mirrors TACTiSTrainingNetwork.forward -> TACTiS.loss (scalar)."""
    B, Th, S = past_target_norm.shape
    Tp = future_target_norm.shape[1]
    T = Th + Tp
    L = S * T
    N = S * Tp
    D = EMBED_DIM
    E = SERIES_EMB_DIM
    R = MATRIX_RANK
    M = DEC_MLP_DIM
    hd = ATTN_DIM
    f32 = jnp.float32

    # transpose(1, 2): [batch, series, time];  data_normalization="none" -> identity
    hist_value = jnp.swapaxes(past_target_norm, 1, 2).astype(f32)   # [B, S, Th]
    pred_value = jnp.swapaxes(future_target_norm, 1, 2).astype(f32) # [B, S, Tp]

    # token order: index = series*T + t ; hist value for t<Th, pred target afterwards
    allval = jnp.concatenate([hist_value, pred_value], axis=2).reshape(B, L, 1)
    maskp = (jnp.arange(L) % T >= Th).astype(f32).reshape(L, 1)

    # ---- input-encoder layer 0 split: batch-independent slab + value column ----
    w0, b0 = params["ie_w0"], params["ie_b0"]          # rows: [value, emb(E), mask]
    se_tok = jnp.repeat(params["series_emb"], T, axis=0)            # [L, E]
    mask_hist_tok = (jnp.arange(L) % T < Th).astype(f32)            # [L]
    base = (se_tok @ w0[1:1 + E, :]
            + mask_hist_tok[:, None] * w0[E + 1][None, :]
            + b0[None, :])                                          # [L, D]
    w0v = w0[0:1, :]                                                # [1, D]

    # positional encoding per token (time deltas start at 0, same for every series)
    pe = jnp.tile(params["pos_table"][:T], (S, 1))                  # [L, D]

    # ---- transformer weights stacked per layer; fold 1/sqrt(head_dim) into Wq ----
    scale = 1.0 / math.sqrt(hd)
    layers = params["layers"]
    wqkv = jnp.stack([jnp.concatenate(
        [lp["wq"] * scale, lp["wk"], lp["wv"]], axis=1) for lp in layers])
    bqkv = jnp.stack([jnp.concatenate(
        [lp["bq"] * scale, lp["bk"], lp["bv"]])[None, :] for lp in layers])
    wo = jnp.stack([lp["wo"] for lp in layers])
    bo = jnp.stack([lp["bo"][None, :] for lp in layers])
    ln1g = jnp.stack([lp["ln1_g"][None, :] for lp in layers])
    ln1b = jnp.stack([lp["ln1_b"][None, :] for lp in layers])
    wf1 = jnp.stack([lp["wf1"] for lp in layers])
    bf1 = jnp.stack([lp["bf1"][None, :] for lp in layers])
    wf2 = jnp.stack([lp["wf2"] for lp in layers])
    bf2 = jnp.stack([lp["bf2"][None, :] for lp in layers])
    ln2g = jnp.stack([lp["ln2_g"][None, :] for lp in layers])
    ln2b = jnp.stack([lp["ln2_b"][None, :] for lp in layers])

    # ---- decoder heads fused: [mean | d | V] with block-diagonal hidden layers ----
    dw0 = jnp.concatenate([params["mean_w0"], params["d_w0"], params["v_w0"]], axis=1)
    db0 = jnp.concatenate([params["mean_b0"], params["d_b0"], params["v_b0"]])[None, :]
    dw1 = jnp.zeros((3 * M, 3 * M), f32)
    dw1 = dw1.at[0:M, 0:M].set(params["mean_w1"])
    dw1 = dw1.at[M:2 * M, M:2 * M].set(params["d_w1"])
    dw1 = dw1.at[2 * M:, 2 * M:].set(params["v_w1"])
    db1 = jnp.concatenate([params["mean_b1"], params["d_b1"], params["v_b1"]])[None, :]
    dw2 = jnp.zeros((3 * M, 2 + R), f32)
    dw2 = dw2.at[0:M, 0:1].set(params["mean_w2"])
    dw2 = dw2.at[M:2 * M, 1:2].set(params["d_w2"])
    dw2 = dw2.at[2 * M:, 2:2 + R].set(params["v_w2"])
    db2 = jnp.concatenate([params["mean_b2"], params["d_b2"], params["v_b2"]])[None, :]

    def full(shape):
        zeros = (0,) * len(shape)
        return pl.BlockSpec(shape, lambda b: zeros)

    in_specs = [
        pl.BlockSpec((1, L, 1), lambda b: (b, 0, 0)),       # allval (per-batch)
        full((L, 1)), full((L, D)), full((L, D)),           # maskp, base, pe
        full((1, D)), full((D, D)), full((1, D)),           # w0v, ie_w1, ie_b1
        full((ATTN_LAYERS, D, 3 * D)), full((ATTN_LAYERS, 1, 3 * D)),
        full((ATTN_LAYERS, D, D)), full((ATTN_LAYERS, 1, D)),
        full((ATTN_LAYERS, 1, D)), full((ATTN_LAYERS, 1, D)),
        full((ATTN_LAYERS, D, FFN_DIM)), full((ATTN_LAYERS, 1, FFN_DIM)),
        full((ATTN_LAYERS, FFN_DIM, D)), full((ATTN_LAYERS, 1, D)),
        full((ATTN_LAYERS, 1, D)), full((ATTN_LAYERS, 1, D)),
        full((D, 3 * M)), full((1, 3 * M)),
        full((3 * M, 3 * M)), full((1, 3 * M)),
        full((3 * M, 2 + R)), full((1, 2 + R)),
    ]
    out_specs = [
        pl.BlockSpec((1, R, R), lambda b: (b, 0, 0)),
        pl.BlockSpec((1, 1, R), lambda b: (b, 0, 0)),
        pl.BlockSpec((1, 1, 2), lambda b: (b, 0, 0)),
    ]
    out_shape = [
        jax.ShapeDtypeStruct((B, R, R), f32),
        jax.ShapeDtypeStruct((B, 1, R), f32),
        jax.ShapeDtypeStruct((B, 1, 2), f32),
    ]

    kernel = functools.partial(
        fused_tactis_kernel, num_layers=ATTN_LAYERS, num_heads=ATTN_HEADS,
        head_dim=hd, rank=R)

    caps, wdds, scs = pl.pallas_call(
        kernel,
        out_shape=out_shape,
        grid=(B,),
        in_specs=in_specs,
        out_specs=out_specs,
        compiler_params=pltpu.CompilerParams(dimension_semantics=("parallel",)),
    )(allval, maskp, base, pe, w0v, params["ie_w1"], params["ie_b1"][None, :],
      wqkv, bqkv, wo, bo, ln1g, ln1b, wf1, bf1, wf2, bf2, ln2g, ln2b,
      dw0, db0, dw1, db1, dw2, db2)

    # ---- LowRankMultivariateNormal(loc, cov_factor, cov_diag).log_prob ----
    # TODO(synk): the 4x4 capacitance Cholesky / triangular solve stays in plain JAX.
    cap = caps + jnp.eye(R, dtype=f32)[None]                         # [B, R, R]
    Lc = jnp.linalg.cholesky(cap)
    logdet = 2.0 * jnp.sum(jnp.log(jnp.diagonal(Lc, axis1=-2, axis2=-1)), axis=-1) \
        + scs[:, 0, 1]                                               # [B]
    sol = jax.vmap(_solve_lower)(Lc, wdds[:, 0, :])                  # [B, R]
    mahalanobis = scs[:, 0, 0] - jnp.sum(sol * sol, axis=-1)         # [B]
    log_prob = -0.5 * (N * math.log(2.0 * math.pi) + logdet + mahalanobis)

    dec_loss = -jnp.mean(log_prob)
    # loss_normalization="series"
    return dec_loss / S


# ----------------------------- parameter init -------------------------------
def init_params(key):
    keys = iter(jax.random.split(key, 64))

    def linear(fan_in, fan_out):
        k1, k2 = jax.random.split(next(keys))
        bound = 1.0 / math.sqrt(fan_in)
        w = jax.random.uniform(k1, (fan_in, fan_out), jnp.float32, -bound, bound)
        b = jax.random.uniform(k2, (fan_out,), jnp.float32, -bound, bound)
        return w, b

    p = {}
    p["series_emb"] = jax.random.normal(next(keys), (NUM_SERIES, SERIES_EMB_DIM),
                                        jnp.float32)
    p["ie_w0"], p["ie_b0"] = linear(SERIES_EMB_DIM + 2, EMBED_DIM)
    p["ie_w1"], p["ie_b1"] = linear(EMBED_DIM, EMBED_DIM)

    pos = jnp.arange(MAX_POS_ENCODING, dtype=jnp.float32)[:, None]
    factor = jnp.exp(jnp.arange(0, EMBED_DIM, 2, dtype=jnp.float32)
                     * (-math.log(10000.0) / EMBED_DIM))
    pe = jnp.zeros((MAX_POS_ENCODING, EMBED_DIM), jnp.float32)
    pe = pe.at[:, 0::2].set(jnp.sin(pos * factor))
    pe = pe.at[:, 1::2].set(jnp.cos(pos * factor))
    p["pos_table"] = pe

    layers = []
    for _ in range(ATTN_LAYERS):
        lp = {}
        lp["wq"], lp["bq"] = linear(EMBED_DIM, EMBED_DIM)
        lp["wk"], lp["bk"] = linear(EMBED_DIM, EMBED_DIM)
        lp["wv"], lp["bv"] = linear(EMBED_DIM, EMBED_DIM)
        lp["wo"], lp["bo"] = linear(EMBED_DIM, EMBED_DIM)
        lp["wf1"], lp["bf1"] = linear(EMBED_DIM, FFN_DIM)
        lp["wf2"], lp["bf2"] = linear(FFN_DIM, EMBED_DIM)
        lp["ln1_g"] = jnp.ones((EMBED_DIM,), jnp.float32)
        lp["ln1_b"] = jnp.zeros((EMBED_DIM,), jnp.float32)
        lp["ln2_g"] = jnp.ones((EMBED_DIM,), jnp.float32)
        lp["ln2_b"] = jnp.zeros((EMBED_DIM,), jnp.float32)
        layers.append(lp)
    p["layers"] = layers

    for name, out_dim in [("mean", 1), ("d", 1), ("v", MATRIX_RANK)]:
        p[f"{name}_w0"], p[f"{name}_b0"] = linear(EMBED_DIM, DEC_MLP_DIM)
        p[f"{name}_w1"], p[f"{name}_b1"] = linear(DEC_MLP_DIM, DEC_MLP_DIM)
        p[f"{name}_w2"], p[f"{name}_b2"] = linear(DEC_MLP_DIM, out_dim)
    return p


# ---------------------------------- main -------------------------------------
if __name__ == "__main__":
    key = jax.random.PRNGKey(0)
    k_past, k_future, k_params = jax.random.split(key, 3)

    batch, hist_len, pred_len = 2, 8, 4
    past_target_norm = jax.random.normal(k_past, (batch, hist_len, NUM_SERIES),
                                         jnp.float32)
    future_target_norm = jax.random.normal(k_future, (batch, pred_len, NUM_SERIES),
                                           jnp.float32)
    params = init_params(k_params)

    loss_fn = jax.jit(tactis_training_loss)
    loss = jax.block_until_ready(loss_fn(past_target_norm, future_target_norm, params))
    assert loss.shape == ()
    assert bool(jnp.isfinite(loss))
    print("KERNEL_OK")
</pallas_src>

<mosaic_0001>
module attributes {stable_mosaic.version = 11 : i64} {
  func.func @fused_tactis_kernel(%arg0: i32, %arg1: memref<1x48x1xf32, #tpu.memory_space<vmem>>, %arg2: memref<48x1xf32, #tpu.memory_space<vmem>>, %arg3: memref<48x32xf32, #tpu.memory_space<vmem>>, %arg4: memref<48x32xf32, #tpu.memory_space<vmem>>, %arg5: memref<1x32xf32, #tpu.memory_space<vmem>>, %arg6: memref<32x32xf32, #tpu.memory_space<vmem>>, %arg7: memref<1x32xf32, #tpu.memory_space<vmem>>, %arg8: memref<2x32x96xf32, #tpu.memory_space<vmem>>, %arg9: memref<2x1x96xf32, #tpu.memory_space<vmem>>, %arg10: memref<2x32x32xf32, #tpu.memory_space<vmem>>, %arg11: memref<2x1x32xf32, #tpu.memory_space<vmem>>, %arg12: memref<2x1x32xf32, #tpu.memory_space<vmem>>, %arg13: memref<2x1x32xf32, #tpu.memory_space<vmem>>, %arg14: memref<2x32x64xf32, #tpu.memory_space<vmem>>, %arg15: memref<2x1x64xf32, #tpu.memory_space<vmem>>, %arg16: memref<2x64x32xf32, #tpu.memory_space<vmem>>, %arg17: memref<2x1x32xf32, #tpu.memory_space<vmem>>, %arg18: memref<2x1x32xf32, #tpu.memory_space<vmem>>, %arg19: memref<2x1x32xf32, #tpu.memory_space<vmem>>, %arg20: memref<32x96xf32, #tpu.memory_space<vmem>>, %arg21: memref<1x96xf32, #tpu.memory_space<vmem>>, %arg22: memref<96x96xf32, #tpu.memory_space<vmem>>, %arg23: memref<1x96xf32, #tpu.memory_space<vmem>>, %arg24: memref<96x6xf32, #tpu.memory_space<vmem>>, %arg25: memref<1x6xf32, #tpu.memory_space<vmem>>, %arg26: memref<1x4x4xf32, #tpu.memory_space<vmem>>, %arg27: memref<1x1x4xf32, #tpu.memory_space<vmem>>, %arg28: memref<1x1x2xf32, #tpu.memory_space<vmem>>) attributes {dimension_semantics = [#tpu.dimension_semantics<parallel>], iteration_bounds = array<i64: 2>, scalar_prefetch = 0 : i64, scratch_operands = 0 : i64, tpu.core_type = #tpu.core_type<tc>, window_params = [{transform_indices = @transform_0, window_bounds = array<i64: 1, 48, 1>}, {pipeline_mode = #tpu.pipeline_mode<synchronous>, transform_indices = @transform_1, window_bounds = array<i64: 48, 1>}, {pipeline_mode = #tpu.pipeline_mode<synchronous>, transform_indices = @transform_2, window_bounds = array<i64: 48, 32>}, {pipeline_mode = #tpu.pipeline_mode<synchronous>, transform_indices = @transform_3, window_bounds = array<i64: 48, 32>}, {pipeline_mode = #tpu.pipeline_mode<synchronous>, transform_indices = @transform_4, window_bounds = array<i64: 1, 32>}, {pipeline_mode = #tpu.pipeline_mode<synchronous>, transform_indices = @transform_5, window_bounds = array<i64: 32, 32>}, {pipeline_mode = #tpu.pipeline_mode<synchronous>, transform_indices = @transform_6, window_bounds = array<i64: 1, 32>}, {pipeline_mode = #tpu.pipeline_mode<synchronous>, transform_indices = @transform_7, window_bounds = array<i64: 2, 32, 96>}, {pipeline_mode = #tpu.pipeline_mode<synchronous>, transform_indices = @transform_8, window_bounds = array<i64: 2, 1, 96>}, {pipeline_mode = #tpu.pipeline_mode<synchronous>, transform_indices = @transform_9, window_bounds = array<i64: 2, 32, 32>}, {pipeline_mode = #tpu.pipeline_mode<synchronous>, transform_indices = @transform_10, window_bounds = array<i64: 2, 1, 32>}, {pipeline_mode = #tpu.pipeline_mode<synchronous>, transform_indices = @transform_11, window_bounds = array<i64: 2, 1, 32>}, {pipeline_mode = #tpu.pipeline_mode<synchronous>, transform_indices = @transform_12, window_bounds = array<i64: 2, 1, 32>}, {pipeline_mode = #tpu.pipeline_mode<synchronous>, transform_indices = @transform_13, window_bounds = array<i64: 2, 32, 64>}, {pipeline_mode = #tpu.pipeline_mode<synchronous>, transform_indices = @transform_14, window_bounds = array<i64: 2, 1, 64>}, {pipeline_mode = #tpu.pipeline_mode<synchronous>, transform_indices = @transform_15, window_bounds = array<i64: 2, 64, 32>}, {pipeline_mode = #tpu.pipeline_mode<synchronous>, transform_indices = @transform_16, window_bounds = array<i64: 2, 1, 32>}, {pipeline_mode = #tpu.pipeline_mode<synchronous>, transform_indices = @transform_17, window_bounds = array<i64: 2, 1, 32>}, {pipeline_mode = #tpu.pipeline_mode<synchronous>, transform_indices = @transform_18, window_bounds = array<i64: 2, 1, 32>}, {pipeline_mode = #tpu.pipeline_mode<synchronous>, transform_indices = @transform_19, window_bounds = array<i64: 32, 96>}, {pipeline_mode = #tpu.pipeline_mode<synchronous>, transform_indices = @transform_20, window_bounds = array<i64: 1, 96>}, {pipeline_mode = #tpu.pipeline_mode<synchronous>, transform_indices = @transform_21, window_bounds = array<i64: 96, 96>}, {pipeline_mode = #tpu.pipeline_mode<synchronous>, transform_indices = @transform_22, window_bounds = array<i64: 1, 96>}, {pipeline_mode = #tpu.pipeline_mode<synchronous>, transform_indices = @transform_23, window_bounds = array<i64: 96, 6>}, {pipeline_mode = #tpu.pipeline_mode<synchronous>, transform_indices = @transform_24, window_bounds = array<i64: 1, 6>}, {transform_indices = @transform_25, window_bounds = array<i64: 1, 4, 4>}, {transform_indices = @transform_26, window_bounds = array<i64: 1, 1, 4>}, {transform_indices = @transform_27, window_bounds = array<i64: 1, 1, 2>}]} {
    %c0 = arith.constant 0 : index
    %c0_0 = arith.constant 0 : index
    %c0_1 = arith.constant 0 : index
    %0 = vector.load %arg1[%c0, %c0_0, %c0_1] : memref<1x48x1xf32, #tpu.memory_space<vmem>>, vector<1x48x1xf32>
    %1 = vector.shape_cast %0 : vector<1x48x1xf32> to vector<48x1xf32>
    %c0_2 = arith.constant 0 : index
    %c0_3 = arith.constant 0 : index
    %2 = vector.load %arg2[%c0_2, %c0_3] : memref<48x1xf32, #tpu.memory_space<vmem>>, vector<48x1xf32>
    %cst = arith.constant 1.000000e+00 : f32
    %3 = vector.broadcast %cst : f32 to vector<48x1xf32>
    %4 = arith.subf %3, %2 : vector<48x1xf32>
    %5 = arith.mulf %1, %4 : vector<48x1xf32>
    %c0_4 = arith.constant 0 : index
    %c0_5 = arith.constant 0 : index
    %6 = vector.load %arg5[%c0_4, %c0_5] : memref<1x32xf32, #tpu.memory_space<vmem>>, vector<1x32xf32>
    %7 = vector.broadcast %5 : vector<48x1xf32> to vector<48x32xf32>
    %8 = vector.broadcast %6 : vector<1x32xf32> to vector<48x32xf32>
    %9 = arith.mulf %7, %8 : vector<48x32xf32>
    %c0_6 = arith.constant 0 : index
    %c0_7 = arith.constant 0 : index
    %10 = vector.load %arg3[%c0_6, %c0_7] : memref<48x32xf32, #tpu.memory_space<vmem>>, vector<48x32xf32>
    %11 = arith.addf %9, %10 : vector<48x32xf32>
    %cst_8 = arith.constant 0.000000e+00 : f32
    %12 = vector.broadcast %cst_8 : f32 to vector<48x32xf32>
    %13 = arith.maximumf %11, %12 : vector<48x32xf32>
    %c0_9 = arith.constant 0 : index
    %c0_10 = arith.constant 0 : index
    %14 = vector.load %arg6[%c0_9, %c0_10] : memref<32x32xf32, #tpu.memory_space<vmem>>, vector<32x32xf32>
    %cst_11 = arith.constant dense<0.000000e+00> : vector<48x32xf32>
    %15 = tpu.matmul %13, %14, %cst_11 {dimension_numbers = #tpu.dot_dimension_numbers<[1], [0], [0], [1], [0, 0, 1, 1], [], []>} : vector<48x32xf32>, vector<32x32xf32>, vector<48x32xf32> -> vector<48x32xf32>
    %c0_12 = arith.constant 0 : index
    %c0_13 = arith.constant 0 : index
    %16 = vector.load %arg7[%c0_12, %c0_13] : memref<1x32xf32, #tpu.memory_space<vmem>>, vector<1x32xf32>
    %17 = vector.broadcast %16 : vector<1x32xf32> to vector<48x32xf32>
    %18 = arith.addf %15, %17 : vector<48x32xf32>
    %cst_14 = arith.constant 0.000000e+00 : f32
    %19 = vector.broadcast %cst_14 : f32 to vector<48x32xf32>
    %20 = arith.maximumf %18, %19 : vector<48x32xf32>
    %cst_15 = arith.constant 5.65685415 : f32
    %21 = vector.broadcast %cst_15 : f32 to vector<48x32xf32>
    %22 = arith.mulf %20, %21 : vector<48x32xf32>
    %c0_16 = arith.constant 0 : index
    %c0_17 = arith.constant 0 : index
    %23 = vector.load %arg4[%c0_16, %c0_17] : memref<48x32xf32, #tpu.memory_space<vmem>>, vector<48x32xf32>
    %24 = arith.addf %22, %23 : vector<48x32xf32>
    %c0_18 = arith.constant 0 : index
    %c0_19 = arith.constant 0 : index
    %c0_20 = arith.constant 0 : index
    %25 = vector.load %arg8[%c0_18, %c0_19, %c0_20] : memref<2x32x96xf32, #tpu.memory_space<vmem>>, vector<1x32x96xf32>
    %26 = vector.shape_cast %25 : vector<1x32x96xf32> to vector<32x96xf32>
    %cst_21 = arith.constant dense<0.000000e+00> : vector<48x96xf32>
    %27 = tpu.matmul %24, %26, %cst_21 {dimension_numbers = #tpu.dot_dimension_numbers<[1], [0], [0], [1], [0, 0, 1, 1], [], []>} : vector<48x32xf32>, vector<32x96xf32>, vector<48x96xf32> -> vector<48x96xf32>
    %c0_22 = arith.constant 0 : index
    %c0_23 = arith.constant 0 : index
    %c0_24 = arith.constant 0 : index
    %28 = vector.load %arg9[%c0_22, %c0_23, %c0_24] : memref<2x1x96xf32, #tpu.memory_space<vmem>>, vector<1x1x96xf32>
    %29 = vector.shape_cast %28 : vector<1x1x96xf32> to vector<1x96xf32>
    %30 = vector.broadcast %29 : vector<1x96xf32> to vector<48x96xf32>
    %31 = arith.addf %27, %30 : vector<48x96xf32>
    %32 = vector.extract_strided_slice %31 {offsets = [0, 0], sizes = [48, 32], strides = [1, 1]} : vector<48x96xf32> to vector<48x32xf32>
    %33 = vector.extract_strided_slice %31 {offsets = [0, 32], sizes = [48, 32], strides = [1, 1]} : vector<48x96xf32> to vector<48x32xf32>
    %34 = vector.extract_strided_slice %31 {offsets = [0, 64], sizes = [48, 32], strides = [1, 1]} : vector<48x96xf32> to vector<48x32xf32>
    %35 = vector.extract_strided_slice %32 {offsets = [0, 0], sizes = [48, 16], strides = [1, 1]} : vector<48x32xf32> to vector<48x16xf32>
    %36 = vector.extract_strided_slice %33 {offsets = [0, 0], sizes = [48, 16], strides = [1, 1]} : vector<48x32xf32> to vector<48x16xf32>
    %37 = vector.extract_strided_slice %34 {offsets = [0, 0], sizes = [48, 16], strides = [1, 1]} : vector<48x32xf32> to vector<48x16xf32>
    %cst_25 = arith.constant dense<0.000000e+00> : vector<48x48xf32>
    %38 = tpu.matmul %35, %36, %cst_25 {dimension_numbers = #tpu.dot_dimension_numbers<[1], [1], [0], [0], [0, 0, 1, 0], [], []>} : vector<48x16xf32>, vector<48x16xf32>, vector<48x48xf32> -> vector<48x48xf32>
    %cst_26 = arith.constant dense<0xFF800000> : vector<48xf32>
    %39 = vector.multi_reduction <maximumf>, %38, %cst_26 [1] : vector<48x48xf32> to vector<48xf32>
    %40 = vector.shape_cast %39 : vector<48xf32> to vector<48x1xf32>
    %41 = vector.broadcast %40 : vector<48x1xf32> to vector<48x48xf32>
    %42 = arith.subf %38, %41 : vector<48x48xf32>
    %43 = math.exp %42 : vector<48x48xf32>
    %cst_27 = arith.constant dense<0.000000e+00> : vector<48xf32>
    %44 = vector.multi_reduction <add>, %43, %cst_27 [1] : vector<48x48xf32> to vector<48xf32>
    %45 = vector.shape_cast %44 : vector<48xf32> to vector<48x1xf32>
    %46 = tpu.reciprocal %45 {approx = true} : vector<48x1xf32> -> vector<48x1xf32>
    %47 = vector.broadcast %46 : vector<48x1xf32> to vector<48x48xf32>
    %48 = arith.mulf %43, %47 : vector<48x48xf32>
    %cst_28 = arith.constant dense<0.000000e+00> : vector<48x16xf32>
    %49 = tpu.matmul %48, %37, %cst_28 {dimension_numbers = #tpu.dot_dimension_numbers<[1], [0], [0], [1], [0, 0, 1, 1], [], []>} : vector<48x48xf32>, vector<48x16xf32>, vector<48x16xf32> -> vector<48x16xf32>
    %50 = vector.extract_strided_slice %32 {offsets = [0, 16], sizes = [48, 16], strides = [1, 1]} : vector<48x32xf32> to vector<48x16xf32>
    %51 = vector.extract_strided_slice %33 {offsets = [0, 16], sizes = [48, 16], strides = [1, 1]} : vector<48x32xf32> to vector<48x16xf32>
    %52 = vector.extract_strided_slice %34 {offsets = [0, 16], sizes = [48, 16], strides = [1, 1]} : vector<48x32xf32> to vector<48x16xf32>
    %cst_29 = arith.constant dense<0.000000e+00> : vector<48x48xf32>
    %53 = tpu.matmul %50, %51, %cst_29 {dimension_numbers = #tpu.dot_dimension_numbers<[1], [1], [0], [0], [0, 0, 1, 0], [], []>} : vector<48x16xf32>, vector<48x16xf32>, vector<48x48xf32> -> vector<48x48xf32>
    %cst_30 = arith.constant dense<0xFF800000> : vector<48xf32>
    %54 = vector.multi_reduction <maximumf>, %53, %cst_30 [1] : vector<48x48xf32> to vector<48xf32>
    %55 = vector.shape_cast %54 : vector<48xf32> to vector<48x1xf32>
    %56 = vector.broadcast %55 : vector<48x1xf32> to vector<48x48xf32>
    %57 = arith.subf %53, %56 : vector<48x48xf32>
    %58 = math.exp %57 : vector<48x48xf32>
    %cst_31 = arith.constant dense<0.000000e+00> : vector<48xf32>
    %59 = vector.multi_reduction <add>, %58, %cst_31 [1] : vector<48x48xf32> to vector<48xf32>
    %60 = vector.shape_cast %59 : vector<48xf32> to vector<48x1xf32>
    %61 = tpu.reciprocal %60 {approx = true} : vector<48x1xf32> -> vector<48x1xf32>
    %62 = vector.broadcast %61 : vector<48x1xf32> to vector<48x48xf32>
    %63 = arith.mulf %58, %62 : vector<48x48xf32>
    %cst_32 = arith.constant dense<0.000000e+00> : vector<48x16xf32>
    %64 = tpu.matmul %63, %52, %cst_32 {dimension_numbers = #tpu.dot_dimension_numbers<[1], [0], [0], [1], [0, 0, 1, 1], [], []>} : vector<48x48xf32>, vector<48x16xf32>, vector<48x16xf32> -> vector<48x16xf32>
    %65 = tpu.concatenate %49, %64 in 1 : vector<48x16xf32>, vector<48x16xf32> -> vector<48x32xf32>
    %c0_33 = arith.constant 0 : index
    %c0_34 = arith.constant 0 : index
    %c0_35 = arith.constant 0 : index
    %66 = vector.load %arg10[%c0_33, %c0_34, %c0_35] : memref<2x32x32xf32, #tpu.memory_space<vmem>>, vector<1x32x32xf32>
    %67 = vector.shape_cast %66 : vector<1x32x32xf32> to vector<32x32xf32>
    %cst_36 = arith.constant dense<0.000000e+00> : vector<48x32xf32>
    %68 = tpu.matmul %65, %67, %cst_36 {dimension_numbers = #tpu.dot_dimension_numbers<[1], [0], [0], [1], [0, 0, 1, 1], [], []>} : vector<48x32xf32>, vector<32x32xf32>, vector<48x32xf32> -> vector<48x32xf32>
    %c0_37 = arith.constant 0 : index
    %c0_38 = arith.constant 0 : index
    %c0_39 = arith.constant 0 : index
    %69 = vector.load %arg11[%c0_37, %c0_38, %c0_39] : memref<2x1x32xf32, #tpu.memory_space<vmem>>, vector<1x1x32xf32>
    %70 = vector.shape_cast %69 : vector<1x1x32xf32> to vector<1x32xf32>
    %71 = vector.broadcast %70 : vector<1x32xf32> to vector<48x32xf32>
    %72 = arith.addf %68, %71 : vector<48x32xf32>
    %73 = arith.addf %24, %72 : vector<48x32xf32>
    %c0_40 = arith.constant 0 : index
    %c0_41 = arith.constant 0 : index
    %c0_42 = arith.constant 0 : index
    %74 = vector.load %arg12[%c0_40, %c0_41, %c0_42] : memref<2x1x32xf32, #tpu.memory_space<vmem>>, vector<1x1x32xf32>
    %75 = vector.shape_cast %74 : vector<1x1x32xf32> to vector<1x32xf32>
    %c0_43 = arith.constant 0 : index
    %c0_44 = arith.constant 0 : index
    %c0_45 = arith.constant 0 : index
    %76 = vector.load %arg13[%c0_43, %c0_44, %c0_45] : memref<2x1x32xf32, #tpu.memory_space<vmem>>, vector<1x1x32xf32>
    %77 = vector.shape_cast %76 : vector<1x1x32xf32> to vector<1x32xf32>
    %cst_46 = arith.constant dense<0.000000e+00> : vector<48xf32>
    %78 = vector.multi_reduction <add>, %73, %cst_46 [1] : vector<48x32xf32> to vector<48xf32>
    %79 = vector.shape_cast %78 : vector<48xf32> to vector<48x1xf32>
    %cst_47 = arith.constant 3.200000e+01 : f32
    %80 = vector.broadcast %cst_47 : f32 to vector<48x1xf32>
    %81 = arith.divf %79, %80 : vector<48x1xf32>
    %82 = vector.broadcast %81 : vector<48x1xf32> to vector<48x32xf32>
    %83 = arith.subf %73, %82 : vector<48x32xf32>
    %84 = arith.mulf %83, %83 : vector<48x32xf32>
    %cst_48 = arith.constant dense<0.000000e+00> : vector<48xf32>
    %85 = vector.multi_reduction <add>, %84, %cst_48 [1] : vector<48x32xf32> to vector<48xf32>
    %86 = vector.shape_cast %85 : vector<48xf32> to vector<48x1xf32>
    %cst_49 = arith.constant 3.200000e+01 : f32
    %87 = vector.broadcast %cst_49 : f32 to vector<48x1xf32>
    %88 = arith.divf %86, %87 : vector<48x1xf32>
    %89 = vector.broadcast %81 : vector<48x1xf32> to vector<48x32xf32>
    %90 = arith.subf %73, %89 : vector<48x32xf32>
    %cst_50 = arith.constant 9.99999974E-6 : f32
    %91 = vector.broadcast %cst_50 : f32 to vector<48x1xf32>
    %92 = arith.addf %88, %91 : vector<48x1xf32>
    %93 = math.rsqrt %92 : vector<48x1xf32>
    %94 = vector.broadcast %93 : vector<48x1xf32> to vector<48x32xf32>
    %95 = arith.mulf %90, %94 : vector<48x32xf32>
    %96 = vector.broadcast %75 : vector<1x32xf32> to vector<48x32xf32>
    %97 = arith.mulf %95, %96 : vector<48x32xf32>
    %98 = vector.broadcast %77 : vector<1x32xf32> to vector<48x32xf32>
    %99 = arith.addf %97, %98 : vector<48x32xf32>
    %c0_51 = arith.constant 0 : index
    %c0_52 = arith.constant 0 : index
    %c0_53 = arith.constant 0 : index
    %100 = vector.load %arg14[%c0_51, %c0_52, %c0_53] : memref<2x32x64xf32, #tpu.memory_space<vmem>>, vector<1x32x64xf32>
    %101 = vector.shape_cast %100 : vector<1x32x64xf32> to vector<32x64xf32>
    %cst_54 = arith.constant dense<0.000000e+00> : vector<48x64xf32>
    %102 = tpu.matmul %99, %101, %cst_54 {dimension_numbers = #tpu.dot_dimension_numbers<[1], [0], [0], [1], [0, 0, 1, 1], [], []>} : vector<48x32xf32>, vector<32x64xf32>, vector<48x64xf32> -> vector<48x64xf32>
    %c0_55 = arith.constant 0 : index
    %c0_56 = arith.constant 0 : index
    %c0_57 = arith.constant 0 : index
    %103 = vector.load %arg15[%c0_55, %c0_56, %c0_57] : memref<2x1x64xf32, #tpu.memory_space<vmem>>, vector<1x1x64xf32>
    %104 = vector.shape_cast %103 : vector<1x1x64xf32> to vector<1x64xf32>
    %105 = vector.broadcast %104 : vector<1x64xf32> to vector<48x64xf32>
    %106 = arith.addf %102, %105 : vector<48x64xf32>
    %cst_58 = arith.constant 0.000000e+00 : f32
    %107 = vector.broadcast %cst_58 : f32 to vector<48x64xf32>
    %108 = arith.maximumf %106, %107 : vector<48x64xf32>
    %c0_59 = arith.constant 0 : index
    %c0_60 = arith.constant 0 : index
    %c0_61 = arith.constant 0 : index
    %109 = vector.load %arg16[%c0_59, %c0_60, %c0_61] : memref<2x64x32xf32, #tpu.memory_space<vmem>>, vector<1x64x32xf32>
    %110 = vector.shape_cast %109 : vector<1x64x32xf32> to vector<64x32xf32>
    %cst_62 = arith.constant dense<0.000000e+00> : vector<48x32xf32>
    %111 = tpu.matmul %108, %110, %cst_62 {dimension_numbers = #tpu.dot_dimension_numbers<[1], [0], [0], [1], [0, 0, 1, 1], [], []>} : vector<48x64xf32>, vector<64x32xf32>, vector<48x32xf32> -> vector<48x32xf32>
    %c0_63 = arith.constant 0 : index
    %c0_64 = arith.constant 0 : index
    %c0_65 = arith.constant 0 : index
    %112 = vector.load %arg17[%c0_63, %c0_64, %c0_65] : memref<2x1x32xf32, #tpu.memory_space<vmem>>, vector<1x1x32xf32>
    %113 = vector.shape_cast %112 : vector<1x1x32xf32> to vector<1x32xf32>
    %114 = vector.broadcast %113 : vector<1x32xf32> to vector<48x32xf32>
    %115 = arith.addf %111, %114 : vector<48x32xf32>
    %116 = arith.addf %99, %115 : vector<48x32xf32>
    %c0_66 = arith.constant 0 : index
    %c0_67 = arith.constant 0 : index
    %c0_68 = arith.constant 0 : index
    %117 = vector.load %arg18[%c0_66, %c0_67, %c0_68] : memref<2x1x32xf32, #tpu.memory_space<vmem>>, vector<1x1x32xf32>
    %118 = vector.shape_cast %117 : vector<1x1x32xf32> to vector<1x32xf32>
    %c0_69 = arith.constant 0 : index
    %c0_70 = arith.constant 0 : index
    %c0_71 = arith.constant 0 : index
    %119 = vector.load %arg19[%c0_69, %c0_70, %c0_71] : memref<2x1x32xf32, #tpu.memory_space<vmem>>, vector<1x1x32xf32>
    %120 = vector.shape_cast %119 : vector<1x1x32xf32> to vector<1x32xf32>
    %cst_72 = arith.constant dense<0.000000e+00> : vector<48xf32>
    %121 = vector.multi_reduction <add>, %116, %cst_72 [1] : vector<48x32xf32> to vector<48xf32>
    %122 = vector.shape_cast %121 : vector<48xf32> to vector<48x1xf32>
    %cst_73 = arith.constant 3.200000e+01 : f32
    %123 = vector.broadcast %cst_73 : f32 to vector<48x1xf32>
    %124 = arith.divf %122, %123 : vector<48x1xf32>
    %125 = vector.broadcast %124 : vector<48x1xf32> to vector<48x32xf32>
    %126 = arith.subf %116, %125 : vector<48x32xf32>
    %127 = arith.mulf %126, %126 : vector<48x32xf32>
    %cst_74 = arith.constant dense<0.000000e+00> : vector<48xf32>
    %128 = vector.multi_reduction <add>, %127, %cst_74 [1] : vector<48x32xf32> to vector<48xf32>
    %129 = vector.shape_cast %128 : vector<48xf32> to vector<48x1xf32>
    %cst_75 = arith.constant 3.200000e+01 : f32
    %130 = vector.broadcast %cst_75 : f32 to vector<48x1xf32>
    %131 = arith.divf %129, %130 : vector<48x1xf32>
    %132 = vector.broadcast %124 : vector<48x1xf32> to vector<48x32xf32>
    %133 = arith.subf %116, %132 : vector<48x32xf32>
    %cst_76 = arith.constant 9.99999974E-6 : f32
    %134 = vector.broadcast %cst_76 : f32 to vector<48x1xf32>
    %135 = arith.addf %131, %134 : vector<48x1xf32>
    %136 = math.rsqrt %135 : vector<48x1xf32>
    %137 = vector.broadcast %136 : vector<48x1xf32> to vector<48x32xf32>
    %138 = arith.mulf %133, %137 : vector<48x32xf32>
    %139 = vector.broadcast %118 : vector<1x32xf32> to vector<48x32xf32>
    %140 = arith.mulf %138, %139 : vector<48x32xf32>
    %141 = vector.broadcast %120 : vector<1x32xf32> to vector<48x32xf32>
    %142 = arith.addf %140, %141 : vector<48x32xf32>
    %c1 = arith.constant 1 : index
    %c0_77 = arith.constant 0 : index
    %c0_78 = arith.constant 0 : index
    %143 = vector.load %arg8[%c1, %c0_77, %c0_78] : memref<2x32x96xf32, #tpu.memory_space<vmem>>, vector<1x32x96xf32>
    %144 = vector.shape_cast %143 : vector<1x32x96xf32> to vector<32x96xf32>
    %cst_79 = arith.constant dense<0.000000e+00> : vector<48x96xf32>
    %145 = tpu.matmul %142, %144, %cst_79 {dimension_numbers = #tpu.dot_dimension_numbers<[1], [0], [0], [1], [0, 0, 1, 1], [], []>} : vector<48x32xf32>, vector<32x96xf32>, vector<48x96xf32> -> vector<48x96xf32>
    %c1_80 = arith.constant 1 : index
    %c0_81 = arith.constant 0 : index
    %c0_82 = arith.constant 0 : index
    %146 = vector.load %arg9[%c1_80, %c0_81, %c0_82] : memref<2x1x96xf32, #tpu.memory_space<vmem>>, vector<1x1x96xf32>
    %147 = vector.shape_cast %146 : vector<1x1x96xf32> to vector<1x96xf32>
    %148 = vector.broadcast %147 : vector<1x96xf32> to vector<48x96xf32>
    %149 = arith.addf %145, %148 : vector<48x96xf32>
    %150 = vector.extract_strided_slice %149 {offsets = [0, 0], sizes = [48, 32], strides = [1, 1]} : vector<48x96xf32> to vector<48x32xf32>
    %151 = vector.extract_strided_slice %149 {offsets = [0, 32], sizes = [48, 32], strides = [1, 1]} : vector<48x96xf32> to vector<48x32xf32>
    %152 = vector.extract_strided_slice %149 {offsets = [0, 64], sizes = [48, 32], strides = [1, 1]} : vector<48x96xf32> to vector<48x32xf32>
    %153 = vector.extract_strided_slice %150 {offsets = [0, 0], sizes = [48, 16], strides = [1, 1]} : vector<48x32xf32> to vector<48x16xf32>
    %154 = vector.extract_strided_slice %151 {offsets = [0, 0], sizes = [48, 16], strides = [1, 1]} : vector<48x32xf32> to vector<48x16xf32>
    %155 = vector.extract_strided_slice %152 {offsets = [0, 0], sizes = [48, 16], strides = [1, 1]} : vector<48x32xf32> to vector<48x16xf32>
    %cst_83 = arith.constant dense<0.000000e+00> : vector<48x48xf32>
    %156 = tpu.matmul %153, %154, %cst_83 {dimension_numbers = #tpu.dot_dimension_numbers<[1], [1], [0], [0], [0, 0, 1, 0], [], []>} : vector<48x16xf32>, vector<48x16xf32>, vector<48x48xf32> -> vector<48x48xf32>
    %cst_84 = arith.constant dense<0xFF800000> : vector<48xf32>
    %157 = vector.multi_reduction <maximumf>, %156, %cst_84 [1] : vector<48x48xf32> to vector<48xf32>
    %158 = vector.shape_cast %157 : vector<48xf32> to vector<48x1xf32>
    %159 = vector.broadcast %158 : vector<48x1xf32> to vector<48x48xf32>
    %160 = arith.subf %156, %159 : vector<48x48xf32>
    %161 = math.exp %160 : vector<48x48xf32>
    %cst_85 = arith.constant dense<0.000000e+00> : vector<48xf32>
    %162 = vector.multi_reduction <add>, %161, %cst_85 [1] : vector<48x48xf32> to vector<48xf32>
    %163 = vector.shape_cast %162 : vector<48xf32> to vector<48x1xf32>
    %164 = tpu.reciprocal %163 {approx = true} : vector<48x1xf32> -> vector<48x1xf32>
    %165 = vector.broadcast %164 : vector<48x1xf32> to vector<48x48xf32>
    %166 = arith.mulf %161, %165 : vector<48x48xf32>
    %cst_86 = arith.constant dense<0.000000e+00> : vector<48x16xf32>
    %167 = tpu.matmul %166, %155, %cst_86 {dimension_numbers = #tpu.dot_dimension_numbers<[1], [0], [0], [1], [0, 0, 1, 1], [], []>} : vector<48x48xf32>, vector<48x16xf32>, vector<48x16xf32> -> vector<48x16xf32>
    %168 = vector.extract_strided_slice %150 {offsets = [0, 16], sizes = [48, 16], strides = [1, 1]} : vector<48x32xf32> to vector<48x16xf32>
    %169 = vector.extract_strided_slice %151 {offsets = [0, 16], sizes = [48, 16], strides = [1, 1]} : vector<48x32xf32> to vector<48x16xf32>
    %170 = vector.extract_strided_slice %152 {offsets = [0, 16], sizes = [48, 16], strides = [1, 1]} : vector<48x32xf32> to vector<48x16xf32>
    %cst_87 = arith.constant dense<0.000000e+00> : vector<48x48xf32>
    %171 = tpu.matmul %168, %169, %cst_87 {dimension_numbers = #tpu.dot_dimension_numbers<[1], [1], [0], [0], [0, 0, 1, 0], [], []>} : vector<48x16xf32>, vector<48x16xf32>, vector<48x48xf32> -> vector<48x48xf32>
    %cst_88 = arith.constant dense<0xFF800000> : vector<48xf32>
    %172 = vector.multi_reduction <maximumf>, %171, %cst_88 [1] : vector<48x48xf32> to vector<48xf32>
    %173 = vector.shape_cast %172 : vector<48xf32> to vector<48x1xf32>
    %174 = vector.broadcast %173 : vector<48x1xf32> to vector<48x48xf32>
    %175 = arith.subf %171, %174 : vector<48x48xf32>
    %176 = math.exp %175 : vector<48x48xf32>
    %cst_89 = arith.constant dense<0.000000e+00> : vector<48xf32>
    %177 = vector.multi_reduction <add>, %176, %cst_89 [1] : vector<48x48xf32> to vector<48xf32>
    %178 = vector.shape_cast %177 : vector<48xf32> to vector<48x1xf32>
    %179 = tpu.reciprocal %178 {approx = true} : vector<48x1xf32> -> vector<48x1xf32>
    %180 = vector.broadcast %179 : vector<48x1xf32> to vector<48x48xf32>
    %181 = arith.mulf %176, %180 : vector<48x48xf32>
    %cst_90 = arith.constant dense<0.000000e+00> : vector<48x16xf32>
    %182 = tpu.matmul %181, %170, %cst_90 {dimension_numbers = #tpu.dot_dimension_numbers<[1], [0], [0], [1], [0, 0, 1, 1], [], []>} : vector<48x48xf32>, vector<48x16xf32>, vector<48x16xf32> -> vector<48x16xf32>
    %183 = tpu.concatenate %167, %182 in 1 : vector<48x16xf32>, vector<48x16xf32> -> vector<48x32xf32>
    %c1_91 = arith.constant 1 : index
    %c0_92 = arith.constant 0 : index
    %c0_93 = arith.constant 0 : index
    %184 = vector.load %arg10[%c1_91, %c0_92, %c0_93] : memref<2x32x32xf32, #tpu.memory_space<vmem>>, vector<1x32x32xf32>
    %185 = vector.shape_cast %184 : vector<1x32x32xf32> to vector<32x32xf32>
    %cst_94 = arith.constant dense<0.000000e+00> : vector<48x32xf32>
    %186 = tpu.matmul %183, %185, %cst_94 {dimension_numbers = #tpu.dot_dimension_numbers<[1], [0], [0], [1], [0, 0, 1, 1], [], []>} : vector<48x32xf32>, vector<32x32xf32>, vector<48x32xf32> -> vector<48x32xf32>
    %c1_95 = arith.constant 1 : index
    %c0_96 = arith.constant 0 : index
    %c0_97 = arith.constant 0 : index
    %187 = vector.load %arg11[%c1_95, %c0_96, %c0_97] : memref<2x1x32xf32, #tpu.memory_space<vmem>>, vector<1x1x32xf32>
    %188 = vector.shape_cast %187 : vector<1x1x32xf32> to vector<1x32xf32>
    %189 = vector.broadcast %188 : vector<1x32xf32> to vector<48x32xf32>
    %190 = arith.addf %186, %189 : vector<48x32xf32>
    %191 = arith.addf %142, %190 : vector<48x32xf32>
    %c1_98 = arith.constant 1 : index
    %c0_99 = arith.constant 0 : index
    %c0_100 = arith.constant 0 : index
    %192 = vector.load %arg12[%c1_98, %c0_99, %c0_100] : memref<2x1x32xf32, #tpu.memory_space<vmem>>, vector<1x1x32xf32>
    %193 = vector.shape_cast %192 : vector<1x1x32xf32> to vector<1x32xf32>
    %c1_101 = arith.constant 1 : index
    %c0_102 = arith.constant 0 : index
    %c0_103 = arith.constant 0 : index
    %194 = vector.load %arg13[%c1_101, %c0_102, %c0_103] : memref<2x1x32xf32, #tpu.memory_space<vmem>>, vector<1x1x32xf32>
    %195 = vector.shape_cast %194 : vector<1x1x32xf32> to vector<1x32xf32>
    %cst_104 = arith.constant dense<0.000000e+00> : vector<48xf32>
    %196 = vector.multi_reduction <add>, %191, %cst_104 [1] : vector<48x32xf32> to vector<48xf32>
    %197 = vector.shape_cast %196 : vector<48xf32> to vector<48x1xf32>
    %cst_105 = arith.constant 3.200000e+01 : f32
    %198 = vector.broadcast %cst_105 : f32 to vector<48x1xf32>
    %199 = arith.divf %197, %198 : vector<48x1xf32>
    %200 = vector.broadcast %199 : vector<48x1xf32> to vector<48x32xf32>
    %201 = arith.subf %191, %200 : vector<48x32xf32>
    %202 = arith.mulf %201, %201 : vector<48x32xf32>
    %cst_106 = arith.constant dense<0.000000e+00> : vector<48xf32>
    %203 = vector.multi_reduction <add>, %202, %cst_106 [1] : vector<48x32xf32> to vector<48xf32>
    %204 = vector.shape_cast %203 : vector<48xf32> to vector<48x1xf32>
    %cst_107 = arith.constant 3.200000e+01 : f32
    %205 = vector.broadcast %cst_107 : f32 to vector<48x1xf32>
    %206 = arith.divf %204, %205 : vector<48x1xf32>
    %207 = vector.broadcast %199 : vector<48x1xf32> to vector<48x32xf32>
    %208 = arith.subf %191, %207 : vector<48x32xf32>
    %cst_108 = arith.constant 9.99999974E-6 : f32
    %209 = vector.broadcast %cst_108 : f32 to vector<48x1xf32>
    %210 = arith.addf %206, %209 : vector<48x1xf32>
    %211 = math.rsqrt %210 : vector<48x1xf32>
    %212 = vector.broadcast %211 : vector<48x1xf32> to vector<48x32xf32>
    %213 = arith.mulf %208, %212 : vector<48x32xf32>
    %214 = vector.broadcast %193 : vector<1x32xf32> to vector<48x32xf32>
    %215 = arith.mulf %213, %214 : vector<48x32xf32>
    %216 = vector.broadcast %195 : vector<1x32xf32> to vector<48x32xf32>
    %217 = arith.addf %215, %216 : vector<48x32xf32>
    %c1_109 = arith.constant 1 : index
    %c0_110 = arith.constant 0 : index
    %c0_111 = arith.constant 0 : index
    %218 = vector.load %arg14[%c1_109, %c0_110, %c0_111] : memref<2x32x64xf32, #tpu.memory_space<vmem>>, vector<1x32x64xf32>
    %219 = vector.shape_cast %218 : vector<1x32x64xf32> to vector<32x64xf32>
    %cst_112 = arith.constant dense<0.000000e+00> : vector<48x64xf32>
    %220 = tpu.matmul %217, %219, %cst_112 {dimension_numbers = #tpu.dot_dimension_numbers<[1], [0], [0], [1], [0, 0, 1, 1], [], []>} : vector<48x32xf32>, vector<32x64xf32>, vector<48x64xf32> -> vector<48x64xf32>
    %c1_113 = arith.constant 1 : index
    %c0_114 = arith.constant 0 : index
    %c0_115 = arith.constant 0 : index
    %221 = vector.load %arg15[%c1_113, %c0_114, %c0_115] : memref<2x1x64xf32, #tpu.memory_space<vmem>>, vector<1x1x64xf32>
    %222 = vector.shape_cast %221 : vector<1x1x64xf32> to vector<1x64xf32>
    %223 = vector.broadcast %222 : vector<1x64xf32> to vector<48x64xf32>
    %224 = arith.addf %220, %223 : vector<48x64xf32>
    %cst_116 = arith.constant 0.000000e+00 : f32
    %225 = vector.broadcast %cst_116 : f32 to vector<48x64xf32>
    %226 = arith.maximumf %224, %225 : vector<48x64xf32>
    %c1_117 = arith.constant 1 : index
    %c0_118 = arith.constant 0 : index
    %c0_119 = arith.constant 0 : index
    %227 = vector.load %arg16[%c1_117, %c0_118, %c0_119] : memref<2x64x32xf32, #tpu.memory_space<vmem>>, vector<1x64x32xf32>
    %228 = vector.shape_cast %227 : vector<1x64x32xf32> to vector<64x32xf32>
    %cst_120 = arith.constant dense<0.000000e+00> : vector<48x32xf32>
    %229 = tpu.matmul %226, %228, %cst_120 {dimension_numbers = #tpu.dot_dimension_numbers<[1], [0], [0], [1], [0, 0, 1, 1], [], []>} : vector<48x64xf32>, vector<64x32xf32>, vector<48x32xf32> -> vector<48x32xf32>
    %c1_121 = arith.constant 1 : index
    %c0_122 = arith.constant 0 : index
    %c0_123 = arith.constant 0 : index
    %230 = vector.load %arg17[%c1_121, %c0_122, %c0_123] : memref<2x1x32xf32, #tpu.memory_space<vmem>>, vector<1x1x32xf32>
    %231 = vector.shape_cast %230 : vector<1x1x32xf32> to vector<1x32xf32>
    %232 = vector.broadcast %231 : vector<1x32xf32> to vector<48x32xf32>
    %233 = arith.addf %229, %232 : vector<48x32xf32>
    %234 = arith.addf %217, %233 : vector<48x32xf32>
    %c1_124 = arith.constant 1 : index
    %c0_125 = arith.constant 0 : index
    %c0_126 = arith.constant 0 : index
    %235 = vector.load %arg18[%c1_124, %c0_125, %c0_126] : memref<2x1x32xf32, #tpu.memory_space<vmem>>, vector<1x1x32xf32>
    %236 = vector.shape_cast %235 : vector<1x1x32xf32> to vector<1x32xf32>
    %c1_127 = arith.constant 1 : index
    %c0_128 = arith.constant 0 : index
    %c0_129 = arith.constant 0 : index
    %237 = vector.load %arg19[%c1_127, %c0_128, %c0_129] : memref<2x1x32xf32, #tpu.memory_space<vmem>>, vector<1x1x32xf32>
    %238 = vector.shape_cast %237 : vector<1x1x32xf32> to vector<1x32xf32>
    %cst_130 = arith.constant dense<0.000000e+00> : vector<48xf32>
    %239 = vector.multi_reduction <add>, %234, %cst_130 [1] : vector<48x32xf32> to vector<48xf32>
    %240 = vector.shape_cast %239 : vector<48xf32> to vector<48x1xf32>
    %cst_131 = arith.constant 3.200000e+01 : f32
    %241 = vector.broadcast %cst_131 : f32 to vector<48x1xf32>
    %242 = arith.divf %240, %241 : vector<48x1xf32>
    %243 = vector.broadcast %242 : vector<48x1xf32> to vector<48x32xf32>
    %244 = arith.subf %234, %243 : vector<48x32xf32>
    %245 = arith.mulf %244, %244 : vector<48x32xf32>
    %cst_132 = arith.constant dense<0.000000e+00> : vector<48xf32>
    %246 = vector.multi_reduction <add>, %245, %cst_132 [1] : vector<48x32xf32> to vector<48xf32>
    %247 = vector.shape_cast %246 : vector<48xf32> to vector<48x1xf32>
    %cst_133 = arith.constant 3.200000e+01 : f32
    %248 = vector.broadcast %cst_133 : f32 to vector<48x1xf32>
    %249 = arith.divf %247, %248 : vector<48x1xf32>
    %250 = vector.broadcast %242 : vector<48x1xf32> to vector<48x32xf32>
    %251 = arith.subf %234, %250 : vector<48x32xf32>
    %cst_134 = arith.constant 9.99999974E-6 : f32
    %252 = vector.broadcast %cst_134 : f32 to vector<48x1xf32>
    %253 = arith.addf %249, %252 : vector<48x1xf32>
    %254 = math.rsqrt %253 : vector<48x1xf32>
    %255 = vector.broadcast %254 : vector<48x1xf32> to vector<48x32xf32>
    %256 = arith.mulf %251, %255 : vector<48x32xf32>
    %257 = vector.broadcast %236 : vector<1x32xf32> to vector<48x32xf32>
    %258 = arith.mulf %256, %257 : vector<48x32xf32>
    %259 = vector.broadcast %238 : vector<1x32xf32> to vector<48x32xf32>
    %260 = arith.addf %258, %259 : vector<48x32xf32>
    %c0_135 = arith.constant 0 : index
    %c0_136 = arith.constant 0 : index
    %261 = vector.load %arg20[%c0_135, %c0_136] : memref<32x96xf32, #tpu.memory_space<vmem>>, vector<32x96xf32>
    %cst_137 = arith.constant dense<0.000000e+00> : vector<48x96xf32>
    %262 = tpu.matmul %260, %261, %cst_137 {dimension_numbers = #tpu.dot_dimension_numbers<[1], [0], [0], [1], [0, 0, 1, 1], [], []>} : vector<48x32xf32>, vector<32x96xf32>, vector<48x96xf32> -> vector<48x96xf32>
    %c0_138 = arith.constant 0 : index
    %c0_139 = arith.constant 0 : index
    %263 = vector.load %arg21[%c0_138, %c0_139] : memref<1x96xf32, #tpu.memory_space<vmem>>, vector<1x96xf32>
    %264 = vector.broadcast %263 : vector<1x96xf32> to vector<48x96xf32>
    %265 = arith.addf %262, %264 : vector<48x96xf32>
    %cst_140 = arith.constant 0.000000e+00 : f32
    %266 = vector.broadcast %cst_140 : f32 to vector<48x96xf32>
    %267 = arith.maximumf %265, %266 : vector<48x96xf32>
    %c0_141 = arith.constant 0 : index
    %c0_142 = arith.constant 0 : index
    %268 = vector.load %arg22[%c0_141, %c0_142] : memref<96x96xf32, #tpu.memory_space<vmem>>, vector<96x96xf32>
    %cst_143 = arith.constant dense<0.000000e+00> : vector<48x96xf32>
    %269 = tpu.matmul %267, %268, %cst_143 {dimension_numbers = #tpu.dot_dimension_numbers<[1], [0], [0], [1], [0, 0, 1, 1], [], []>} : vector<48x96xf32>, vector<96x96xf32>, vector<48x96xf32> -> vector<48x96xf32>
    %c0_144 = arith.constant 0 : index
    %c0_145 = arith.constant 0 : index
    %270 = vector.load %arg23[%c0_144, %c0_145] : memref<1x96xf32, #tpu.memory_space<vmem>>, vector<1x96xf32>
    %271 = vector.broadcast %270 : vector<1x96xf32> to vector<48x96xf32>
    %272 = arith.addf %269, %271 : vector<48x96xf32>
    %cst_146 = arith.constant 0.000000e+00 : f32
    %273 = vector.broadcast %cst_146 : f32 to vector<48x96xf32>
    %274 = arith.maximumf %272, %273 : vector<48x96xf32>
    %c0_147 = arith.constant 0 : index
    %c0_148 = arith.constant 0 : index
    %275 = vector.load %arg24[%c0_147, %c0_148] : memref<96x6xf32, #tpu.memory_space<vmem>>, vector<96x6xf32>
    %cst_149 = arith.constant dense<0.000000e+00> : vector<48x6xf32>
    %276 = tpu.matmul %274, %275, %cst_149 {dimension_numbers = #tpu.dot_dimension_numbers<[1], [0], [0], [1], [0, 0, 1, 1], [], []>} : vector<48x96xf32>, vector<96x6xf32>, vector<48x6xf32> -> vector<48x6xf32>
    %c0_150 = arith.constant 0 : index
    %c0_151 = arith.constant 0 : index
    %277 = vector.load %arg25[%c0_150, %c0_151] : memref<1x6xf32, #tpu.memory_space<vmem>>, vector<1x6xf32>
    %278 = vector.broadcast %277 : vector<1x6xf32> to vector<48x6xf32>
    %279 = arith.addf %276, %278 : vector<48x6xf32>
    %280 = vector.extract_strided_slice %279 {offsets = [0, 0], sizes = [48, 1], strides = [1, 1]} : vector<48x6xf32> to vector<48x1xf32>
    %281 = vector.extract_strided_slice %279 {offsets = [0, 1], sizes = [48, 1], strides = [1, 1]} : vector<48x6xf32> to vector<48x1xf32>
    %282 = vector.extract_strided_slice %279 {offsets = [0, 2], sizes = [48, 4], strides = [1, 1]} : vector<48x6xf32> to vector<48x4xf32>
    %cst_152 = arith.constant 0.000000e+00 : f32
    %283 = vector.broadcast %cst_152 : f32 to vector<48x1xf32>
    %284 = arith.maximumf %281, %283 : vector<48x1xf32>
    %285 = math.absf %281 : vector<48x1xf32>
    %cst_153 = arith.constant 0.000000e+00 : f32
    %286 = vector.broadcast %cst_153 : f32 to vector<48x1xf32>
    %287 = arith.subf %286, %285 : vector<48x1xf32>
    %288 = math.exp %287 : vector<48x1xf32>
    %cst_154 = arith.constant 1.000000e+00 : f32
    %289 = vector.broadcast %cst_154 : f32 to vector<48x1xf32>
    %290 = arith.addf %289, %288 : vector<48x1xf32>
    %291 = math.log %290 : vector<48x1xf32>
    %292 = arith.addf %284, %291 : vector<48x1xf32>
    %cst_155 = arith.constant 0.00999999977 : f32
    %293 = vector.broadcast %cst_155 : f32 to vector<48x1xf32>
    %294 = arith.addf %292, %293 : vector<48x1xf32>
    %cst_156 = arith.constant 2.000000e-02 : f32
    %295 = vector.broadcast %cst_156 : f32 to vector<48x4xf32>
    %296 = arith.mulf %282, %295 : vector<48x4xf32>
    %297 = math.tanh %296 : vector<48x4xf32>
    %cst_157 = arith.constant 5.000000e+01 : f32
    %298 = vector.broadcast %cst_157 : f32 to vector<48x4xf32>
    %299 = arith.mulf %298, %297 : vector<48x4xf32>
    %300 = arith.divf %2, %294 : vector<48x1xf32>
    %301 = arith.subf %1, %280 : vector<48x1xf32>
    %302 = arith.mulf %301, %2 : vector<48x1xf32>
    %303 = vector.broadcast %300 : vector<48x1xf32> to vector<48x4xf32>
    %304 = arith.mulf %299, %303 : vector<48x4xf32>
    %305 = vector.extract_strided_slice %304 {offsets = [0, 0], sizes = [48, 1], strides = [1, 1]} : vector<48x4xf32> to vector<48x1xf32>
    %306 = vector.broadcast %305 : vector<48x1xf32> to vector<48x4xf32>
    %307 = arith.mulf %306, %299 : vector<48x4xf32>
    %cst_158 = arith.constant dense<0.000000e+00> : vector<4xf32>
    %308 = vector.multi_reduction <add>, %307, %cst_158 [0] : vector<48x4xf32> to vector<4xf32>
    %309 = vector.shape_cast %308 : vector<4xf32> to vector<1x4xf32>
    %310 = vector.extract_strided_slice %304 {offsets = [0, 1], sizes = [48, 1], strides = [1, 1]} : vector<48x4xf32> to vector<48x1xf32>
    %311 = vector.broadcast %310 : vector<48x1xf32> to vector<48x4xf32>
    %312 = arith.mulf %311, %299 : vector<48x4xf32>
    %cst_159 = arith.constant dense<0.000000e+00> : vector<4xf32>
    %313 = vector.multi_reduction <add>, %312, %cst_159 [0] : vector<48x4xf32> to vector<4xf32>
    %314 = vector.shape_cast %313 : vector<4xf32> to vector<1x4xf32>
    %315 = vector.extract_strided_slice %304 {offsets = [0, 2], sizes = [48, 1], strides = [1, 1]} : vector<48x4xf32> to vector<48x1xf32>
    %316 = vector.broadcast %315 : vector<48x1xf32> to vector<48x4xf32>
    %317 = arith.mulf %316, %299 : vector<48x4xf32>
    %cst_160 = arith.constant dense<0.000000e+00> : vector<4xf32>
    %318 = vector.multi_reduction <add>, %317, %cst_160 [0] : vector<48x4xf32> to vector<4xf32>
    %319 = vector.shape_cast %318 : vector<4xf32> to vector<1x4xf32>
    %320 = vector.extract_strided_slice %304 {offsets = [0, 3], sizes = [48, 1], strides = [1, 1]} : vector<48x4xf32> to vector<48x1xf32>
    %321 = vector.broadcast %320 : vector<48x1xf32> to vector<48x4xf32>
    %322 = arith.mulf %321, %299 : vector<48x4xf32>
    %cst_161 = arith.constant dense<0.000000e+00> : vector<4xf32>
    %323 = vector.multi_reduction <add>, %322, %cst_161 [0] : vector<48x4xf32> to vector<4xf32>
    %324 = vector.shape_cast %323 : vector<4xf32> to vector<1x4xf32>
    %325 = tpu.concatenate %309, %314, %319, %324 in 0 : vector<1x4xf32>, vector<1x4xf32>, vector<1x4xf32>, vector<1x4xf32> -> vector<4x4xf32>
    %326 = vector.broadcast %302 : vector<48x1xf32> to vector<48x4xf32>
    %327 = arith.mulf %304, %326 : vector<48x4xf32>
    %cst_162 = arith.constant dense<0.000000e+00> : vector<4xf32>
    %328 = vector.multi_reduction <add>, %327, %cst_162 [0] : vector<48x4xf32> to vector<4xf32>
    %329 = vector.shape_cast %328 : vector<4xf32> to vector<1x4xf32>
    %330 = arith.mulf %302, %302 : vector<48x1xf32>
    %331 = arith.mulf %330, %300 : vector<48x1xf32>
    %cst_163 = arith.constant dense<0.000000e+00> : vector<1xf32>
    %332 = vector.multi_reduction <add>, %331, %cst_163 [0] : vector<48x1xf32> to vector<1xf32>
    %333 = vector.shape_cast %332 : vector<1xf32> to vector<1x1xf32>
    %334 = math.log %294 : vector<48x1xf32>
    %335 = arith.mulf %2, %334 : vector<48x1xf32>
    %cst_164 = arith.constant dense<0.000000e+00> : vector<1xf32>
    %336 = vector.multi_reduction <add>, %335, %cst_164 [0] : vector<48x1xf32> to vector<1xf32>
    %337 = vector.shape_cast %336 : vector<1xf32> to vector<1x1xf32>
    %c0_165 = arith.constant 0 : index
    %c0_166 = arith.constant 0 : index
    %c0_167 = arith.constant 0 : index
    %338 = vector.load %arg26[%c0_165, %c0_166, %c0_167] : memref<1x4x4xf32, #tpu.memory_space<vmem>>, vector<1x4x4xf32>
    %339 = vector.shape_cast %338 : vector<1x4x4xf32> to vector<4x4xf32>
    %340 = vector.shape_cast %325 : vector<4x4xf32> to vector<1x4x4xf32>
    tpu.vector_store %arg26[%c0_165, %c0_166, %c0_167], %340 {strides = array<i32>} : memref<1x4x4xf32, #tpu.memory_space<vmem>>, vector<1x4x4xf32>,
    %c0_168 = arith.constant 0 : index
    %c0_169 = arith.constant 0 : index
    %c0_170 = arith.constant 0 : index
    %341 = vector.load %arg27[%c0_168, %c0_169, %c0_170] : memref<1x1x4xf32, #tpu.memory_space<vmem>>, vector<1x1x4xf32>
    %342 = vector.shape_cast %341 : vector<1x1x4xf32> to vector<1x4xf32>
    %343 = vector.shape_cast %329 : vector<1x4xf32> to vector<1x1x4xf32>
    tpu.vector_store %arg27[%c0_168, %c0_169, %c0_170], %343 {strides = array<i32>} : memref<1x1x4xf32, #tpu.memory_space<vmem>>, vector<1x1x4xf32>,
    %344 = tpu.concatenate %333, %337 in 1 : vector<1x1xf32>, vector<1x1xf32> -> vector<1x2xf32>
    %c0_171 = arith.constant 0 : index
    %c0_172 = arith.constant 0 : index
    %c0_173 = arith.constant 0 : index
    %345 = vector.load %arg28[%c0_171, %c0_172, %c0_173] : memref<1x1x2xf32, #tpu.memory_space<vmem>>, vector<1x1x2xf32>
    %346 = vector.shape_cast %345 : vector<1x1x2xf32> to vector<1x2xf32>
    %347 = vector.shape_cast %344 : vector<1x2xf32> to vector<1x1x2xf32>
    tpu.vector_store %arg28[%c0_171, %c0_172, %c0_173], %347 {strides = array<i32>} : memref<1x1x2xf32, #tpu.memory_space<vmem>>, vector<1x1x2xf32>,
    return
  }
  func.func @transform_0(%arg0: i32) -> (i32, i32, i32) {
    %c0_i32 = arith.constant 0 : i32
    %c0_i32_0 = arith.constant 0 : i32
    %c0_i32_1 = arith.constant 0 : i32
    return %arg0, %c0_i32, %c0_i32_0 : i32, i32, i32
  }
  func.func @transform_1(%arg0: i32) -> (i32, i32) {
    %c0_i32 = arith.constant 0 : i32
    %c0_i32_0 = arith.constant 0 : i32
    %c0_i32_1 = arith.constant 0 : i32
    return %c0_i32, %c0_i32_0 : i32, i32
  }
  func.func @transform_2(%arg0: i32) -> (i32, i32) {
    %c0_i32 = arith.constant 0 : i32
    %c0_i32_0 = arith.constant 0 : i32
    %c0_i32_1 = arith.constant 0 : i32
    return %c0_i32, %c0_i32_0 : i32, i32
  }
  func.func @transform_3(%arg0: i32) -> (i32, i32) {
    %c0_i32 = arith.constant 0 : i32
    %c0_i32_0 = arith.constant 0 : i32
    %c0_i32_1 = arith.constant 0 : i32
    return %c0_i32, %c0_i32_0 : i32, i32
  }
  func.func @transform_4(%arg0: i32) -> (i32, i32) {
    %c0_i32 = arith.constant 0 : i32
    %c0_i32_0 = arith.constant 0 : i32
    %c0_i32_1 = arith.constant 0 : i32
    return %c0_i32, %c0_i32_0 : i32, i32
  }
  func.func @transform_5(%arg0: i32) -> (i32, i32) {
    %c0_i32 = arith.constant 0 : i32
    %c0_i32_0 = arith.constant 0 : i32
    %c0_i32_1 = arith.constant 0 : i32
    return %c0_i32, %c0_i32_0 : i32, i32
  }
  func.func @transform_6(%arg0: i32) -> (i32, i32) {
    %c0_i32 = arith.constant 0 : i32
    %c0_i32_0 = arith.constant 0 : i32
    %c0_i32_1 = arith.constant 0 : i32
    return %c0_i32, %c0_i32_0 : i32, i32
  }
  func.func @transform_7(%arg0: i32) -> (i32, i32, i32) {
    %c0_i32 = arith.constant 0 : i32
    %c0_i32_0 = arith.constant 0 : i32
    %c0_i32_1 = arith.constant 0 : i32
    %c0_i32_2 = arith.constant 0 : i32
    return %c0_i32, %c0_i32_0, %c0_i32_1 : i32, i32, i32
  }
  func.func @transform_8(%arg0: i32) -> (i32, i32, i32) {
    %c0_i32 = arith.constant 0 : i32
    %c0_i32_0 = arith.constant 0 : i32
    %c0_i32_1 = arith.constant 0 : i32
    %c0_i32_2 = arith.constant 0 : i32
    return %c0_i32, %c0_i32_0, %c0_i32_1 : i32, i32, i32
  }
  func.func @transform_9(%arg0: i32) -> (i32, i32, i32) {
    %c0_i32 = arith.constant 0 : i32
    %c0_i32_0 = arith.constant 0 : i32
    %c0_i32_1 = arith.constant 0 : i32
    %c0_i32_2 = arith.constant 0 : i32
    return %c0_i32, %c0_i32_0, %c0_i32_1 : i32, i32, i32
  }
  func.func @transform_10(%arg0: i32) -> (i32, i32, i32) {
    %c0_i32 = arith.constant 0 : i32
    %c0_i32_0 = arith.constant 0 : i32
    %c0_i32_1 = arith.constant 0 : i32
    %c0_i32_2 = arith.constant 0 : i32
    return %c0_i32, %c0_i32_0, %c0_i32_1 : i32, i32, i32
  }
  func.func @transform_11(%arg0: i32) -> (i32, i32, i32) {
    %c0_i32 = arith.constant 0 : i32
    %c0_i32_0 = arith.constant 0 : i32
    %c0_i32_1 = arith.constant 0 : i32
    %c0_i32_2 = arith.constant 0 : i32
    return %c0_i32, %c0_i32_0, %c0_i32_1 : i32, i32, i32
  }
  func.func @transform_12(%arg0: i32) -> (i32, i32, i32) {
    %c0_i32 = arith.constant 0 : i32
    %c0_i32_0 = arith.constant 0 : i32
    %c0_i32_1 = arith.constant 0 : i32
    %c0_i32_2 = arith.constant 0 : i32
    return %c0_i32, %c0_i32_0, %c0_i32_1 : i32, i32, i32
  }
  func.func @transform_13(%arg0: i32) -> (i32, i32, i32) {
    %c0_i32 = arith.constant 0 : i32
    %c0_i32_0 = arith.constant 0 : i32
    %c0_i32_1 = arith.constant 0 : i32
    %c0_i32_2 = arith.constant 0 : i32
    return %c0_i32, %c0_i32_0, %c0_i32_1 : i32, i32, i32
  }
  func.func @transform_14(%arg0: i32) -> (i32, i32, i32) {
    %c0_i32 = arith.constant 0 : i32
    %c0_i32_0 = arith.constant 0 : i32
    %c0_i32_1 = arith.constant 0 : i32
    %c0_i32_2 = arith.constant 0 : i32
    return %c0_i32, %c0_i32_0, %c0_i32_1 : i32, i32, i32
  }
  func.func @transform_15(%arg0: i32) -> (i32, i32, i32) {
    %c0_i32 = arith.constant 0 : i32
    %c0_i32_0 = arith.constant 0 : i32
    %c0_i32_1 = arith.constant 0 : i32
    %c0_i32_2 = arith.constant 0 : i32
    return %c0_i32, %c0_i32_0, %c0_i32_1 : i32, i32, i32
  }
  func.func @transform_16(%arg0: i32) -> (i32, i32, i32) {
    %c0_i32 = arith.constant 0 : i32
    %c0_i32_0 = arith.constant 0 : i32
    %c0_i32_1 = arith.constant 0 : i32
    %c0_i32_2 = arith.constant 0 : i32
    return %c0_i32, %c0_i32_0, %c0_i32_1 : i32, i32, i32
  }
  func.func @transform_17(%arg0: i32) -> (i32, i32, i32) {
    %c0_i32 = arith.constant 0 : i32
    %c0_i32_0 = arith.constant 0 : i32
    %c0_i32_1 = arith.constant 0 : i32
    %c0_i32_2 = arith.constant 0 : i32
    return %c0_i32, %c0_i32_0, %c0_i32_1 : i32, i32, i32
  }
  func.func @transform_18(%arg0: i32) -> (i32, i32, i32) {
    %c0_i32 = arith.constant 0 : i32
    %c0_i32_0 = arith.constant 0 : i32
    %c0_i32_1 = arith.constant 0 : i32
    %c0_i32_2 = arith.constant 0 : i32
    return %c0_i32, %c0_i32_0, %c0_i32_1 : i32, i32, i32
  }
  func.func @transform_19(%arg0: i32) -> (i32, i32) {
    %c0_i32 = arith.constant 0 : i32
    %c0_i32_0 = arith.constant 0 : i32
    %c0_i32_1 = arith.constant 0 : i32
    return %c0_i32, %c0_i32_0 : i32, i32
  }
  func.func @transform_20(%arg0: i32) -> (i32, i32) {
    %c0_i32 = arith.constant 0 : i32
    %c0_i32_0 = arith.constant 0 : i32
    %c0_i32_1 = arith.constant 0 : i32
    return %c0_i32, %c0_i32_0 : i32, i32
  }
  func.func @transform_21(%arg0: i32) -> (i32, i32) {
    %c0_i32 = arith.constant 0 : i32
    %c0_i32_0 = arith.constant 0 : i32
    %c0_i32_1 = arith.constant 0 : i32
    return %c0_i32, %c0_i32_0 : i32, i32
  }
  func.func @transform_22(%arg0: i32) -> (i32, i32) {
    %c0_i32 = arith.constant 0 : i32
    %c0_i32_0 = arith.constant 0 : i32
    %c0_i32_1 = arith.constant 0 : i32
    return %c0_i32, %c0_i32_0 : i32, i32
  }
  func.func @transform_23(%arg0: i32) -> (i32, i32) {
    %c0_i32 = arith.constant 0 : i32
    %c0_i32_0 = arith.constant 0 : i32
    %c0_i32_1 = arith.constant 0 : i32
    return %c0_i32, %c0_i32_0 : i32, i32
  }
  func.func @transform_24(%arg0: i32) -> (i32, i32) {
    %c0_i32 = arith.constant 0 : i32
    %c0_i32_0 = arith.constant 0 : i32
    %c0_i32_1 = arith.constant 0 : i32
    return %c0_i32, %c0_i32_0 : i32, i32
  }
  func.func @transform_25(%arg0: i32) -> (i32, i32, i32) {
    %c0_i32 = arith.constant 0 : i32
    %c0_i32_0 = arith.constant 0 : i32
    %c0_i32_1 = arith.constant 0 : i32
    return %arg0, %c0_i32, %c0_i32_0 : i32, i32, i32
  }
  func.func @transform_26(%arg0: i32) -> (i32, i32, i32) {
    %c0_i32 = arith.constant 0 : i32
    %c0_i32_0 = arith.constant 0 : i32
    %c0_i32_1 = arith.constant 0 : i32
    return %arg0, %c0_i32, %c0_i32_0 : i32, i32, i32
  }
  func.func @transform_27(%arg0: i32) -> (i32, i32, i32) {
    %c0_i32 = arith.constant 0 : i32
    %c0_i32_0 = arith.constant 0 : i32
    %c0_i32_1 = arith.constant 0 : i32
    return %arg0, %c0_i32, %c0_i32_0 : i32, i32, i32
  }
}

</mosaic_0001>

<llo_original>
// kernel: tile.9
$region0: #{tile.9}
  %s0 = inlined_call_operand.vmem [shape: f32[4,12,32], index: 0, kind: input, shape index: {}]
  %s1 = inlined_call_operand.vmem [shape: f32[48,32], index: 1, kind: output, shape index: {}]
  %v2 = vld [vmem:[%s0] sm:$0xff]
  %vm3 = vcmask 261120
  %4 = vst.msk [vmem:[%s1] sm:$0xff] %vm3, %v2
  %s5 = scalar_lea.vmem %s0, 8
  %v6 = vld [vmem:[%s5] sm:$0xf]
  %vm7 = vcmask 261120
  %s8 = scalar_lea.vmem %s1, 8
  %9 = vst.msk [vmem:[%s8] sm:$0xf] %vm7, %v6
  %s10 = scalar_lea.vmem %s0, 16
  %v11 = vld [vmem:[%s10] sm:$0xff]
  %vm12 = vcmask 261120
  %s13 = scalar_lea.vmem %s1, 12
  %14 = vst.msk [vmem:[%s13] sm:$0xff] %vm12, %v11
  %s15 = scalar_lea.vmem %s0, 24
  %v16 = vld [vmem:[%s15] sm:$0xf]
  %vm17 = vcmask 261120
  %s18 = scalar_lea.vmem %s1, 20
  %19 = vst.msk [vmem:[%s18] sm:$0xf] %vm17, %v16
  %s20 = scalar_lea.vmem %s0, 32
  %v21 = vld [vmem:[%s20] sm:$0xff]
  %vm22 = vcmask 261120
  %s23 = scalar_lea.vmem %s1, 24
  %24 = vst.msk [vmem:[%s23] sm:$0xff] %vm22, %v21
  %s25 = scalar_lea.vmem %s0, 40
  %v26 = vld [vmem:[%s25] sm:$0xf]
  %vm27 = vcmask 261120
  %s28 = scalar_lea.vmem %s1, 32
  %29 = vst.msk [vmem:[%s28] sm:$0xf] %vm27, %v26
  %s30 = scalar_lea.vmem %s0, 48
  %v31 = vld [vmem:[%s30] sm:$0xff]
  %vm32 = vcmask 261120
  %s33 = scalar_lea.vmem %s1, 36
  %34 = vst.msk [vmem:[%s33] sm:$0xff] %vm32, %v31
  %s35 = scalar_lea.vmem %s0, 56
  %v36 = vld [vmem:[%s35] sm:$0xf]
  %vm37 = vcmask 261120
  %s38 = scalar_lea.vmem %s1, 44
  %39 = vst.msk [vmem:[%s38] sm:$0xf] %vm37, %v36

// kernel: custom-call.2
$region0: #{custom-call.2}
  %s0 = inlined_call_operand.vmem [shape: f32[2,4,4], index: 0, kind: input, shape index: {}]
  %s1 = inlined_call_operand.vmem [shape: f32[2,4,4], index: 1, kind: output, shape index: {}]
  $region1: #{custom-call.2} parent=0
    #allocation0 [shape = 'u8[4096]{0}', space=vmem, size = 0x1000, scoped, tag = 'operand span for operand 0']
    #allocation1 [shape = 'u8[4096]{0}', space=vmem, size = 0x1000, scoped, tag = 'packed  for operand 0']
    #allocation2 [shape = 'u8[4096]{0}', space=vmem, size = 0x1000, scoped, tag = 'operand span for operand 1']
    #allocation3 [shape = 'u8[4096]{0}', space=vmem, size = 0x1000, scoped, tag = 'packed  for operand 1']
    loop: start=0, step=1, limit=4
    $region2: #{custom-call.2} parent=1 // loop_pre_header
      _
    $region3: #{custom-call.2} parent=1 // loop_header
      %s3 = sphi 0, %s7
      %p4 = scmp.ge.s32.totalorder %s3, 4
      %s10 = sphi 0, %s29
      %s11 = sphi 0, %s25
      %s12 = sphi 0, %s21
      %s13 = sphi 0, %s10
      %s14 = sphi 0, %s11
      %s15 = sphi 0, %s12
      %s16 = sphi 0, %s13
      %s17 = sphi 0, %s14
      %s18 = sphi 0, %s15
    $region4: #{custom-call.2} parent=1 // loop_header_branch
      %6 = sbr.rel (%p4) target = $region8
    $region5: #{custom-call.2} parent=1 // loop_body
      %s8 = ssub.s32 %s3, 1
      %s9 = ssub.s32 %s3, 2
      %s19 = sadd.s32 1, %s12
      %p20 = scmp.ge.s32.totalorder %s19, 1
      %s21 = scalar_select %p20, 0, %s19
      %s22 = sadd.s32 1, %s11
      %s23 = scalar_select %p20, %s22, %s11
      %p24 = scmp.ge.s32.totalorder %s23, 1
      %s25 = scalar_select %p24, 0, %s23
      %s26 = sadd.s32 1, %s10
      %s27 = scalar_select %p24, %s26, %s10
      %p28 = scmp.ge.s32.totalorder %s27, 2
      %s29 = scalar_select %p28, 0, %s27
      %p30 = scmp.le.s32.totalorder 1, %s3
      %p31 = scmp.lt.s32.totalorder %s3, 3
      %p32 = pnand %p30, %p31
      %p33 = pneg %p32
      // Predicated region
      $region9: #{custom-call.2} parent=5 // pred_check
        _
      $region10: #{custom-call.2} parent=5 // pred_check_branch
        %35 = sbr.rel (%p32) target = $region12
      $region11: #{custom-call.2} parent=5 // pred_region
        %s36 = ssub.s32 %s3, 1
      $region12: #{custom-call.2} parent=5 // pred_fallthru
        _
      %p37 = scmp.lt.s32.totalorder %s3, 2
      // Predicated region
      $region13: #{custom-call.2} parent=5 // pred_check
        %p38 = pneg %p37
      $region14: #{custom-call.2} parent=5 // pred_check_branch
        %40 = sbr.rel (%p38) target = $region16
      $region15: #{custom-call.2} parent=5 // pred_region
        %s41 = sand.u32 %s3, 1
        %s42 = sand.u32 %s3, 1
        %s43 = smul.addr %s42, 4
        %s44 = scalar_lea.vmem [#allocation1], %s43
        %s45 = sadd.s32 %s12, %s11
        %s46 = sadd.s32 %s45, %s10
        %s47 = smul.addr %s46, 4
        %s48 = scalar_lea.vmem %s0, %s47
        // Predicated region
        $region17: #{custom-call.2} parent=15 // pred_check
          _
        $region18: #{custom-call.2} parent=15 // pred_check_branch
          %50 = sbr.rel (0) target = $region20
        $region19: #{custom-call.2} parent=15 // pred_region
          // Predicated region
          $region21: #{custom-call.2} parent=19 // pred_check
            _
          $region22: #{custom-call.2} parent=19 // pred_check_branch
            %52 = sbr.rel target = $region24
          $region23: #{custom-call.2} parent=19 // pred_region
            // Predicated region
            $region36: #{custom-call.2} parent=23 // pred_check
              _
            $region37: #{custom-call.2} parent=23 // pred_check_branch
              %68 = sbr.rel (0) target = $region39
            $region38: #{custom-call.2} parent=23 // pred_region
              %s70 = ssub.s32 16, 1
              loop: start=0, step=1, limit=1
              $region40: #{custom-call.2} parent=38 // loop_pre_header
                _
              $region41: #{custom-call.2} parent=38 // loop_header
                %s72 = sphi 0, %s76
                %p73 = scmp.ge.s32.totalorder %s72, 1
                %s77 = sphi %s48, %s48
                %s78 = sphi %s44, %s44
              $region42: #{custom-call.2} parent=38 // loop_header_branch
                %75 = sbr.rel (%p73) target = $region46
              $region43: #{custom-call.2} parent=38 // loop_body
                %v79 = vld [vmem:[%s77] sm:%s70]
                %80 = vst [vmem:[%s78] sm:%s70] %v79
              $region44: #{custom-call.2} parent=38 // loop_footer
                %s76 = sadd.s32 1, %s72
              $region45: #{custom-call.2} parent=38 // loop_footer_branch
                %71 = sbr.rel target = $region41
              $region46: #{custom-call.2} parent=38 // loop_exit
                _
            $region39: #{custom-call.2} parent=23 // pred_fallthru
              _
          $region24: #{custom-call.2} parent=19 // pred_fallthru
            _
          // Predicated region
          $region25: #{custom-call.2} parent=19 // pred_check
            _
          $region26: #{custom-call.2} parent=19 // pred_check_branch
            %54 = sbr.rel (0) target = $region28
          $region27: #{custom-call.2} parent=19 // pred_region
            %s56 = ssub.s32 16, 1
            loop: start=0, step=1, limit=1
            $region29: #{custom-call.2} parent=27 // loop_pre_header
              _
            $region30: #{custom-call.2} parent=27 // loop_header
              %s58 = sphi 0, %s62
              %p59 = scmp.ge.s32.totalorder %s58, 1
              %s63 = sphi %s48, %s48
              %s64 = sphi %s44, %s44
            $region31: #{custom-call.2} parent=27 // loop_header_branch
              %61 = sbr.rel (%p59) target = $region35
            $region32: #{custom-call.2} parent=27 // loop_body
              %v65 = vld [vmem:[%s63] sm:%s56]
              %66 = vst [vmem:[%s64] sm:%s56] %v65
            $region33: #{custom-call.2} parent=27 // loop_footer
              %s62 = sadd.s32 1, %s58
            $region34: #{custom-call.2} parent=27 // loop_footer_branch
              %57 = sbr.rel target = $region30
            $region35: #{custom-call.2} parent=27 // loop_exit
              _
          $region28: #{custom-call.2} parent=19 // pred_fallthru
            _
        $region20: #{custom-call.2} parent=15 // pred_fallthru
          _
        %81 = vnop
      $region16: #{custom-call.2} parent=5 // pred_fallthru
        _
      %p82 = scmp.le.s32.totalorder 1, %s3
      %p83 = scmp.lt.s32.totalorder %s3, 3
      %p84 = pnand %p82, %p83
      %p85 = pneg %p84
      // Predicated region
      $region47: #{custom-call.2} parent=5 // pred_check
        _
      $region48: #{custom-call.2} parent=5 // pred_check_branch
        %87 = sbr.rel (%p84) target = $region50
      $region49: #{custom-call.2} parent=5 // pred_region
        %s88 = ssub.s32 %s3, 1
        %s89 = sand.u32 %s8, 1
        %s90 = sand.u32 %s8, 1
        %s91 = smul.addr %s90, 4
        %s92 = scalar_lea.vmem [#allocation1], %s91
        %s93 = sand.u32 %s8, 1
        %s94 = sand.u32 %s8, 1
        %s95 = smul.addr %s94, 4
        %s96 = scalar_lea.vmem [#allocation1], %s95
        %s97 = sand.u32 %s8, 1
        %s98 = sand.u32 %s8, 1
        %s99 = smul.addr %s98, 4
        %s100 = scalar_lea.vmem [#allocation3], %s99
        %s102 = sshll.u32 1, 4
        %s103 = ssub.s32 %s102, 1
        %v104 = vld [vmem:[%s96] sm:%s103]
        %105 = vst [vmem:[#allocation0] sm:%s103] %v104
        %106 = vst [vmem:[#allocation2] sm:$0xff] 0.0
        %vm107 = vcmask 7168
        %v108 = vld [vmem:[#allocation2] ss:$0 sm:$0xff]
        %v109 = vld [vmem:[#allocation0] ss:$0 sm:$0xff]
        %v110 = vmul.f32 %v108, %v108
        %111 = vadd.xlane.f32.xlu0 %v110
        %v112 = vpop.xlane.xlu0 %111
        %v113 = vsub.f32 %v109, %v112
        %v114 = vrsqrt.pop %v113
        %v115 = vld [vmem:[#allocation0] sm:$0xff]
        %v116 = vld [vmem:[#allocation2] sm:$0xff]
        %v117 = vmul.f32 %v116, %v108
        %118 = vadd.xlane.f32.xlu0 %v117
        %v119 = vpop.xlane.xlu0 %118
        %v120 = vsub.f32 %v115, %v119
        %v121 = vmul.f32 %v120, %v114
        %v122 = vsel %vm107, %v121, 0.0
        %v123 = vadd.f32 %v116, %v122
        %124 = vst [vmem:[#allocation2] sm:$0xff] %v123
        %vm125 = vcmask 15368
        %s126 = scalar_lea.vmem [#allocation2], 1
        %v127 = vld [vmem:[%s126] ss:$0 sm:$0xff]
        %s128 = scalar_lea.vmem [#allocation0], 1
        %v129 = vld [vmem:[%s128] ss:$0 sm:$0xff]
        %v130 = vmul.f32 %v127, %v127
        %131 = vadd.xlane.f32.xlu0 %v130
        %v132 = vpop.xlane.xlu0 %131
        %v133 = vsub.f32 %v129, %v132
        %v134 = vrsqrt.pop %v133
        %v135 = vld [vmem:[#allocation0] sm:$0xff]
        %v136 = vld [vmem:[#allocation2] sm:$0xff]
        %v137 = vmul.f32 %v136, %v127
        %138 = vadd.xlane.f32.xlu0 %v137
        %v139 = vpop.xlane.xlu0 %138
        %v140 = vsub.f32 %v135, %v139
        %v141 = vmul.f32 %v140, %v134
        %vm142 = vcmask 1047553
        %vm143 = vmand %vm125, %vm142
        %v144 = vsel %vm143, %v141, 0.0
        %v145 = vadd.f32 %v136, %v144
        %146 = vst [vmem:[#allocation2] sm:$0xff] %v145
        %vm147 = vcmask 23568
        %s148 = scalar_lea.vmem [#allocation2], 2
        %v149 = vld [vmem:[%s148] ss:$0 sm:$0xff]
        %s150 = scalar_lea.vmem [#allocation0], 2
        %v151 = vld [vmem:[%s150] ss:$0 sm:$0xff]
        %v152 = vmul.f32 %v149, %v149
        %153 = vadd.xlane.f32.xlu0 %v152
        %v154 = vpop.xlane.xlu0 %153
        %v155 = vsub.f32 %v151, %v154
        %v156 = vrsqrt.pop %v155
        %v157 = vld [vmem:[#allocation0] sm:$0xff]
        %v158 = vld [vmem:[#allocation2] sm:$0xff]
        %v159 = vmul.f32 %v158, %v149
        %160 = vadd.xlane.f32.xlu0 %v159
        %v161 = vpop.xlane.xlu0 %160
        %v162 = vsub.f32 %v157, %v161
        %v163 = vmul.f32 %v162, %v156
        %vm164 = vcmask 1047554
        %vm165 = vmand %vm147, %vm164
        %v166 = vsel %vm165, %v163, 0.0
        %v167 = vadd.f32 %v158, %v166
        %168 = vst [vmem:[#allocation2] sm:$0xff] %v167
        %vm169 = vcmask 31768
        %s170 = scalar_lea.vmem [#allocation2], 3
        %v171 = vld [vmem:[%s170] ss:$0 sm:$0xff]
        %s172 = scalar_lea.vmem [#allocation0], 3
        %v173 = vld [vmem:[%s172] ss:$0 sm:$0xff]
        %v174 = vmul.f32 %v171, %v171
        %175 = vadd.xlane.f32.xlu0 %v174
        %v176 = vpop.xlane.xlu0 %175
        %v177 = vsub.f32 %v173, %v176
        %v178 = vrsqrt.pop %v177
        %v179 = vld [vmem:[#allocation0] sm:$0xff]
        %v180 = vld [vmem:[#allocation2] sm:$0xff]
        %v181 = vmul.f32 %v180, %v171
        %182 = vadd.xlane.f32.xlu0 %v181
        %v183 = vpop.xlane.xlu0 %182
        %v184 = vsub.f32 %v179, %v183
        %v185 = vmul.f32 %v184, %v178
        %vm186 = vcmask 1047555
        %vm187 = vmand %vm169, %vm186
        %v188 = vsel %vm187, %v185, 0.0
        %v189 = vadd.f32 %v180, %v188
        %190 = vst [vmem:[#allocation2] sm:$0xff] %v189
        %s192 = sshll.u32 1, 4
        %s193 = ssub.s32 %s192, 1
        %v195 = vld [vmem:[#allocation2] sm:%s193]
        %s196 = sshll.u32 1, 4
        %s197 = ssub.s32 %s196, 1
        %198 = vst [vmem:[%s100] sm:%s197] %v195
        %s199 = sand.u32 %s8, 1
        %s200 = sand.u32 %s8, 1
        %s201 = smul.addr %s200, 4
        %s202 = scalar_lea.vmem [#allocation3], %s201
        %s203 = sadd.s32 %s15, %s14
        %s204 = sadd.s32 %s203, %s13
        %s205 = smul.addr %s204, 4
        %s206 = scalar_lea.vmem %s1, %s205
        // Predicated region
        $region51: #{custom-call.2} parent=49 // pred_check
          _
        $region52: #{custom-call.2} parent=49 // pred_check_branch
          %208 = sbr.rel (0) target = $region54
        $region53: #{custom-call.2} parent=49 // pred_region
          // Predicated region
          $region55: #{custom-call.2} parent=53 // pred_check
            _
          $region56: #{custom-call.2} parent=53 // pred_check_branch
            %210 = sbr.rel target = $region58
          $region57: #{custom-call.2} parent=53 // pred_region
            // Predicated region
            $region70: #{custom-call.2} parent=57 // pred_check
              _
            $region71: #{custom-call.2} parent=57 // pred_check_branch
              %226 = sbr.rel (0) target = $region73
            $region72: #{custom-call.2} parent=57 // pred_region
              %s228 = ssub.s32 16, 1
              loop: start=0, step=1, limit=1
              $region74: #{custom-call.2} parent=72 // loop_pre_header
                _
              $region75: #{custom-call.2} parent=72 // loop_header
                %s230 = sphi 0, %s234
                %p231 = scmp.ge.s32.totalorder %s230, 1
                %s235 = sphi %s202, %s202
                %s236 = sphi %s206, %s206
              $region76: #{custom-call.2} parent=72 // loop_header_branch
                %233 = sbr.rel (%p231) target = $region80
              $region77: #{custom-call.2} parent=72 // loop_body
                %v237 = vld [vmem:[%s235] sm:%s228]
                %238 = vst [vmem:[%s236] sm:%s228] %v237
              $region78: #{custom-call.2} parent=72 // loop_footer
                %s234 = sadd.s32 1, %s230
              $region79: #{custom-call.2} parent=72 // loop_footer_branch
                %229 = sbr.rel target = $region75
              $region80: #{custom-call.2} parent=72 // loop_exit
                _
            $region73: #{custom-call.2} parent=57 // pred_fallthru
              _
          $region58: #{custom-call.2} parent=53 // pred_fallthru
            _
          // Predicated region
          $region59: #{custom-call.2} parent=53 // pred_check
            _
          $region60: #{custom-call.2} parent=53 // pred_check_branch
            %212 = sbr.rel (0) target = $region62
          $region61: #{custom-call.2} parent=53 // pred_region
            %s214 = ssub.s32 16, 1
            loop: start=0, step=1, limit=1
            $region63: #{custom-call.2} parent=61 // loop_pre_header
              _
            $region64: #{custom-call.2} parent=61 // loop_header
              %s216 = sphi 0, %s220
              %p217 = scmp.ge.s32.totalorder %s216, 1
              %s221 = sphi %s202, %s202
              %s222 = sphi %s206, %s206
            $region65: #{custom-call.2} parent=61 // loop_header_branch
              %219 = sbr.rel (%p217) target = $region69
            $region66: #{custom-call.2} parent=61 // loop_body
              %v223 = vld [vmem:[%s221] sm:%s214]
              %224 = vst [vmem:[%s222] sm:%s214] %v223
            $region67: #{custom-call.2} parent=61 // loop_footer
              %s220 = sadd.s32 1, %s216
            $region68: #{custom-call.2} parent=61 // loop_footer_branch
              %215 = sbr.rel target = $region64
            $region69: #{custom-call.2} parent=61 // loop_exit
              _
          $region62: #{custom-call.2} parent=53 // pred_fallthru
            _
        $region54: #{custom-call.2} parent=49 // pred_fallthru
          _
        %239 = vnop
      $region50: #{custom-call.2} parent=5 // pred_fallthru
        _
      %p240 = scmp.le.s32.totalorder 2, %s3
      // Predicated region
      $region81: #{custom-call.2} parent=5 // pred_check
        %p241 = pneg %p240
      $region82: #{custom-call.2} parent=5 // pred_check_branch
        %243 = sbr.rel (%p241) target = $region84
      $region83: #{custom-call.2} parent=5 // pred_region
        %s244 = ssub.s32 %s3, 2
        %s245 = sand.u32 %s9, 1
        %s246 = sand.u32 %s9, 1
        %s247 = smul.addr %s246, 4
        %s248 = scalar_lea.vmem [#allocation3], %s247
      $region84: #{custom-call.2} parent=5 // pred_fallthru
        _
    $region6: #{custom-call.2} parent=1 // loop_footer
      %s7 = sadd.s32 1, %s3
    $region7: #{custom-call.2} parent=1 // loop_footer_branch
      %2 = sbr.rel target = $region3
    $region8: #{custom-call.2} parent=1 // loop_exit
      _

// kernel: tactis_training_loss.1
$region0: #{tactis_training_loss.1}
  #allocation0 [shape = 'u32[]', space=smem, size = 0x4, offset = 0x4, fixed_abs, tag = 'smem constant byte address 0x4 - core index']
  #allocation1 [shape = 'u32[144,128]{1,0:T(1,128)}', space=vmem, size = 0x12000, scoped, tag = 'internal scratch']
  %s0 = inlined_call_operand.vmem [shape: f32[2,48,1], index: 0, kind: input, shape index: {}]
  %s1 = inlined_call_operand.vmem [shape: f32[48,1], index: 1, kind: input, shape index: {}]
  %s2 = inlined_call_operand.vmem [shape: f32[48,32], index: 2, kind: input, shape index: {}]
  %s3 = inlined_call_operand.vmem [shape: f32[48,32], index: 3, kind: input, shape index: {}]
  %s4 = inlined_call_operand.vmem [shape: f32[1,32], index: 4, kind: input, shape index: {}]
  %s5 = inlined_call_operand.vmem [shape: f32[32,32], index: 5, kind: input, shape index: {}]
  %s6 = inlined_call_operand.vmem [shape: f32[1,32], index: 6, kind: input, shape index: {}]
  %s7 = inlined_call_operand.vmem [shape: f32[2,32,96], index: 7, kind: input, shape index: {}]
  %s8 = inlined_call_operand.vmem [shape: f32[2,1,96], index: 8, kind: input, shape index: {}]
  %s9 = inlined_call_operand.vmem [shape: f32[2,32,32], index: 9, kind: input, shape index: {}]
  %s10 = inlined_call_operand.vmem [shape: f32[2,1,32], index: 10, kind: input, shape index: {}]
  %s11 = inlined_call_operand.vmem [shape: f32[2,1,32], index: 11, kind: input, shape index: {}]
  %s12 = inlined_call_operand.vmem [shape: f32[2,1,32], index: 12, kind: input, shape index: {}]
  %s13 = inlined_call_operand.vmem [shape: f32[2,32,64], index: 13, kind: input, shape index: {}]
  %s14 = inlined_call_operand.vmem [shape: f32[2,1,64], index: 14, kind: input, shape index: {}]
  %s15 = inlined_call_operand.vmem [shape: f32[2,64,32], index: 15, kind: input, shape index: {}]
  %s16 = inlined_call_operand.vmem [shape: f32[2,1,32], index: 16, kind: input, shape index: {}]
  %s17 = inlined_call_operand.vmem [shape: f32[2,1,32], index: 17, kind: input, shape index: {}]
  %s18 = inlined_call_operand.vmem [shape: f32[2,1,32], index: 18, kind: input, shape index: {}]
  %s19 = inlined_call_operand.vmem [shape: f32[32,96], index: 19, kind: input, shape index: {}]
  %s20 = inlined_call_operand.vmem [shape: f32[1,96], index: 20, kind: input, shape index: {}]
  %s21 = inlined_call_operand.vmem [shape: f32[96,96], index: 21, kind: input, shape index: {}]
  %s22 = inlined_call_operand.vmem [shape: f32[1,96], index: 22, kind: input, shape index: {}]
  %s23 = inlined_call_operand.vmem [shape: f32[96,6], index: 23, kind: input, shape index: {}]
  %s24 = inlined_call_operand.vmem [shape: f32[1,6], index: 24, kind: input, shape index: {}]
  %s25 = inlined_call_operand.vmem [shape: f32[2,4,4], index: 25, kind: output, shape index: {0}]
  %s26 = inlined_call_operand.vmem [shape: f32[2,1,4], index: 26, kind: output, shape index: {1}]
  %s27 = inlined_call_operand.vmem [shape: f32[2,1,2], index: 27, kind: output, shape index: {2}]
  %28 = xla_tuple %s25, %s26, %s27
  %s29 = sld [smem:[#allocation0]]
  $region149: #{tactis_training_loss.1} parent=0
    _
  %s31 = ssub.s32 1, %s29
  %s32 = scalar_select 0, %s31, %s29
  loop: start=0, step=1, limit=4
  $region2: #{tactis_training_loss.1} parent=0 // loop_pre_header
    _
  $region3: #{tactis_training_loss.1} parent=0 // loop_header
    %s34 = sphi 0, %s38
    %p35 = scmp.ge.s32.totalorder %s34, 4
    %s44 = sphi 0, %s46
    %s47 = sphi 0, %s44
    %s48 = sphi 0, %s47
    %s64 = sphi 0, %s48
    %s68 = sphi 0, %s68
    %s70 = sphi 0, %s68
    %s71 = sphi 0, %s70
    %s85 = sphi 0, %s71
    %s89 = sphi 0, %s89
    %s91 = sphi 0, %s89
    %s92 = sphi 0, %s91
    %s106 = sphi 0, %s92
    %s110 = sphi 0, %s110
    %s112 = sphi 0, %s110
    %s113 = sphi 0, %s112
    %s127 = sphi 0, %s113
    %s131 = sphi 0, %s131
    %s133 = sphi 0, %s131
    %s134 = sphi 0, %s133
    %s148 = sphi 0, %s134
    %s152 = sphi 0, %s152
    %s154 = sphi 0, %s152
    %s155 = sphi 0, %s154
    %s169 = sphi 0, %s155
    %s173 = sphi 0, %s173
    %s175 = sphi 0, %s173
    %s176 = sphi 0, %s175
    %s190 = sphi 0, %s176
    %s194 = sphi 0, %s194
    %s196 = sphi 0, %s194
    %s197 = sphi 0, %s196
    %s211 = sphi 0, %s197
    %s215 = sphi 0, %s215
    %s217 = sphi 0, %s215
    %s218 = sphi 0, %s217
    %s232 = sphi 0, %s218
    %s236 = sphi 0, %s236
    %s238 = sphi 0, %s236
    %s239 = sphi 0, %s238
    %s253 = sphi 0, %s239
    %s257 = sphi 0, %s257
    %s259 = sphi 0, %s257
    %s260 = sphi 0, %s259
    %s274 = sphi 0, %s260
    %s278 = sphi 0, %s278
    %s280 = sphi 0, %s278
    %s281 = sphi 0, %s280
    %s295 = sphi 0, %s281
    %s299 = sphi 0, %s299
    %s301 = sphi 0, %s299
    %s302 = sphi 0, %s301
    %s316 = sphi 0, %s302
    %s320 = sphi 0, %s320
    %s322 = sphi 0, %s320
    %s323 = sphi 0, %s322
    %s337 = sphi 0, %s323
    %s341 = sphi 0, %s341
    %s343 = sphi 0, %s341
    %s344 = sphi 0, %s343
    %s358 = sphi 0, %s344
    %s362 = sphi 0, %s362
    %s364 = sphi 0, %s362
    %s365 = sphi 0, %s364
    %s379 = sphi 0, %s365
    %s383 = sphi 0, %s383
    %s385 = sphi 0, %s383
    %s386 = sphi 0, %s385
    %s400 = sphi 0, %s386
    %s404 = sphi 0, %s404
    %s406 = sphi 0, %s404
    %s407 = sphi 0, %s406
    %s421 = sphi 0, %s407
    %s425 = sphi 0, %s425
    %s427 = sphi 0, %s425
    %s428 = sphi 0, %s427
    %s442 = sphi 0, %s428
    %s446 = sphi 0, %s446
    %s448 = sphi 0, %s446
    %s449 = sphi 0, %s448
    %s463 = sphi 0, %s449
    %s467 = sphi 0, %s467
    %s469 = sphi 0, %s467
    %s470 = sphi 0, %s469
    %s484 = sphi 0, %s470
    %s488 = sphi 0, %s488
    %s490 = sphi 0, %s488
    %s491 = sphi 0, %s490
    %s505 = sphi 0, %s491
    %s509 = sphi 0, %s509
    %s511 = sphi 0, %s509
    %s512 = sphi 0, %s511
    %s526 = sphi 0, %s512
    %s530 = sphi 0, %s530
    %s532 = sphi 0, %s530
    %s533 = sphi 0, %s532
    %s547 = sphi 0, %s533
    %s551 = sphi 0, %s551
    %s553 = sphi 0, %s551
    %s554 = sphi 0, %s553
    %s568 = sphi 0, %s554
    %s574 = sphi 0, %s576
    %s577 = sphi 0, %s574
    %s578 = sphi 0, %s577
    %s594 = sphi 0, %s578
    %s600 = sphi 0, %s602
    %s603 = sphi 0, %s600
    %s604 = sphi 0, %s603
    %s620 = sphi 0, %s604
    %s626 = sphi 0, %s628
    %s629 = sphi 0, %s626
    %s630 = sphi 0, %s629
    %s646 = sphi 0, %s630
  $region4: #{tactis_training_loss.1} parent=0 // loop_header_branch
    %37 = sbr.rel (%p35) target = $region8
  $region5: #{tactis_training_loss.1} parent=0 // loop_body
    %s39 = ssub.s32 %s34, 1
    %s40 = ssub.s32 %s34, 2
    %s41 = sadd.s32 %s34, 1
    %s42 = ssub.s32 %s34, %s41
    %p43 = scmp.eq.s32.totalorder %s42, 0
    %s45 = sadd.s32 %s44, 1
    %s46 = scalar_select %p43, %s44, %s45
    %p49 = pneg %p43
    %p50 = scmp.eq.s32.totalorder %s34, 1
    %p51 = por %p49, %p50
    %p52 = scmp.ne.s32.totalorder %s44, %s47
    %p53 = scmp.eq.s32.totalorder %s34, 0
    %p54 = por %p52, %p53
    %p55 = scmp.ne.s32.totalorder %s44, %s47
    %p56 = scmp.eq.s32.totalorder %s39, 1
    %p57 = por %p55, %p56
    %p58 = scmp.ne.s32.totalorder %s47, %s48
    %p59 = scmp.eq.s32.totalorder %s39, 0
    %p60 = por %p58, %p59
    %p61 = scmp.ne.s32.totalorder %s47, %s48
    %p62 = scmp.eq.s32.totalorder %s40, 1
    %p63 = por %p61, %p62
    %p65 = scmp.ne.s32.totalorder %s48, %s64
    %p66 = scmp.eq.s32.totalorder %s40, 0
    %p67 = por %p65, %p66
    %s69 = sadd.s32 %s68, 1
    %p72 = scmp.eq.s32.totalorder %s34, 1
    %p73 = scmp.ne.s32.totalorder %s68, %s70
    %p74 = scmp.eq.s32.totalorder %s34, 0
    %p75 = por %p73, %p74
    %p76 = scmp.ne.s32.totalorder %s68, %s70
    %p77 = scmp.eq.s32.totalorder %s39, 1
    %p78 = por %p76, %p77
    %p79 = scmp.ne.s32.totalorder %s70, %s71
    %p80 = scmp.eq.s32.totalorder %s39, 0
    %p81 = por %p79, %p80
    %p82 = scmp.ne.s32.totalorder %s70, %s71
    %p83 = scmp.eq.s32.totalorder %s40, 1
    %p84 = por %p82, %p83
    %p86 = scmp.ne.s32.totalorder %s71, %s85
    %p87 = scmp.eq.s32.totalorder %s40, 0
    %p88 = por %p86, %p87
    %s90 = sadd.s32 %s89, 1
    %p93 = scmp.eq.s32.totalorder %s34, 1
    %p94 = scmp.ne.s32.totalorder %s89, %s91
    %p95 = scmp.eq.s32.totalorder %s34, 0
    %p96 = por %p94, %p95
    %p97 = scmp.ne.s32.totalorder %s89, %s91
    %p98 = scmp.eq.s32.totalorder %s39, 1
    %p99 = por %p97, %p98
    %p100 = scmp.ne.s32.totalorder %s91, %s92
    %p101 = scmp.eq.s32.totalorder %s39, 0
    %p102 = por %p100, %p101
    %p103 = scmp.ne.s32.totalorder %s91, %s92
    %p104 = scmp.eq.s32.totalorder %s40, 1
    %p105 = por %p103, %p104
    %p107 = scmp.ne.s32.totalorder %s92, %s106
    %p108 = scmp.eq.s32.totalorder %s40, 0
    %p109 = por %p107, %p108
    %s111 = sadd.s32 %s110, 1
    %p114 = scmp.eq.s32.totalorder %s34, 1
    %p115 = scmp.ne.s32.totalorder %s110, %s112
    %p116 = scmp.eq.s32.totalorder %s34, 0
    %p117 = por %p115, %p116
    %p118 = scmp.ne.s32.totalorder %s110, %s112
    %p119 = scmp.eq.s32.totalorder %s39, 1
    %p120 = por %p118, %p119
    %p121 = scmp.ne.s32.totalorder %s112, %s113
    %p122 = scmp.eq.s32.totalorder %s39, 0
    %p123 = por %p121, %p122
    %p124 = scmp.ne.s32.totalorder %s112, %s113
    %p125 = scmp.eq.s32.totalorder %s40, 1
    %p126 = por %p124, %p125
    %p128 = scmp.ne.s32.totalorder %s113, %s127
    %p129 = scmp.eq.s32.totalorder %s40, 0
    %p130 = por %p128, %p129
    %s132 = sadd.s32 %s131, 1
    %p135 = scmp.eq.s32.totalorder %s34, 1
    %p136 = scmp.ne.s32.totalorder %s131, %s133
    %p137 = scmp.eq.s32.totalorder %s34, 0
    %p138 = por %p136, %p137
    %p139 = scmp.ne.s32.totalorder %s131, %s133
    %p140 = scmp.eq.s32.totalorder %s39, 1
    %p141 = por %p139, %p140
    %p142 = scmp.ne.s32.totalorder %s133, %s134
    %p143 = scmp.eq.s32.totalorder %s39, 0
    %p144 = por %p142, %p143
    %p145 = scmp.ne.s32.totalorder %s133, %s134
    %p146 = scmp.eq.s32.totalorder %s40, 1
    %p147 = por %p145, %p146
    %p149 = scmp.ne.s32.totalorder %s134, %s148
    %p150 = scmp.eq.s32.totalorder %s40, 0
    %p151 = por %p149, %p150
    %s153 = sadd.s32 %s152, 1
    %p156 = scmp.eq.s32.totalorder %s34, 1
    %p157 = scmp.ne.s32.totalorder %s152, %s154
    %p158 = scmp.eq.s32.totalorder %s34, 0
    %p159 = por %p157, %p158
    %p160 = scmp.ne.s32.totalorder %s152, %s154
    %p161 = scmp.eq.s32.totalorder %s39, 1
    %p162 = por %p160, %p161
    %p163 = scmp.ne.s32.totalorder %s154, %s155
    %p164 = scmp.eq.s32.totalorder %s39, 0
    %p165 = por %p163, %p164
    %p166 = scmp.ne.s32.totalorder %s154, %s155
    %p167 = scmp.eq.s32.totalorder %s40, 1
    %p168 = por %p166, %p167
    %p170 = scmp.ne.s32.totalorder %s155, %s169
    %p171 = scmp.eq.s32.totalorder %s40, 0
    %p172 = por %p170, %p171
    %s174 = sadd.s32 %s173, 1
    %p177 = scmp.eq.s32.totalorder %s34, 1
    %p178 = scmp.ne.s32.totalorder %s173, %s175
    %p179 = scmp.eq.s32.totalorder %s34, 0
    %p180 = por %p178, %p179
    %p181 = scmp.ne.s32.totalorder %s173, %s175
    %p182 = scmp.eq.s32.totalorder %s39, 1
    %p183 = por %p181, %p182
    %p184 = scmp.ne.s32.totalorder %s175, %s176
    %p185 = scmp.eq.s32.totalorder %s39, 0
    %p186 = por %p184, %p185
    %p187 = scmp.ne.s32.totalorder %s175, %s176
    %p188 = scmp.eq.s32.totalorder %s40, 1
    %p189 = por %p187, %p188
    %p191 = scmp.ne.s32.totalorder %s176, %s190
    %p192 = scmp.eq.s32.totalorder %s40, 0
    %p193 = por %p191, %p192
    %s195 = sadd.s32 %s194, 1
    %p198 = scmp.eq.s32.totalorder %s34, 1
    %p199 = scmp.ne.s32.totalorder %s194, %s196
    %p200 = scmp.eq.s32.totalorder %s34, 0
    %p201 = por %p199, %p200
    %p202 = scmp.ne.s32.totalorder %s194, %s196
    %p203 = scmp.eq.s32.totalorder %s39, 1
    %p204 = por %p202, %p203
    %p205 = scmp.ne.s32.totalorder %s196, %s197
    %p206 = scmp.eq.s32.totalorder %s39, 0
    %p207 = por %p205, %p206
    %p208 = scmp.ne.s32.totalorder %s196, %s197
    %p209 = scmp.eq.s32.totalorder %s40, 1
    %p210 = por %p208, %p209
    %p212 = scmp.ne.s32.totalorder %s197, %s211
    %p213 = scmp.eq.s32.totalorder %s40, 0
    %p214 = por %p212, %p213
    %s216 = sadd.s32 %s215, 1
    %p219 = scmp.eq.s32.totalorder %s34, 1
    %p220 = scmp.ne.s32.totalorder %s215, %s217
    %p221 = scmp.eq.s32.totalorder %s34, 0
    %p222 = por %p220, %p221
    %p223 = scmp.ne.s32.totalorder %s215, %s217
    %p224 = scmp.eq.s32.totalorder %s39, 1
    %p225 = por %p223, %p224
    %p226 = scmp.ne.s32.totalorder %s217, %s218
    %p227 = scmp.eq.s32.totalorder %s39, 0
    %p228 = por %p226, %p227
    %p229 = scmp.ne.s32.totalorder %s217, %s218
    %p230 = scmp.eq.s32.totalorder %s40, 1
    %p231 = por %p229, %p230
    %p233 = scmp.ne.s32.totalorder %s218, %s232
    %p234 = scmp.eq.s32.totalorder %s40, 0
    %p235 = por %p233, %p234
    %s237 = sadd.s32 %s236, 1
    %p240 = scmp.eq.s32.totalorder %s34, 1
    %p241 = scmp.ne.s32.totalorder %s236, %s238
    %p242 = scmp.eq.s32.totalorder %s34, 0
    %p243 = por %p241, %p242
    %p244 = scmp.ne.s32.totalorder %s236, %s238
    %p245 = scmp.eq.s32.totalorder %s39, 1
    %p246 = por %p244, %p245
    %p247 = scmp.ne.s32.totalorder %s238, %s239
    %p248 = scmp.eq.s32.totalorder %s39, 0
    %p249 = por %p247, %p248
    %p250 = scmp.ne.s32.totalorder %s238, %s239
    %p251 = scmp.eq.s32.totalorder %s40, 1
    %p252 = por %p250, %p251
    %p254 = scmp.ne.s32.totalorder %s239, %s253
    %p255 = scmp.eq.s32.totalorder %s40, 0
    %p256 = por %p254, %p255
    %s258 = sadd.s32 %s257, 1
    %p261 = scmp.eq.s32.totalorder %s34, 1
    %p262 = scmp.ne.s32.totalorder %s257, %s259
    %p263 = scmp.eq.s32.totalorder %s34, 0
    %p264 = por %p262, %p263
    %p265 = scmp.ne.s32.totalorder %s257, %s259
    %p266 = scmp.eq.s32.totalorder %s39, 1
    %p267 = por %p265, %p266
    %p268 = scmp.ne.s32.totalorder %s259, %s260
    %p269 = scmp.eq.s32.totalorder %s39, 0
    %p270 = por %p268, %p269
    %p271 = scmp.ne.s32.totalorder %s259, %s260
    %p272 = scmp.eq.s32.totalorder %s40, 1
    %p273 = por %p271, %p272
    %p275 = scmp.ne.s32.totalorder %s260, %s274
    %p276 = scmp.eq.s32.totalorder %s40, 0
    %p277 = por %p275, %p276
    %s279 = sadd.s32 %s278, 1
    %p282 = scmp.eq.s32.totalorder %s34, 1
    %p283 = scmp.ne.s32.totalorder %s278, %s280
    %p284 = scmp.eq.s32.totalorder %s34, 0
    %p285 = por %p283, %p284
    %p286 = scmp.ne.s32.totalorder %s278, %s280
    %p287 = scmp.eq.s32.totalorder %s39, 1
    %p288 = por %p286, %p287
    %p289 = scmp.ne.s32.totalorder %s280, %s281
    %p290 = scmp.eq.s32.totalorder %s39, 0
    %p291 = por %p289, %p290
    %p292 = scmp.ne.s32.totalorder %s280, %s281
    %p293 = scmp.eq.s32.totalorder %s40, 1
    %p294 = por %p292, %p293
    %p296 = scmp.ne.s32.totalorder %s281, %s295
    %p297 = scmp.eq.s32.totalorder %s40, 0
    %p298 = por %p296, %p297
    %s300 = sadd.s32 %s299, 1
    %p303 = scmp.eq.s32.totalorder %s34, 1
    %p304 = scmp.ne.s32.totalorder %s299, %s301
    %p305 = scmp.eq.s32.totalorder %s34, 0
    %p306 = por %p304, %p305
    %p307 = scmp.ne.s32.totalorder %s299, %s301
    %p308 = scmp.eq.s32.totalorder %s39, 1
    %p309 = por %p307, %p308
    %p310 = scmp.ne.s32.totalorder %s301, %s302
    %p311 = scmp.eq.s32.totalorder %s39, 0
    %p312 = por %p310, %p311
    %p313 = scmp.ne.s32.totalorder %s301, %s302
    %p314 = scmp.eq.s32.totalorder %s40, 1
    %p315 = por %p313, %p314
    %p317 = scmp.ne.s32.totalorder %s302, %s316
    %p318 = scmp.eq.s32.totalorder %s40, 0
    %p319 = por %p317, %p318
    %s321 = sadd.s32 %s320, 1
    %p324 = scmp.eq.s32.totalorder %s34, 1
    %p325 = scmp.ne.s32.totalorder %s320, %s322
    %p326 = scmp.eq.s32.totalorder %s34, 0
    %p327 = por %p325, %p326
    %p328 = scmp.ne.s32.totalorder %s320, %s322
    %p329 = scmp.eq.s32.totalorder %s39, 1
    %p330 = por %p328, %p329
    %p331 = scmp.ne.s32.totalorder %s322, %s323
    %p332 = scmp.eq.s32.totalorder %s39, 0
    %p333 = por %p331, %p332
    %p334 = scmp.ne.s32.totalorder %s322, %s323
    %p335 = scmp.eq.s32.totalorder %s40, 1
    %p336 = por %p334, %p335
    %p338 = scmp.ne.s32.totalorder %s323, %s337
    %p339 = scmp.eq.s32.totalorder %s40, 0
    %p340 = por %p338, %p339
    %s342 = sadd.s32 %s341, 1
    %p345 = scmp.eq.s32.totalorder %s34, 1
    %p346 = scmp.ne.s32.totalorder %s341, %s343
    %p347 = scmp.eq.s32.totalorder %s34, 0
    %p348 = por %p346, %p347
    %p349 = scmp.ne.s32.totalorder %s341, %s343
    %p350 = scmp.eq.s32.totalorder %s39, 1
    %p351 = por %p349, %p350
    %p352 = scmp.ne.s32.totalorder %s343, %s344
    %p353 = scmp.eq.s32.totalorder %s39, 0
    %p354 = por %p352, %p353
    %p355 = scmp.ne.s32.totalorder %s343, %s344
    %p356 = scmp.eq.s32.totalorder %s40, 1
    %p357 = por %p355, %p356
    %p359 = scmp.ne.s32.totalorder %s344, %s358
    %p360 = scmp.eq.s32.totalorder %s40, 0
    %p361 = por %p359, %p360
    %s363 = sadd.s32 %s362, 1
    %p366 = scmp.eq.s32.totalorder %s34, 1
    %p367 = scmp.ne.s32.totalorder %s362, %s364
    %p368 = scmp.eq.s32.totalorder %s34, 0
    %p369 = por %p367, %p368
    %p370 = scmp.ne.s32.totalorder %s362, %s364
    %p371 = scmp.eq.s32.totalorder %s39, 1
    %p372 = por %p370, %p371
    %p373 = scmp.ne.s32.totalorder %s364, %s365
    %p374 = scmp.eq.s32.totalorder %s39, 0
    %p375 = por %p373, %p374
    %p376 = scmp.ne.s32.totalorder %s364, %s365
    %p377 = scmp.eq.s32.totalorder %s40, 1
    %p378 = por %p376, %p377
    %p380 = scmp.ne.s32.totalorder %s365, %s379
    %p381 = scmp.eq.s32.totalorder %s40, 0
    %p382 = por %p380, %p381
    %s384 = sadd.s32 %s383, 1
    %p387 = scmp.eq.s32.totalorder %s34, 1
    %p388 = scmp.ne.s32.totalorder %s383, %s385
    %p389 = scmp.eq.s32.totalorder %s34, 0
    %p390 = por %p388, %p389
    %p391 = scmp.ne.s32.totalorder %s383, %s385
    %p392 = scmp.eq.s32.totalorder %s39, 1
    %p393 = por %p391, %p392
    %p394 = scmp.ne.s32.totalorder %s385, %s386
    %p395 = scmp.eq.s32.totalorder %s39, 0
    %p396 = por %p394, %p395
    %p397 = scmp.ne.s32.totalorder %s385, %s386
    %p398 = scmp.eq.s32.totalorder %s40, 1
    %p399 = por %p397, %p398
    %p401 = scmp.ne.s32.totalorder %s386, %s400
    %p402 = scmp.eq.s32.totalorder %s40, 0
    %p403 = por %p401, %p402
    %s405 = sadd.s32 %s404, 1
    %p408 = scmp.eq.s32.totalorder %s34, 1
    %p409 = scmp.ne.s32.totalorder %s404, %s406
    %p410 = scmp.eq.s32.totalorder %s34, 0
    %p411 = por %p409, %p410
    %p412 = scmp.ne.s32.totalorder %s404, %s406
    %p413 = scmp.eq.s32.totalorder %s39, 1
    %p414 = por %p412, %p413
    %p415 = scmp.ne.s32.totalorder %s406, %s407
    %p416 = scmp.eq.s32.totalorder %s39, 0
    %p417 = por %p415, %p416
    %p418 = scmp.ne.s32.totalorder %s406, %s407
    %p419 = scmp.eq.s32.totalorder %s40, 1
    %p420 = por %p418, %p419
    %p422 = scmp.ne.s32.totalorder %s407, %s421
    %p423 = scmp.eq.s32.totalorder %s40, 0
    %p424 = por %p422, %p423
    %s426 = sadd.s32 %s425, 1
    %p429 = scmp.eq.s32.totalorder %s34, 1
    %p430 = scmp.ne.s32.totalorder %s425, %s427
    %p431 = scmp.eq.s32.totalorder %s34, 0
    %p432 = por %p430, %p431
    %p433 = scmp.ne.s32.totalorder %s425, %s427
    %p434 = scmp.eq.s32.totalorder %s39, 1
    %p435 = por %p433, %p434
    %p436 = scmp.ne.s32.totalorder %s427, %s428
    %p437 = scmp.eq.s32.totalorder %s39, 0
    %p438 = por %p436, %p437
    %p439 = scmp.ne.s32.totalorder %s427, %s428
    %p440 = scmp.eq.s32.totalorder %s40, 1
    %p441 = por %p439, %p440
    %p443 = scmp.ne.s32.totalorder %s428, %s442
    %p444 = scmp.eq.s32.totalorder %s40, 0
    %p445 = por %p443, %p444
    %s447 = sadd.s32 %s446, 1
    %p450 = scmp.eq.s32.totalorder %s34, 1
    %p451 = scmp.ne.s32.totalorder %s446, %s448
    %p452 = scmp.eq.s32.totalorder %s34, 0
    %p453 = por %p451, %p452
    %p454 = scmp.ne.s32.totalorder %s446, %s448
    %p455 = scmp.eq.s32.totalorder %s39, 1
    %p456 = por %p454, %p455
    %p457 = scmp.ne.s32.totalorder %s448, %s449
    %p458 = scmp.eq.s32.totalorder %s39, 0
    %p459 = por %p457, %p458
    %p460 = scmp.ne.s32.totalorder %s448, %s449
    %p461 = scmp.eq.s32.totalorder %s40, 1
    %p462 = por %p460, %p461
    %p464 = scmp.ne.s32.totalorder %s449, %s463
    %p465 = scmp.eq.s32.totalorder %s40, 0
    %p466 = por %p464, %p465
    %s468 = sadd.s32 %s467, 1
    %p471 = scmp.eq.s32.totalorder %s34, 1
    %p472 = scmp.ne.s32.totalorder %s467, %s469
    %p473 = scmp.eq.s32.totalorder %s34, 0
    %p474 = por %p472, %p473
    %p475 = scmp.ne.s32.totalorder %s467, %s469
    %p476 = scmp.eq.s32.totalorder %s39, 1
    %p477 = por %p475, %p476
    %p478 = scmp.ne.s32.totalorder %s469, %s470
    %p479 = scmp.eq.s32.totalorder %s39, 0
    %p480 = por %p478, %p479
    %p481 = scmp.ne.s32.totalorder %s469, %s470
    %p482 = scmp.eq.s32.totalorder %s40, 1
    %p483 = por %p481, %p482
    %p485 = scmp.ne.s32.totalorder %s470, %s484
    %p486 = scmp.eq.s32.totalorder %s40, 0
    %p487 = por %p485, %p486
    %s489 = sadd.s32 %s488, 1
    %p492 = scmp.eq.s32.totalorder %s34, 1
    %p493 = scmp.ne.s32.totalorder %s488, %s490
    %p494 = scmp.eq.s32.totalorder %s34, 0
    %p495 = por %p493, %p494
    %p496 = scmp.ne.s32.totalorder %s488, %s490
    %p497 = scmp.eq.s32.totalorder %s39, 1
    %p498 = por %p496, %p497
    %p499 = scmp.ne.s32.totalorder %s490, %s491
    %p500 = scmp.eq.s32.totalorder %s39, 0
    %p501 = por %p499, %p500
    %p502 = scmp.ne.s32.totalorder %s490, %s491
    %p503 = scmp.eq.s32.totalorder %s40, 1
    %p504 = por %p502, %p503
    %p506 = scmp.ne.s32.totalorder %s491, %s505
    %p507 = scmp.eq.s32.totalorder %s40, 0
    %p508 = por %p506, %p507
    %s510 = sadd.s32 %s509, 1
    %p513 = scmp.eq.s32.totalorder %s34, 1
    %p514 = scmp.ne.s32.totalorder %s509, %s511
    %p515 = scmp.eq.s32.totalorder %s34, 0
    %p516 = por %p514, %p515
    %p517 = scmp.ne.s32.totalorder %s509, %s511
    %p518 = scmp.eq.s32.totalorder %s39, 1
    %p519 = por %p517, %p518
    %p520 = scmp.ne.s32.totalorder %s511, %s512
    %p521 = scmp.eq.s32.totalorder %s39, 0
    %p522 = por %p520, %p521
    %p523 = scmp.ne.s32.totalorder %s511, %s512
    %p524 = scmp.eq.s32.totalorder %s40, 1
    %p525 = por %p523, %p524
    %p527 = scmp.ne.s32.totalorder %s512, %s526
    %p528 = scmp.eq.s32.totalorder %s40, 0
    %p529 = por %p527, %p528
    %s531 = sadd.s32 %s530, 1
    %p534 = scmp.eq.s32.totalorder %s34, 1
    %p535 = scmp.ne.s32.totalorder %s530, %s532
    %p536 = scmp.eq.s32.totalorder %s34, 0
    %p537 = por %p535, %p536
    %p538 = scmp.ne.s32.totalorder %s530, %s532
    %p539 = scmp.eq.s32.totalorder %s39, 1
    %p540 = por %p538, %p539
    %p541 = scmp.ne.s32.totalorder %s532, %s533
    %p542 = scmp.eq.s32.totalorder %s39, 0
    %p543 = por %p541, %p542
    %p544 = scmp.ne.s32.totalorder %s532, %s533
    %p545 = scmp.eq.s32.totalorder %s40, 1
    %p546 = por %p544, %p545
    %p548 = scmp.ne.s32.totalorder %s533, %s547
    %p549 = scmp.eq.s32.totalorder %s40, 0
    %p550 = por %p548, %p549
    %s552 = sadd.s32 %s551, 1
    %p555 = scmp.eq.s32.totalorder %s34, 1
    %p556 = scmp.ne.s32.totalorder %s551, %s553
    %p557 = scmp.eq.s32.totalorder %s34, 0
    %p558 = por %p556, %p557
    %p559 = scmp.ne.s32.totalorder %s551, %s553
    %p560 = scmp.eq.s32.totalorder %s39, 1
    %p561 = por %p559, %p560
    %p562 = scmp.ne.s32.totalorder %s553, %s554
    %p563 = scmp.eq.s32.totalorder %s39, 0
    %p564 = por %p562, %p563
    %p565 = scmp.ne.s32.totalorder %s553, %s554
    %p566 = scmp.eq.s32.totalorder %s40, 1
    %p567 = por %p565, %p566
    %p569 = scmp.ne.s32.totalorder %s554, %s568
    %p570 = scmp.eq.s32.totalorder %s40, 0
    %p571 = por %p569, %p570
    %s572 = ssub.s32 %s34, %s41
    %p573 = scmp.eq.s32.totalorder %s572, 0
    %s575 = sadd.s32 %s574, 1
    %s576 = scalar_select %p573, %s574, %s575
    %p579 = pneg %p573
    %p580 = scmp.eq.s32.totalorder %s34, 1
    %p581 = por %p579, %p580
    %p582 = scmp.ne.s32.totalorder %s574, %s577
    %p583 = scmp.eq.s32.totalorder %s34, 0
    %p584 = por %p582, %p583
    %p585 = scmp.ne.s32.totalorder %s574, %s577
    %p586 = scmp.eq.s32.totalorder %s39, 1
    %p587 = por %p585, %p586
    %p588 = scmp.ne.s32.totalorder %s577, %s578
    %p589 = scmp.eq.s32.totalorder %s39, 0
    %p590 = por %p588, %p589
    %p591 = scmp.ne.s32.totalorder %s577, %s578
    %p592 = scmp.eq.s32.totalorder %s40, 1
    %p593 = por %p591, %p592
    %p595 = scmp.ne.s32.totalorder %s578, %s594
    %p596 = scmp.eq.s32.totalorder %s40, 0
    %p597 = por %p595, %p596
    %s598 = ssub.s32 %s34, %s41
    %p599 = scmp.eq.s32.totalorder %s598, 0
    %s601 = sadd.s32 %s600, 1
    %s602 = scalar_select %p599, %s600, %s601
    %p605 = pneg %p599
    %p606 = scmp.eq.s32.totalorder %s34, 1
    %p607 = por %p605, %p606
    %p608 = scmp.ne.s32.totalorder %s600, %s603
    %p609 = scmp.eq.s32.totalorder %s34, 0
    %p610 = por %p608, %p609
    %p611 = scmp.ne.s32.totalorder %s600, %s603
    %p612 = scmp.eq.s32.totalorder %s39, 1
    %p613 = por %p611, %p612
    %p614 = scmp.ne.s32.totalorder %s603, %s604
    %p615 = scmp.eq.s32.totalorder %s39, 0
    %p616 = por %p614, %p615
    %p617 = scmp.ne.s32.totalorder %s603, %s604
    %p618 = scmp.eq.s32.totalorder %s40, 1
    %p619 = por %p617, %p618
    %p621 = scmp.ne.s32.totalorder %s604, %s620
    %p622 = scmp.eq.s32.totalorder %s40, 0
    %p623 = por %p621, %p622
    %s624 = ssub.s32 %s34, %s41
    %p625 = scmp.eq.s32.totalorder %s624, 0
    %s627 = sadd.s32 %s626, 1
    %s628 = scalar_select %p625, %s626, %s627
    %p631 = pneg %p625
    %p632 = scmp.eq.s32.totalorder %s34, 1
    %p633 = por %p631, %p632
    %p634 = scmp.ne.s32.totalorder %s626, %s629
    %p635 = scmp.eq.s32.totalorder %s34, 0
    %p636 = por %p634, %p635
    %p637 = scmp.ne.s32.totalorder %s626, %s629
    %p638 = scmp.eq.s32.totalorder %s39, 1
    %p639 = por %p637, %p638
    %p640 = scmp.ne.s32.totalorder %s629, %s630
    %p641 = scmp.eq.s32.totalorder %s39, 0
    %p642 = por %p640, %p641
    %p643 = scmp.ne.s32.totalorder %s629, %s630
    %p644 = scmp.eq.s32.totalorder %s40, 1
    %p645 = por %p643, %p644
    %p647 = scmp.ne.s32.totalorder %s630, %s646
    %p648 = scmp.eq.s32.totalorder %s40, 0
    %p649 = por %p647, %p648
    %p650 = scmp.le.s32.totalorder 1, %s34
    %p651 = scmp.lt.s32.totalorder %s34, 3
    %p652 = pnand %p650, %p651
    %p653 = pneg %p652
    // Predicated region
    $region9: #{tactis_training_loss.1} parent=5 // pred_check
      _
    $region10: #{tactis_training_loss.1} parent=5 // pred_check_branch
      %655 = sbr.rel (%p652) target = $region12
    $region11: #{tactis_training_loss.1} parent=5 // pred_region
      %s656 = ssub.s32 %s34, 1
      // Predicated region
      $region13: #{tactis_training_loss.1} parent=11 // pred_check
        %p657 = pneg %p81
      $region14: #{tactis_training_loss.1} parent=11 // pred_check_branch
        %659 = sbr.rel (%p657) target = $region16
      $region15: #{tactis_training_loss.1} parent=11 // pred_region
        _
      $region16: #{tactis_training_loss.1} parent=11 // pred_fallthru
        _
      // Predicated region
      $region17: #{tactis_training_loss.1} parent=11 // pred_check
        %p660 = pneg %p102
      $region18: #{tactis_training_loss.1} parent=11 // pred_check_branch
        %662 = sbr.rel (%p660) target = $region20
      $region19: #{tactis_training_loss.1} parent=11 // pred_region
        _
      $region20: #{tactis_training_loss.1} parent=11 // pred_fallthru
        _
      // Predicated region
      $region21: #{tactis_training_loss.1} parent=11 // pred_check
        %p663 = pneg %p123
      $region22: #{tactis_training_loss.1} parent=11 // pred_check_branch
        %665 = sbr.rel (%p663) target = $region24
      $region23: #{tactis_training_loss.1} parent=11 // pred_region
        _
      $region24: #{tactis_training_loss.1} parent=11 // pred_fallthru
        _
      // Predicated region
      $region25: #{tactis_training_loss.1} parent=11 // pred_check
        %p666 = pneg %p144
      $region26: #{tactis_training_loss.1} parent=11 // pred_check_branch
        %668 = sbr.rel (%p666) target = $region28
      $region27: #{tactis_training_loss.1} parent=11 // pred_region
        _
      $region28: #{tactis_training_loss.1} parent=11 // pred_fallthru
        _
      // Predicated region
      $region29: #{tactis_training_loss.1} parent=11 // pred_check
        %p669 = pneg %p165
      $region30: #{tactis_training_loss.1} parent=11 // pred_check_branch
        %671 = sbr.rel (%p669) target = $region32
      $region31: #{tactis_training_loss.1} parent=11 // pred_region
        _
      $region32: #{tactis_training_loss.1} parent=11 // pred_fallthru
        _
      // Predicated region
      $region33: #{tactis_training_loss.1} parent=11 // pred_check
        %p672 = pneg %p186
      $region34: #{tactis_training_loss.1} parent=11 // pred_check_branch
        %674 = sbr.rel (%p672) target = $region36
      $region35: #{tactis_training_loss.1} parent=11 // pred_region
        _
      $region36: #{tactis_training_loss.1} parent=11 // pred_fallthru
        _
      // Predicated region
      $region37: #{tactis_training_loss.1} parent=11 // pred_check
        %p675 = pneg %p207
      $region38: #{tactis_training_loss.1} parent=11 // pred_check_branch
        %677 = sbr.rel (%p675) target = $region40
      $region39: #{tactis_training_loss.1} parent=11 // pred_region
        _
      $region40: #{tactis_training_loss.1} parent=11 // pred_fallthru
        _
      // Predicated region
      $region41: #{tactis_training_loss.1} parent=11 // pred_check
        %p678 = pneg %p228
      $region42: #{tactis_training_loss.1} parent=11 // pred_check_branch
        %680 = sbr.rel (%p678) target = $region44
      $region43: #{tactis_training_loss.1} parent=11 // pred_region
        _
      $region44: #{tactis_training_loss.1} parent=11 // pred_fallthru
        _
      // Predicated region
      $region45: #{tactis_training_loss.1} parent=11 // pred_check
        %p681 = pneg %p249
      $region46: #{tactis_training_loss.1} parent=11 // pred_check_branch
        %683 = sbr.rel (%p681) target = $region48
      $region47: #{tactis_training_loss.1} parent=11 // pred_region
        _
      $region48: #{tactis_training_loss.1} parent=11 // pred_fallthru
        _
      // Predicated region
      $region49: #{tactis_training_loss.1} parent=11 // pred_check
        %p684 = pneg %p270
      $region50: #{tactis_training_loss.1} parent=11 // pred_check_branch
        %686 = sbr.rel (%p684) target = $region52
      $region51: #{tactis_training_loss.1} parent=11 // pred_region
        _
      $region52: #{tactis_training_loss.1} parent=11 // pred_fallthru
        _
      // Predicated region
      $region53: #{tactis_training_loss.1} parent=11 // pred_check
        %p687 = pneg %p291
      $region54: #{tactis_training_loss.1} parent=11 // pred_check_branch
        %689 = sbr.rel (%p687) target = $region56
      $region55: #{tactis_training_loss.1} parent=11 // pred_region
        _
      $region56: #{tactis_training_loss.1} parent=11 // pred_fallthru
        _
      // Predicated region
      $region57: #{tactis_training_loss.1} parent=11 // pred_check
        %p690 = pneg %p312
      $region58: #{tactis_training_loss.1} parent=11 // pred_check_branch
        %692 = sbr.rel (%p690) target = $region60
      $region59: #{tactis_training_loss.1} parent=11 // pred_region
        _
      $region60: #{tactis_training_loss.1} parent=11 // pred_fallthru
        _
      // Predicated region
      $region61: #{tactis_training_loss.1} parent=11 // pred_check
        %p693 = pneg %p333
      $region62: #{tactis_training_loss.1} parent=11 // pred_check_branch
        %695 = sbr.rel (%p693) target = $region64
      $region63: #{tactis_training_loss.1} parent=11 // pred_region
        _
      $region64: #{tactis_training_loss.1} parent=11 // pred_fallthru
        _
      // Predicated region
      $region65: #{tactis_training_loss.1} parent=11 // pred_check
        %p696 = pneg %p354
      $region66: #{tactis_training_loss.1} parent=11 // pred_check_branch
        %698 = sbr.rel (%p696) target = $region68
      $region67: #{tactis_training_loss.1} parent=11 // pred_region
        _
      $region68: #{tactis_training_loss.1} parent=11 // pred_fallthru
        _
      // Predicated region
      $region69: #{tactis_training_loss.1} parent=11 // pred_check
        %p699 = pneg %p375
      $region70: #{tactis_training_loss.1} parent=11 // pred_check_branch
        %701 = sbr.rel (%p699) target = $region72
      $region71: #{tactis_training_loss.1} parent=11 // pred_region
        _
      $region72: #{tactis_training_loss.1} parent=11 // pred_fallthru
        _
      // Predicated region
      $region73: #{tactis_training_loss.1} parent=11 // pred_check
        %p702 = pneg %p396
      $region74: #{tactis_training_loss.1} parent=11 // pred_check_branch
        %704 = sbr.rel (%p702) target = $region76
      $region75: #{tactis_training_loss.1} parent=11 // pred_region
        _
      $region76: #{tactis_training_loss.1} parent=11 // pred_fallthru
        _
      // Predicated region
      $region77: #{tactis_training_loss.1} parent=11 // pred_check
        %p705 = pneg %p417
      $region78: #{tactis_training_loss.1} parent=11 // pred_check_branch
        %707 = sbr.rel (%p705) target = $region80
      $region79: #{tactis_training_loss.1} parent=11 // pred_region
        _
      $region80: #{tactis_training_loss.1} parent=11 // pred_fallthru
        _
      // Predicated region
      $region81: #{tactis_training_loss.1} parent=11 // pred_check
        %p708 = pneg %p438
      $region82: #{tactis_training_loss.1} parent=11 // pred_check_branch
        %710 = sbr.rel (%p708) target = $region84
      $region83: #{tactis_training_loss.1} parent=11 // pred_region
        _
      $region84: #{tactis_training_loss.1} parent=11 // pred_fallthru
        _
      // Predicated region
      $region85: #{tactis_training_loss.1} parent=11 // pred_check
        %p711 = pneg %p459
      $region86: #{tactis_training_loss.1} parent=11 // pred_check_branch
        %713 = sbr.rel (%p711) target = $region88
      $region87: #{tactis_training_loss.1} parent=11 // pred_region
        _
      $region88: #{tactis_training_loss.1} parent=11 // pred_fallthru
        _
      // Predicated region
      $region89: #{tactis_training_loss.1} parent=11 // pred_check
        %p714 = pneg %p480
      $region90: #{tactis_training_loss.1} parent=11 // pred_check_branch
        %716 = sbr.rel (%p714) target = $region92
      $region91: #{tactis_training_loss.1} parent=11 // pred_region
        _
      $region92: #{tactis_training_loss.1} parent=11 // pred_fallthru
        _
      // Predicated region
      $region93: #{tactis_training_loss.1} parent=11 // pred_check
        %p717 = pneg %p501
      $region94: #{tactis_training_loss.1} parent=11 // pred_check_branch
        %719 = sbr.rel (%p717) target = $region96
      $region95: #{tactis_training_loss.1} parent=11 // pred_region
        _
      $region96: #{tactis_training_loss.1} parent=11 // pred_fallthru
        _
      // Predicated region
      $region97: #{tactis_training_loss.1} parent=11 // pred_check
        %p720 = pneg %p522
      $region98: #{tactis_training_loss.1} parent=11 // pred_check_branch
        %722 = sbr.rel (%p720) target = $region100
      $region99: #{tactis_training_loss.1} parent=11 // pred_region
        _
      $region100: #{tactis_training_loss.1} parent=11 // pred_fallthru
        _
      // Predicated region
      $region101: #{tactis_training_loss.1} parent=11 // pred_check
        %p723 = pneg %p543
      $region102: #{tactis_training_loss.1} parent=11 // pred_check_branch
        %725 = sbr.rel (%p723) target = $region104
      $region103: #{tactis_training_loss.1} parent=11 // pred_region
        _
      $region104: #{tactis_training_loss.1} parent=11 // pred_fallthru
        _
      // Predicated region
      $region105: #{tactis_training_loss.1} parent=11 // pred_check
        %p726 = pneg %p564
      $region106: #{tactis_training_loss.1} parent=11 // pred_check_branch
        %728 = sbr.rel (%p726) target = $region108
      $region107: #{tactis_training_loss.1} parent=11 // pred_region
        _
      $region108: #{tactis_training_loss.1} parent=11 // pred_fallthru
        _
    $region12: #{tactis_training_loss.1} parent=5 // pred_fallthru
      _
    %p729 = scmp.lt.s32.totalorder %s34, 2
    // Predicated region
    $region109: #{tactis_training_loss.1} parent=5 // pred_check
      %p730 = pneg %p729
    $region110: #{tactis_training_loss.1} parent=5 // pred_check_branch
      %732 = sbr.rel (%p730) target = $region112
    $region111: #{tactis_training_loss.1} parent=5 // pred_region
      // Predicated region
      $region113: #{tactis_training_loss.1} parent=111 // pred_check
        %p733 = pneg %p54
      $region114: #{tactis_training_loss.1} parent=111 // pred_check_branch
        %735 = sbr.rel (%p733) target = $region116
      $region115: #{tactis_training_loss.1} parent=111 // pred_region
        %p736 = scmp.lt.s32.totalorder %s34, 1
        %s737 = scalar_select %p736, %s34, 1
        %s738 = smul.addr %s737, 6
        %s739 = smul.addr %s738, 8
        %s740 = scalar_lea.vmem %s0, %s739
      $region116: #{tactis_training_loss.1} parent=111 // pred_fallthru
        _
    $region112: #{tactis_training_loss.1} parent=5 // pred_fallthru
      _
    %p741 = scmp.le.s32.totalorder 1, %s34
    %p742 = scmp.lt.s32.totalorder %s34, 3
    %p743 = pnand %p741, %p742
    %p744 = pneg %p743
    // Predicated region
    $region117: #{tactis_training_loss.1} parent=5 // pred_check
      _
    $region118: #{tactis_training_loss.1} parent=5 // pred_check_branch
      %746 = sbr.rel (%p743) target = $region120
    $region119: #{tactis_training_loss.1} parent=5 // pred_region
      %s747 = ssub.s32 %s34, 1
      %p748 = scmp.lt.s32.totalorder %s39, 1
      %s749 = scalar_select %p748, %s39, 1
      %s750 = smul.addr %s749, 6
      %s751 = smul.addr %s750, 8
      %s752 = scalar_lea.vmem %s0, %s751
      %p753 = pneg %p60
      %p754 = pneg %p57
      %p755 = pneg %p81
      %p756 = pneg %p78
      %p757 = pneg %p102
      %p758 = pneg %p99
      %p759 = pneg %p123
      %p760 = pneg %p120
      %p761 = pneg %p144
      %p762 = pneg %p141
      %p763 = pneg %p165
      %p764 = pneg %p162
      %p765 = pneg %p186
      %p766 = pneg %p183
      %p767 = pneg %p207
      %p768 = pneg %p204
      %p769 = pneg %p228
      %p770 = pneg %p225
      %p771 = pneg %p249
      %p772 = pneg %p246
      %p773 = pneg %p270
      %p774 = pneg %p267
      %p775 = pneg %p291
      %p776 = pneg %p288
      %p777 = pneg %p312
      %p778 = pneg %p309
      %p779 = pneg %p333
      %p780 = pneg %p330
      %p781 = pneg %p354
      %p782 = pneg %p351
      %p783 = pneg %p375
      %p784 = pneg %p372
      %p785 = pneg %p396
      %p786 = pneg %p393
      %p787 = pneg %p417
      %p788 = pneg %p414
      %p789 = pneg %p438
      %p790 = pneg %p435
      %p791 = pneg %p459
      %p792 = pneg %p456
      %p793 = pneg %p480
      %p794 = pneg %p477
      %p795 = pneg %p501
      %p796 = pneg %p498
      %p797 = pneg %p522
      %p798 = pneg %p519
      %p799 = pneg %p543
      %p800 = pneg %p540
      %p801 = pneg %p564
      %p802 = pneg %p561
      %p803 = pneg %p590
      %p804 = pneg %p587
      %p805 = scmp.lt.s32.totalorder %s39, 1
      %s806 = scalar_select %p805, %s39, 1
      %s807 = smul.addr %s806, 4
      %s808 = scalar_lea.vmem %s25, %s807
      %p809 = pneg %p616
      %p810 = pneg %p613
      %p811 = scmp.lt.s32.totalorder %s39, 1
      %s812 = scalar_select %p811, %s39, 1
      %s813 = scalar_lea.vmem %s26, %s812
      %p814 = pneg %p642
      %p815 = pneg %p639
      %p816 = scmp.lt.s32.totalorder %s39, 1
      %s817 = scalar_select %p816, %s39, 1
      %s818 = scalar_lea.vmem %s27, %s817
      %p819 = scmp.lt.s32.totalorder %s39, 1
      %s820 = scalar_select %p819, %s39, 1
      %s821 = smul.addr %s820, 6
      %s822 = smul.addr %s821, 8
      %s823 = scalar_lea.vmem %s0, %s822
      %p824 = scmp.lt.s32.totalorder %s39, 1
      %s825 = scalar_select %p824, %s39, 1
      %s826 = smul.addr %s825, 4
      %s827 = scalar_lea.vmem %s25, %s826
      %p828 = scmp.lt.s32.totalorder %s39, 1
      %s829 = scalar_select %p828, %s39, 1
      %s830 = scalar_lea.vmem %s26, %s829
      %p831 = scmp.lt.s32.totalorder %s39, 1
      %s832 = scalar_select %p831, %s39, 1
      %s833 = scalar_lea.vmem %s27, %s832
      %v834 = vld [vmem:[%s823] sm:$0xff]
      %v835 = vld [vmem:[%s823 + $0x8] sm:$0xff]
      %v836 = vld [vmem:[%s823 + $0x10] sm:$0xff]
      %v837 = vld [vmem:[%s823 + $0x18] sm:$0xff]
      %v838 = vld [vmem:[%s823 + $0x20] sm:$0xff]
      %v839 = vld [vmem:[%s823 + $0x28] sm:$0xff]
      %v840 = vld [vmem:[%s1] sm:$0xff]
      %v841 = vld [vmem:[%s1 + $0x8] sm:$0xff]
      %v842 = vld [vmem:[%s1 + $0x10] sm:$0xff]
      %v843 = vld [vmem:[%s1 + $0x18] sm:$0xff]
      %v844 = vld [vmem:[%s1 + $0x20] sm:$0xff]
      %v845 = vld [vmem:[%s1 + $0x28] sm:$0xff]
      %v846 = vsub.f32 1.0, %v840
      %v847 = vsub.f32 1.0, %v841
      %v848 = vsub.f32 1.0, %v842
      %v849 = vsub.f32 1.0, %v843
      %v850 = vsub.f32 1.0, %v844
      %v851 = vsub.f32 1.0, %v845
      %v852 = vmul.f32 %v834, %v846
      %v853 = vmul.f32 %v835, %v847
      %v854 = vmul.f32 %v836, %v848
      %v855 = vmul.f32 %v837, %v849
      %v856 = vmul.f32 %v838, %v850
      %v857 = vmul.f32 %v839, %v851
      %v858 = vld [vmem:[%s4] sm:$0x1]
      %860 = vset.pattern.permute.xlu0 0
      %861 = vperm.xlu0 %860, %v852
      %v862 = vpop.permute.xlu0 %861
      %865 = vset.pattern.permute.xlu0 0
      %866 = vperm.xlu0 %865, %v853
      %v867 = vpop.permute.xlu0 %866
      %870 = vset.pattern.permute.xlu0 0
      %871 = vperm.xlu0 %870, %v854
      %v872 = vpop.permute.xlu0 %871
      %875 = vset.pattern.permute.xlu0 0
      %876 = vperm.xlu0 %875, %v855
      %v877 = vpop.permute.xlu0 %876
      %880 = vset.pattern.permute.xlu0 0
      %881 = vperm.xlu0 %880, %v856
      %v882 = vpop.permute.xlu0 %881
      %885 = vset.pattern.permute.xlu0 0
      %886 = vperm.xlu0 %885, %v857
      %v887 = vpop.permute.xlu0 %886
      %v890 = vlaneseq
      %v891 = vshrl.u32 %v890, 7
      %v892 = vsub.s32 0, %v891
      %v893 = vrot.slane %v858, %v892
      %v895 = vmul.f32 %v862, %v893
      %v896 = vmul.f32 %v867, %v893
      %v897 = vmul.f32 %v872, %v893
      %v898 = vmul.f32 %v877, %v893
      %v899 = vmul.f32 %v882, %v893
      %v900 = vmul.f32 %v887, %v893
      %v901 = vld [vmem:[%s2] sm:$0xff]
      %v902 = vld [vmem:[%s2 + $0x8] sm:$0xff]
      %v903 = vld [vmem:[%s2 + $0x10] sm:$0xff]
      %v904 = vld [vmem:[%s2 + $0x18] sm:$0xff]
      %v905 = vld [vmem:[%s2 + $0x20] sm:$0xff]
      %v906 = vld [vmem:[%s2 + $0x28] sm:$0xff]
      %v907 = vadd.f32 %v895, %v901
      %v908 = vadd.f32 %v896, %v902
      %v909 = vadd.f32 %v897, %v903
      %v910 = vadd.f32 %v898, %v904
      %v911 = vadd.f32 %v899, %v905
      %v912 = vadd.f32 %v900, %v906
      %v913 = vmax.f32 %v907, 0.0
      %v914 = vmax.f32 %v908, 0.0
      %v915 = vmax.f32 %v909, 0.0
      %v916 = vmax.f32 %v910, 0.0
      %v917 = vmax.f32 %v911, 0.0
      %v918 = vmax.f32 %v912, 0.0
      %v919 = vld [vmem:[%s5] sm:$0xff]
      %v920 = vld [vmem:[%s5 + $0x8] sm:$0xff]
      %v921 = vld [vmem:[%s5 + $0x10] sm:$0xff]
      %v922 = vld [vmem:[%s5 + $0x18] sm:$0xff]
      %v923 = vld [vmem:[%s6] sm:$0x1]
      %v925 = vlaneseq
      %v926 = vshrl.u32 %v925, 7
      %v927 = vsub.s32 0, %v926
      %v928 = vrot.slane %v923, %v927
      %vm930 = vcmask 261120
      %v932 = vsel %vm930, %v913, 0
      %v935 = vsel %vm930, %v914, 0
      %v938 = vsel %vm930, %v915, 0
      %v941 = vsel %vm930, %v916, 0
      %v944 = vsel %vm930, %v917, 0
      %v947 = vsel %vm930, %v918, 0
      %949 = vmatprep.subr.mxu0 0.0
      %950 = vmatpush1.msra.mxu0 0.0
      %951 = vmatprep.subr.mxu0 0.0
      %952 = vmatpush1.msra.mxu0 0.0
      %953 = vmatprep.subr.mxu0 0.0
      %954 = vmatpush1.msra.mxu0 0.0
      %955 = vmatprep.subr.mxu0 0.0
      %956 = vmatpush1.msra.mxu0 0.0
      %957 = vmatprep.subr.mxu0 0.0
      %958 = vmatpush1.msra.mxu0 0.0
      %959 = vmatprep.subr.mxu0 0.0
      %960 = vmatpush1.msra.mxu0 0.0
      %961 = vmatprep.subr.mxu0 0.0
      %962 = vmatpush1.msra.mxu0 0.0
      %963 = vmatprep.subr.mxu0 0.0
      %964 = vmatpush1.msra.mxu0 0.0
      %965 = vmatprep.subr.mxu0 0.0
      %966 = vmatpush1.msra.mxu0 0.0
      %967 = vmatprep.subr.mxu0 0.0
      %968 = vmatpush1.msra.mxu0 0.0
      %969 = vmatprep.subr.mxu0 0.0
      %970 = vmatpush1.msra.mxu0 0.0
      %971 = vmatprep.subr.mxu0 0.0
      %972 = vmatpush1.msra.mxu0 0.0
      %973 = vmatprep.subr.mxu0 0.0
      %974 = vmatpush1.msra.mxu0 %v922
      %975 = vmatprep.subr.mxu0 0.0
      %976 = vmatpush1.msra.mxu0 %v921
      %977 = vmatprep.subr.mxu0 0.0
      %978 = vmatpush1.msra.mxu0 %v920
      %979 = vmatprep.subr.mxu0 0.0
      %980 = vmatpush1.msra.mxu0 %v919
      %981 = vmatprep.subr.mxu0 0.0
      %982 = vmatpush2.msra.mxu0 0.0
      %983 = vmatprep.subr.mxu0 0.0
      %984 = vmatpush2.msra.mxu0 0.0
      %985 = vmatprep.subr.mxu0 0.0
      %986 = vmatpush2.msra.mxu0 0.0
      %987 = vmatprep.subr.mxu0 0.0
      %988 = vmatpush2.msra.mxu0 0.0
      %989 = vmatprep.subr.mxu0 0.0
      %990 = vmatpush2.msra.mxu0 0.0
      %991 = vmatprep.subr.mxu0 0.0
      %992 = vmatpush2.msra.mxu0 0.0
      %993 = vmatprep.subr.mxu0 0.0
      %994 = vmatpush2.msra.mxu0 0.0
      %995 = vmatprep.subr.mxu0 0.0
      %996 = vmatpush2.msra.mxu0 0.0
      %997 = vmatprep.subr.mxu0 0.0
      %998 = vmatpush2.msra.mxu0 0.0
      %999 = vmatprep.subr.mxu0 0.0
      %1000 = vmatpush2.msra.mxu0 0.0
      %1001 = vmatprep.subr.mxu0 0.0
      %1002 = vmatpush2.msra.mxu0 0.0
      %1003 = vmatprep.subr.mxu0 0.0
      %1004 = vmatpush2.msra.mxu0 0.0
      %1005 = vmatprep.subr.mxu0 0.0
      %1006 = vmatpush2.msra.mxu0 0.0
      %1007 = vmatprep.subr.mxu0 0.0
      %1008 = vmatpush2.msra.mxu0 0.0
      %1009 = vmatprep.subr.mxu0 0.0
      %1010 = vmatpush2.msra.mxu0 0.0
      %1011 = vmatprep.subr.mxu0 0.0
      %1012 = vmatpush2.msra.mxu0 0.0
      %1013 = vmatprep.mubr.f32.mxu0 0.0
      %1014 = vmatmul.mubr.f32.gmra.mxu0 %v932
      %v1015 = vpop.f32.mrf.mxu0
      %v1016 = vadd.f32 %v928, %v1015
      %v1017 = vpop.f32.mrf.mxu0
      %1018 = vmatprep.mubr.f32.mxu0 0.0
      %1019 = vmatmul.mubr.f32.gmra.mxu0 %v935
      %v1020 = vpop.f32.mrf.mxu0
      %v1021 = vadd.f32 %v928, %v1020
      %v1022 = vpop.f32.mrf.mxu0
      %1023 = vmatprep.mubr.f32.mxu0 0.0
      %1024 = vmatmul.mubr.f32.gmra.mxu0 %v938
      %v1025 = vpop.f32.mrf.mxu0
      %v1026 = vadd.f32 %v928, %v1025
      %v1027 = vpop.f32.mrf.mxu0
      %1028 = vmatprep.mubr.f32.mxu0 0.0
      %1029 = vmatmul.mubr.f32.gmra.mxu0 %v941
      %v1030 = vpop.f32.mrf.mxu0
      %v1031 = vadd.f32 %v928, %v1030
      %v1032 = vpop.f32.mrf.mxu0
      %1033 = vmatprep.mubr.f32.mxu0 0.0
      %1034 = vmatmul.mubr.f32.gmra.mxu0 %v944
      %v1035 = vpop.f32.mrf.mxu0
      %v1036 = vadd.f32 %v928, %v1035
      %v1037 = vpop.f32.mrf.mxu0
      %1038 = vmatprep.mubr.f32.mxu0 0.0
      %1039 = vmatmul.mubr.f32.gmra.mxu0 %v947
      %v1040 = vpop.f32.mrf.mxu0
      %v1041 = vadd.f32 %v928, %v1040
      %v1042 = vpop.f32.mrf.mxu0
      %1043 = vdwg.mxu0
      %v1044 = vmax.f32 %v1016, 0.0
      %v1045 = vmax.f32 %v1021, 0.0
      %v1046 = vmax.f32 %v1026, 0.0
      %v1047 = vmax.f32 %v1031, 0.0
      %v1048 = vmax.f32 %v1036, 0.0
      %v1049 = vmax.f32 %v1041, 0.0
      %v1050 = vmul.f32 %v1044, 5.656854
      %v1051 = vmul.f32 %v1045, 5.656854
      %v1052 = vmul.f32 %v1046, 5.656854
      %v1053 = vmul.f32 %v1047, 5.656854
      %v1054 = vmul.f32 %v1048, 5.656854
      %v1055 = vmul.f32 %v1049, 5.656854
      %v1056 = vld [vmem:[%s3] sm:$0xff]
      %v1057 = vld [vmem:[%s3 + $0x8] sm:$0xff]
      %v1058 = vld [vmem:[%s3 + $0x10] sm:$0xff]
      %v1059 = vld [vmem:[%s3 + $0x18] sm:$0xff]
      %v1060 = vld [vmem:[%s3 + $0x20] sm:$0xff]
      %v1061 = vld [vmem:[%s3 + $0x28] sm:$0xff]
      %v1062 = vadd.f32 %v1050, %v1056
      %v1063 = vadd.f32 %v1051, %v1057
      %v1064 = vadd.f32 %v1052, %v1058
      %v1065 = vadd.f32 %v1053, %v1059
      %v1066 = vadd.f32 %v1054, %v1060
      %v1067 = vadd.f32 %v1055, %v1061
      %v1068 = vld [vmem:[%s7] sm:$0xff]
      %v1069 = vld [vmem:[%s7 + $0x8] sm:$0xff]
      %v1070 = vld [vmem:[%s7 + $0x10] sm:$0xff]
      %v1071 = vld [vmem:[%s7 + $0x18] sm:$0xff]
      %v1072 = vld [vmem:[%s8] sm:$0x1]
      %v1074 = vlaneseq
      %v1075 = vshrl.u32 %v1074, 7
      %v1076 = vsub.s32 0, %v1075
      %v1077 = vrot.slane %v1072, %v1076
      %v1080 = vsel %vm930, %v1062, 0
      %v1083 = vsel %vm930, %v1063, 0
      %v1086 = vsel %vm930, %v1064, 0
      %v1089 = vsel %vm930, %v1065, 0
      %v1092 = vsel %vm930, %v1066, 0
      %v1095 = vsel %vm930, %v1067, 0
      %1097 = vmatprep.subr.mxu0 0.0
      %1098 = vmatpush1.msra.mxu0 0.0
      %1099 = vmatprep.subr.mxu0 0.0
      %1100 = vmatpush1.msra.mxu0 0.0
      %1101 = vmatprep.subr.mxu0 0.0
      %1102 = vmatpush1.msra.mxu0 0.0
      %1103 = vmatprep.subr.mxu0 0.0
      %1104 = vmatpush1.msra.mxu0 0.0
      %1105 = vmatprep.subr.mxu0 0.0
      %1106 = vmatpush1.msra.mxu0 0.0
      %1107 = vmatprep.subr.mxu0 0.0
      %1108 = vmatpush1.msra.mxu0 0.0
      %1109 = vmatprep.subr.mxu0 0.0
      %1110 = vmatpush1.msra.mxu0 0.0
      %1111 = vmatprep.subr.mxu0 0.0
      %1112 = vmatpush1.msra.mxu0 0.0
      %1113 = vmatprep.subr.mxu0 0.0
      %1114 = vmatpush1.msra.mxu0 0.0
      %1115 = vmatprep.subr.mxu0 0.0
      %1116 = vmatpush1.msra.mxu0 0.0
      %1117 = vmatprep.subr.mxu0 0.0
      %1118 = vmatpush1.msra.mxu0 0.0
      %1119 = vmatprep.subr.mxu0 0.0
      %1120 = vmatpush1.msra.mxu0 0.0
      %1121 = vmatprep.subr.mxu0 0.0
      %1122 = vmatpush1.msra.mxu0 %v1071
      %1123 = vmatprep.subr.mxu0 0.0
      %1124 = vmatpush1.msra.mxu0 %v1070
      %1125 = vmatprep.subr.mxu0 0.0
      %1126 = vmatpush1.msra.mxu0 %v1069
      %1127 = vmatprep.subr.mxu0 0.0
      %1128 = vmatpush1.msra.mxu0 %v1068
      %1129 = vmatprep.subr.mxu0 0.0
      %1130 = vmatpush2.msra.mxu0 0.0
      %1131 = vmatprep.subr.mxu0 0.0
      %1132 = vmatpush2.msra.mxu0 0.0
      %1133 = vmatprep.subr.mxu0 0.0
      %1134 = vmatpush2.msra.mxu0 0.0
      %1135 = vmatprep.subr.mxu0 0.0
      %1136 = vmatpush2.msra.mxu0 0.0
      %1137 = vmatprep.subr.mxu0 0.0
      %1138 = vmatpush2.msra.mxu0 0.0
      %1139 = vmatprep.subr.mxu0 0.0
      %1140 = vmatpush2.msra.mxu0 0.0
      %1141 = vmatprep.subr.mxu0 0.0
      %1142 = vmatpush2.msra.mxu0 0.0
      %1143 = vmatprep.subr.mxu0 0.0
      %1144 = vmatpush2.msra.mxu0 0.0
      %1145 = vmatprep.subr.mxu0 0.0
      %1146 = vmatpush2.msra.mxu0 0.0
      %1147 = vmatprep.subr.mxu0 0.0
      %1148 = vmatpush2.msra.mxu0 0.0
      %1149 = vmatprep.subr.mxu0 0.0
      %1150 = vmatpush2.msra.mxu0 0.0
      %1151 = vmatprep.subr.mxu0 0.0
      %1152 = vmatpush2.msra.mxu0 0.0
      %1153 = vmatprep.subr.mxu0 0.0
      %1154 = vmatpush2.msra.mxu0 0.0
      %1155 = vmatprep.subr.mxu0 0.0
      %1156 = vmatpush2.msra.mxu0 0.0
      %1157 = vmatprep.subr.mxu0 0.0
      %1158 = vmatpush2.msra.mxu0 0.0
      %1159 = vmatprep.subr.mxu0 0.0
      %1160 = vmatpush2.msra.mxu0 0.0
      %1161 = vmatprep.mubr.f32.mxu0 0.0
      %1162 = vmatmul.mubr.f32.gmra.mxu0 %v1080
      %v1163 = vpop.f32.mrf.mxu0
      %v1164 = vadd.f32 %v1077, %v1163
      %v1165 = vpop.f32.mrf.mxu0
      %1166 = vmatprep.mubr.f32.mxu0 0.0
      %1167 = vmatmul.mubr.f32.gmra.mxu0 %v1083
      %v1168 = vpop.f32.mrf.mxu0
      %v1169 = vadd.f32 %v1077, %v1168
      %v1170 = vpop.f32.mrf.mxu0
      %1171 = vmatprep.mubr.f32.mxu0 0.0
      %1172 = vmatmul.mubr.f32.gmra.mxu0 %v1086
      %v1173 = vpop.f32.mrf.mxu0
      %v1174 = vadd.f32 %v1077, %v1173
      %v1175 = vpop.f32.mrf.mxu0
      %1176 = vmatprep.mubr.f32.mxu0 0.0
      %1177 = vmatmul.mubr.f32.gmra.mxu0 %v1089
      %v1178 = vpop.f32.mrf.mxu0
      %v1179 = vadd.f32 %v1077, %v1178
      %v1180 = vpop.f32.mrf.mxu0
      %1181 = vmatprep.mubr.f32.mxu0 0.0
      %1182 = vmatmul.mubr.f32.gmra.mxu0 %v1092
      %v1183 = vpop.f32.mrf.mxu0
      %v1184 = vadd.f32 %v1077, %v1183
      %v1185 = vpop.f32.mrf.mxu0
      %1186 = vmatprep.mubr.f32.mxu0 0.0
      %1187 = vmatmul.mubr.f32.gmra.mxu0 %v1095
      %v1188 = vpop.f32.mrf.mxu0
      %v1189 = vadd.f32 %v1077, %v1188
      %v1190 = vpop.f32.mrf.mxu0
      %1191 = vdwg.mxu0
      %1198 = vrot.lane.b32.xlu0 %v1164, 96
      %v1199 = vpop.permute.xlu0 %1198
      %1200 = vrot.lane.b32.xlu0 %v1169, 96
      %v1201 = vpop.permute.xlu0 %1200
      %1202 = vrot.lane.b32.xlu0 %v1174, 96
      %v1203 = vpop.permute.xlu0 %1202
      %1204 = vrot.lane.b32.xlu0 %v1179, 96
      %v1205 = vpop.permute.xlu0 %1204
      %1206 = vrot.lane.b32.xlu0 %v1184, 96
      %v1207 = vpop.permute.xlu0 %1206
      %1208 = vrot.lane.b32.xlu0 %v1189, 96
      %v1209 = vpop.permute.xlu0 %1208
      %vm1210 = vcmask 130048
      %v1211 = vsel %vm1210, %v1164, 0
      %v1213 = vsel %vm1210, %v1169, 0
      %v1215 = vsel %vm1210, %v1174, 0
      %v1217 = vsel %vm1210, %v1179, 0
      %v1219 = vsel %vm1210, %v1184, 0
      %v1221 = vsel %vm1210, %v1189, 0
      %v1223 = vsel %vm1210, %v1199, 0
      %v1225 = vsel %vm1210, %v1201, 0
      %v1227 = vsel %vm1210, %v1203, 0
      %v1229 = vsel %vm1210, %v1205, 0
      %v1231 = vsel %vm1210, %v1207, 0
      %v1233 = vsel %vm1210, %v1209, 0
      %1235 = vmatprep.subr.mxu0 0.0
      %1236 = vmatpush1.xpose.msra.mxu0 0.0
      %1237 = vmatprep.subr.mxu0 0.0
      %1238 = vmatpush1.xpose.msra.mxu0 0.0
      %1239 = vmatprep.subr.mxu0 0.0
      %1240 = vmatpush1.xpose.msra.mxu0 0.0
      %1241 = vmatprep.subr.mxu0 0.0
      %1242 = vmatpush1.xpose.msra.mxu0 0.0
      %1243 = vmatprep.subr.mxu0 0.0
      %1244 = vmatpush1.xpose.msra.mxu0 0.0
      %1245 = vmatprep.subr.mxu0 0.0
      %1246 = vmatpush1.xpose.msra.mxu0 0.0
      %1247 = vmatprep.subr.mxu0 0.0
      %1248 = vmatpush1.xpose.msra.mxu0 0.0
      %1249 = vmatprep.subr.mxu0 0.0
      %1250 = vmatpush1.xpose.msra.mxu0 0.0
      %1251 = vmatprep.subr.mxu0 0.0
      %1252 = vmatpush1.xpose.msra.mxu0 0.0
      %1253 = vmatprep.subr.mxu0 0.0
      %1254 = vmatpush1.xpose.msra.mxu0 0.0
      %1255 = vmatprep.subr.mxu0 0.0
      %1256 = vmatpush1.xpose.msra.mxu0 %v1233
      %1257 = vmatprep.subr.mxu0 0.0
      %1258 = vmatpush1.xpose.msra.mxu0 %v1231
      %1259 = vmatprep.subr.mxu0 0.0
      %1260 = vmatpush1.xpose.msra.mxu0 %v1229
      %1261 = vmatprep.subr.mxu0 0.0
      %1262 = vmatpush1.xpose.msra.mxu0 %v1227
      %1263 = vmatprep.subr.mxu0 0.0
      %1264 = vmatpush1.xpose.msra.mxu0 %v1225
      %1265 = vmatprep.subr.mxu0 0.0
      %1266 = vmatpush1.xpose.msra.mxu0 %v1223
      %1267 = vmatprep.subr.mxu0 0.0
      %1268 = vmatpush2.xpose.msra.mxu0 0.0
      %1269 = vmatprep.subr.mxu0 0.0
      %1270 = vmatpush2.xpose.msra.mxu0 0.0
      %1271 = vmatprep.subr.mxu0 0.0
      %1272 = vmatpush2.xpose.msra.mxu0 0.0
      %1273 = vmatprep.subr.mxu0 0.0
      %1274 = vmatpush2.xpose.msra.mxu0 0.0
      %1275 = vmatprep.subr.mxu0 0.0
      %1276 = vmatpush2.xpose.msra.mxu0 0.0
      %1277 = vmatprep.subr.mxu0 0.0
      %1278 = vmatpush2.xpose.msra.mxu0 0.0
      %1279 = vmatprep.subr.mxu0 0.0
      %1280 = vmatpush2.xpose.msra.mxu0 0.0
      %1281 = vmatprep.subr.mxu0 0.0
      %1282 = vmatpush2.xpose.msra.mxu0 0.0
      %1283 = vmatprep.subr.mxu0 0.0
      %1284 = vmatpush2.xpose.msra.mxu0 0.0
      %1285 = vmatprep.subr.mxu0 0.0
      %1286 = vmatpush2.xpose.msra.mxu0 0.0
      %1287 = vmatprep.subr.mxu0 0.0
      %1288 = vmatpush2.xpose.msra.mxu0 0.0
      %1289 = vmatprep.subr.mxu0 0.0
      %1290 = vmatpush2.xpose.msra.mxu0 0.0
      %1291 = vmatprep.subr.mxu0 0.0
      %1292 = vmatpush2.xpose.msra.mxu0 0.0
      %1293 = vmatprep.subr.mxu0 0.0
      %1294 = vmatpush2.xpose.msra.mxu0 0.0
      %1295 = vmatprep.subr.mxu0 0.0
      %1296 = vmatpush2.xpose.msra.mxu0 0.0
      %1297 = vmatprep.subr.mxu0 0.0
      %1298 = vmatpush2.xpose.msra.mxu0 0.0
      %1299 = vmatprep.mubr.f32.mxu0 0.0
      %1300 = vmatmul.mubr.f32.gmra.mxu0 %v1211
      %v1301 = vpop.f32.mrf.mxu0
      %v1302 = vadd.f32 0.0, %v1301
      %v1303 = vpop.f32.mrf.mxu0
      %1304 = vmatprep.mubr.f32.mxu0 0.0
      %1305 = vmatmul.mubr.f32.gmra.mxu0 %v1213
      %v1306 = vpop.f32.mrf.mxu0
      %v1307 = vadd.f32 0.0, %v1306
      %v1308 = vpop.f32.mrf.mxu0
      %1309 = vmatprep.mubr.f32.mxu0 0.0
      %1310 = vmatmul.mubr.f32.gmra.mxu0 %v1215
      %v1311 = vpop.f32.mrf.mxu0
      %v1312 = vadd.f32 0.0, %v1311
      %v1313 = vpop.f32.mrf.mxu0
      %1314 = vmatprep.mubr.f32.mxu0 0.0
      %1315 = vmatmul.mubr.f32.gmra.mxu0 %v1217
      %v1316 = vpop.f32.mrf.mxu0
      %v1317 = vadd.f32 0.0, %v1316
      %v1318 = vpop.f32.mrf.mxu0
      %1319 = vmatprep.mubr.f32.mxu0 0.0
      %1320 = vmatmul.mubr.f32.gmra.mxu0 %v1219
      %v1321 = vpop.f32.mrf.mxu0
      %v1322 = vadd.f32 0.0, %v1321
      %v1323 = vpop.f32.mrf.mxu0
      %1324 = vmatprep.mubr.f32.mxu0 0.0
      %1325 = vmatmul.mubr.f32.gmra.mxu0 %v1221
      %v1326 = vpop.f32.mrf.mxu0
      %v1327 = vadd.f32 0.0, %v1326
      %v1328 = vpop.f32.mrf.mxu0
      %1329 = vdwg.mxu0
      %vm1330 = vcmask 392192
      %v1331 = vsel %vm1330, %v1302, -inf
      %1332 = vmax.xlane.f32.xlu0 %v1331
      %v1333 = vpop.xlane.xlu0 %1332
      %v1334 = vsel %vm1330, %v1307, -inf
      %1335 = vmax.xlane.f32.xlu0 %v1334
      %v1336 = vpop.xlane.xlu0 %1335
      %v1337 = vsel %vm1330, %v1312, -inf
      %1338 = vmax.xlane.f32.xlu0 %v1337
      %v1339 = vpop.xlane.xlu0 %1338
      %v1340 = vsel %vm1330, %v1317, -inf
      %1341 = vmax.xlane.f32.xlu0 %v1340
      %v1342 = vpop.xlane.xlu0 %1341
      %v1343 = vsel %vm1330, %v1322, -inf
      %1344 = vmax.xlane.f32.xlu0 %v1343
      %v1345 = vpop.xlane.xlu0 %1344
      %v1346 = vsel %vm1330, %v1327, -inf
      %1347 = vmax.xlane.f32.xlu0 %v1346
      %v1348 = vpop.xlane.xlu0 %1347
      %v1349 = vsub.f32 %v1302, %v1333
      %v1350 = vsub.f32 %v1307, %v1336
      %v1351 = vsub.f32 %v1312, %v1339
      %v1352 = vsub.f32 %v1317, %v1342
      %v1353 = vsub.f32 %v1322, %v1345
      %v1354 = vsub.f32 %v1327, %v1348
      %v1355 = vmul.f32 %v1349, 1.442695
      %v1356 = vpow.pop %v1355
      %v1357 = vmul.f32 %v1350, 1.442695
      %v1358 = vpow.pop %v1357
      %v1359 = vmul.f32 %v1351, 1.442695
      %v1360 = vpow.pop %v1359
      %v1361 = vmul.f32 %v1352, 1.442695
      %v1362 = vpow.pop %v1361
      %v1363 = vmul.f32 %v1353, 1.442695
      %v1364 = vpow.pop %v1363
      %v1365 = vmul.f32 %v1354, 1.442695
      %v1366 = vpow.pop %v1365
      %v1367 = vsel %vm1330, %v1356, 0.0
      %1368 = vadd.xlane.f32.xlu0 %v1367
      %v1369 = vpop.xlane.xlu0 %1368
      %v1370 = vsel %vm1330, %v1358, 0.0
      %1371 = vadd.xlane.f32.xlu0 %v1370
      %v1372 = vpop.xlane.xlu0 %1371
      %v1373 = vsel %vm1330, %v1360, 0.0
      %1374 = vadd.xlane.f32.xlu0 %v1373
      %v1375 = vpop.xlane.xlu0 %1374
      %v1376 = vsel %vm1330, %v1362, 0.0
      %1377 = vadd.xlane.f32.xlu0 %v1376
      %v1378 = vpop.xlane.xlu0 %1377
      %v1379 = vsel %vm1330, %v1364, 0.0
      %1380 = vadd.xlane.f32.xlu0 %v1379
      %v1381 = vpop.xlane.xlu0 %1380
      %v1382 = vsel %vm1330, %v1366, 0.0
      %1383 = vadd.xlane.f32.xlu0 %v1382
      %v1384 = vpop.xlane.xlu0 %1383
      %v1385 = vrcp.pop %v1369
      %v1386 = vrcp.pop %v1372
      %v1387 = vrcp.pop %v1375
      %v1388 = vrcp.pop %v1378
      %v1389 = vrcp.pop %v1381
      %v1390 = vrcp.pop %v1384
      %v1391 = vmul.f32 %v1356, %v1385
      %v1392 = vmul.f32 %v1358, %v1386
      %v1393 = vmul.f32 %v1360, %v1387
      %v1394 = vmul.f32 %v1362, %v1388
      %v1395 = vmul.f32 %v1364, %v1389
      %v1396 = vmul.f32 %v1366, %v1390
      %1397 = vrot.lane.b32.xlu0 %v1164, 64
      %v1398 = vpop.permute.xlu0 %1397
      %1399 = vrot.lane.b32.xlu0 %v1169, 64
      %v1400 = vpop.permute.xlu0 %1399
      %1401 = vrot.lane.b32.xlu0 %v1174, 64
      %v1402 = vpop.permute.xlu0 %1401
      %1403 = vrot.lane.b32.xlu0 %v1179, 64
      %v1404 = vpop.permute.xlu0 %1403
      %1405 = vrot.lane.b32.xlu0 %v1184, 64
      %v1406 = vpop.permute.xlu0 %1405
      %1407 = vrot.lane.b32.xlu0 %v1189, 64
      %v1408 = vpop.permute.xlu0 %1407
      %v1416 = vsel %vm1330, %v1391, 0
      %v1419 = vsel %vm1330, %v1392, 0
      %v1422 = vsel %vm1330, %v1393, 0
      %v1425 = vsel %vm1330, %v1394, 0
      %v1428 = vsel %vm1330, %v1395, 0
      %v1431 = vsel %vm1330, %v1396, 0
      %1433 = vmatprep.subr.mxu0 0.0
      %1434 = vmatpush1.msra.mxu0 0.0
      %1435 = vmatprep.subr.mxu0 0.0
      %1436 = vmatpush1.msra.mxu0 0.0
      %1437 = vmatprep.subr.mxu0 0.0
      %1438 = vmatpush1.msra.mxu0 0.0
      %1439 = vmatprep.subr.mxu0 0.0
      %1440 = vmatpush1.msra.mxu0 0.0
      %1441 = vmatprep.subr.mxu0 0.0
      %1442 = vmatpush1.msra.mxu0 0.0
      %1443 = vmatprep.subr.mxu0 0.0
      %1444 = vmatpush1.msra.mxu0 0.0
      %1445 = vmatprep.subr.mxu0 0.0
      %1446 = vmatpush1.msra.mxu0 0.0
      %1447 = vmatprep.subr.mxu0 0.0
      %1448 = vmatpush1.msra.mxu0 0.0
      %1449 = vmatprep.subr.mxu0 0.0
      %1450 = vmatpush1.msra.mxu0 0.0
      %1451 = vmatprep.subr.mxu0 0.0
      %1452 = vmatpush1.msra.mxu0 0.0
      %1453 = vmatprep.subr.mxu0 0.0
      %1454 = vmatpush1.msra.mxu0 %v1408
      %1455 = vmatprep.subr.mxu0 0.0
      %1456 = vmatpush1.msra.mxu0 %v1406
      %1457 = vmatprep.subr.mxu0 0.0
      %1458 = vmatpush1.msra.mxu0 %v1404
      %1459 = vmatprep.subr.mxu0 0.0
      %1460 = vmatpush1.msra.mxu0 %v1402
      %1461 = vmatprep.subr.mxu0 0.0
      %1462 = vmatpush1.msra.mxu0 %v1400
      %1463 = vmatprep.subr.mxu0 0.0
      %1464 = vmatpush1.msra.mxu0 %v1398
      %1465 = vmatprep.subr.mxu0 0.0
      %1466 = vmatpush2.msra.mxu0 0.0
      %1467 = vmatprep.subr.mxu0 0.0
      %1468 = vmatpush2.msra.mxu0 0.0
      %1469 = vmatprep.subr.mxu0 0.0
      %1470 = vmatpush2.msra.mxu0 0.0
      %1471 = vmatprep.subr.mxu0 0.0
      %1472 = vmatpush2.msra.mxu0 0.0
      %1473 = vmatprep.subr.mxu0 0.0
      %1474 = vmatpush2.msra.mxu0 0.0
      %1475 = vmatprep.subr.mxu0 0.0
      %1476 = vmatpush2.msra.mxu0 0.0
      %1477 = vmatprep.subr.mxu0 0.0
      %1478 = vmatpush2.msra.mxu0 0.0
      %1479 = vmatprep.subr.mxu0 0.0
      %1480 = vmatpush2.msra.mxu0 0.0
      %1481 = vmatprep.subr.mxu0 0.0
      %1482 = vmatpush2.msra.mxu0 0.0
      %1483 = vmatprep.subr.mxu0 0.0
      %1484 = vmatpush2.msra.mxu0 0.0
      %1485 = vmatprep.subr.mxu0 0.0
      %1486 = vmatpush2.msra.mxu0 0.0
      %1487 = vmatprep.subr.mxu0 0.0
      %1488 = vmatpush2.msra.mxu0 0.0
      %1489 = vmatprep.subr.mxu0 0.0
      %1490 = vmatpush2.msra.mxu0 0.0
      %1491 = vmatprep.subr.mxu0 0.0
      %1492 = vmatpush2.msra.mxu0 0.0
      %1493 = vmatprep.subr.mxu0 0.0
      %1494 = vmatpush2.msra.mxu0 0.0
      %1495 = vmatprep.subr.mxu0 0.0
      %1496 = vmatpush2.msra.mxu0 0.0
      %1497 = vmatprep.mubr.f32.mxu0 0.0
      %1498 = vmatmul.mubr.f32.gmra.mxu0 %v1416
      %v1499 = vpop.f32.mrf.mxu0
      %v1500 = vadd.f32 0.0, %v1499
      %v1501 = vpop.f32.mrf.mxu0
      %1502 = vmatprep.mubr.f32.mxu0 0.0
      %1503 = vmatmul.mubr.f32.gmra.mxu0 %v1419
      %v1504 = vpop.f32.mrf.mxu0
      %v1505 = vadd.f32 0.0, %v1504
      %v1506 = vpop.f32.mrf.mxu0
      %1507 = vmatprep.mubr.f32.mxu0 0.0
      %1508 = vmatmul.mubr.f32.gmra.mxu0 %v1422
      %v1509 = vpop.f32.mrf.mxu0
      %v1510 = vadd.f32 0.0, %v1509
      %v1511 = vpop.f32.mrf.mxu0
      %1512 = vmatprep.mubr.f32.mxu0 0.0
      %1513 = vmatmul.mubr.f32.gmra.mxu0 %v1425
      %v1514 = vpop.f32.mrf.mxu0
      %v1515 = vadd.f32 0.0, %v1514
      %v1516 = vpop.f32.mrf.mxu0
      %1517 = vmatprep.mubr.f32.mxu0 0.0
      %1518 = vmatmul.mubr.f32.gmra.mxu0 %v1428
      %v1519 = vpop.f32.mrf.mxu0
      %v1520 = vadd.f32 0.0, %v1519
      %v1521 = vpop.f32.mrf.mxu0
      %1522 = vmatprep.mubr.f32.mxu0 0.0
      %1523 = vmatmul.mubr.f32.gmra.mxu0 %v1431
      %v1524 = vpop.f32.mrf.mxu0
      %v1525 = vadd.f32 0.0, %v1524
      %v1526 = vpop.f32.mrf.mxu0
      %1527 = vdwg.mxu0
      %1528 = vrot.lane.b32.xlu0 %v1164, 112
      %v1529 = vpop.permute.xlu0 %1528
      %1530 = vrot.lane.b32.xlu0 %v1169, 112
      %v1531 = vpop.permute.xlu0 %1530
      %1532 = vrot.lane.b32.xlu0 %v1174, 112
      %v1533 = vpop.permute.xlu0 %1532
      %1534 = vrot.lane.b32.xlu0 %v1179, 112
      %v1535 = vpop.permute.xlu0 %1534
      %1536 = vrot.lane.b32.xlu0 %v1184, 112
      %v1537 = vpop.permute.xlu0 %1536
      %1538 = vrot.lane.b32.xlu0 %v1189, 112
      %v1539 = vpop.permute.xlu0 %1538
      %1540 = vrot.lane.b32.xlu0 %v1164, 80
      %v1541 = vpop.permute.xlu0 %1540
      %1542 = vrot.lane.b32.xlu0 %v1169, 80
      %v1543 = vpop.permute.xlu0 %1542
      %1544 = vrot.lane.b32.xlu0 %v1174, 80
      %v1545 = vpop.permute.xlu0 %1544
      %1546 = vrot.lane.b32.xlu0 %v1179, 80
      %v1547 = vpop.permute.xlu0 %1546
      %1548 = vrot.lane.b32.xlu0 %v1184, 80
      %v1549 = vpop.permute.xlu0 %1548
      %1550 = vrot.lane.b32.xlu0 %v1189, 80
      %v1551 = vpop.permute.xlu0 %1550
      %v1552 = vsel %vm1210, %v1529, 0
      %v1554 = vsel %vm1210, %v1531, 0
      %v1556 = vsel %vm1210, %v1533, 0
      %v1558 = vsel %vm1210, %v1535, 0
      %v1560 = vsel %vm1210, %v1537, 0
      %v1562 = vsel %vm1210, %v1539, 0
      %v1564 = vsel %vm1210, %v1541, 0
      %v1566 = vsel %vm1210, %v1543, 0
      %v1568 = vsel %vm1210, %v1545, 0
      %v1570 = vsel %vm1210, %v1547, 0
      %v1572 = vsel %vm1210, %v1549, 0
      %v1574 = vsel %vm1210, %v1551, 0
      %1576 = vmatprep.subr.mxu0 0.0
      %1577 = vmatpush1.xpose.msra.mxu0 0.0
      %1578 = vmatprep.subr.mxu0 0.0
      %1579 = vmatpush1.xpose.msra.mxu0 0.0
      %1580 = vmatprep.subr.mxu0 0.0
      %1581 = vmatpush1.xpose.msra.mxu0 0.0
      %1582 = vmatprep.subr.mxu0 0.0
      %1583 = vmatpush1.xpose.msra.mxu0 0.0
      %1584 = vmatprep.subr.mxu0 0.0
      %1585 = vmatpush1.xpose.msra.mxu0 0.0
      %1586 = vmatprep.subr.mxu0 0.0
      %1587 = vmatpush1.xpose.msra.mxu0 0.0
      %1588 = vmatprep.subr.mxu0 0.0
      %1589 = vmatpush1.xpose.msra.mxu0 0.0
      %1590 = vmatprep.subr.mxu0 0.0
      %1591 = vmatpush1.xpose.msra.mxu0 0.0
      %1592 = vmatprep.subr.mxu0 0.0
      %1593 = vmatpush1.xpose.msra.mxu0 0.0
      %1594 = vmatprep.subr.mxu0 0.0
      %1595 = vmatpush1.xpose.msra.mxu0 0.0
      %1596 = vmatprep.subr.mxu0 0.0
      %1597 = vmatpush1.xpose.msra.mxu0 %v1574
      %1598 = vmatprep.subr.mxu0 0.0
      %1599 = vmatpush1.xpose.msra.mxu0 %v1572
      %1600 = vmatprep.subr.mxu0 0.0
      %1601 = vmatpush1.xpose.msra.mxu0 %v1570
      %1602 = vmatprep.subr.mxu0 0.0
      %1603 = vmatpush1.xpose.msra.mxu0 %v1568
      %1604 = vmatprep.subr.mxu0 0.0
      %1605 = vmatpush1.xpose.msra.mxu0 %v1566
      %1606 = vmatprep.subr.mxu0 0.0
      %1607 = vmatpush1.xpose.msra.mxu0 %v1564
      %1608 = vmatprep.subr.mxu0 0.0
      %1609 = vmatpush2.xpose.msra.mxu0 0.0
      %1610 = vmatprep.subr.mxu0 0.0
      %1611 = vmatpush2.xpose.msra.mxu0 0.0
      %1612 = vmatprep.subr.mxu0 0.0
      %1613 = vmatpush2.xpose.msra.mxu0 0.0
      %1614 = vmatprep.subr.mxu0 0.0
      %1615 = vmatpush2.xpose.msra.mxu0 0.0
      %1616 = vmatprep.subr.mxu0 0.0
      %1617 = vmatpush2.xpose.msra.mxu0 0.0
      %1618 = vmatprep.subr.mxu0 0.0
      %1619 = vmatpush2.xpose.msra.mxu0 0.0
      %1620 = vmatprep.subr.mxu0 0.0
      %1621 = vmatpush2.xpose.msra.mxu0 0.0
      %1622 = vmatprep.subr.mxu0 0.0
      %1623 = vmatpush2.xpose.msra.mxu0 0.0
      %1624 = vmatprep.subr.mxu0 0.0
      %1625 = vmatpush2.xpose.msra.mxu0 0.0
      %1626 = vmatprep.subr.mxu0 0.0
      %1627 = vmatpush2.xpose.msra.mxu0 0.0
      %1628 = vmatprep.subr.mxu0 0.0
      %1629 = vmatpush2.xpose.msra.mxu0 0.0
      %1630 = vmatprep.subr.mxu0 0.0
      %1631 = vmatpush2.xpose.msra.mxu0 0.0
      %1632 = vmatprep.subr.mxu0 0.0
      %1633 = vmatpush2.xpose.msra.mxu0 0.0
      %1634 = vmatprep.subr.mxu0 0.0
      %1635 = vmatpush2.xpose.msra.mxu0 0.0
      %1636 = vmatprep.subr.mxu0 0.0
      %1637 = vmatpush2.xpose.msra.mxu0 0.0
      %1638 = vmatprep.subr.mxu0 0.0
      %1639 = vmatpush2.xpose.msra.mxu0 0.0
      %1640 = vmatprep.mubr.f32.mxu0 0.0
      %1641 = vmatmul.mubr.f32.gmra.mxu0 %v1552
      %v1642 = vpop.f32.mrf.mxu0
      %v1643 = vadd.f32 0.0, %v1642
      %v1644 = vpop.f32.mrf.mxu0
      %1645 = vmatprep.mubr.f32.mxu0 0.0
      %1646 = vmatmul.mubr.f32.gmra.mxu0 %v1554
      %v1647 = vpop.f32.mrf.mxu0
      %v1648 = vadd.f32 0.0, %v1647
      %v1649 = vpop.f32.mrf.mxu0
      %1650 = vmatprep.mubr.f32.mxu0 0.0
      %1651 = vmatmul.mubr.f32.gmra.mxu0 %v1556
      %v1652 = vpop.f32.mrf.mxu0
      %v1653 = vadd.f32 0.0, %v1652
      %v1654 = vpop.f32.mrf.mxu0
      %1655 = vmatprep.mubr.f32.mxu0 0.0
      %1656 = vmatmul.mubr.f32.gmra.mxu0 %v1558
      %v1657 = vpop.f32.mrf.mxu0
      %v1658 = vadd.f32 0.0, %v1657
      %v1659 = vpop.f32.mrf.mxu0
      %1660 = vmatprep.mubr.f32.mxu0 0.0
      %1661 = vmatmul.mubr.f32.gmra.mxu0 %v1560
      %v1662 = vpop.f32.mrf.mxu0
      %v1663 = vadd.f32 0.0, %v1662
      %v1664 = vpop.f32.mrf.mxu0
      %1665 = vmatprep.mubr.f32.mxu0 0.0
      %1666 = vmatmul.mubr.f32.gmra.mxu0 %v1562
      %v1667 = vpop.f32.mrf.mxu0
      %v1668 = vadd.f32 0.0, %v1667
      %v1669 = vpop.f32.mrf.mxu0
      %1670 = vdwg.mxu0
      %v1671 = vsel %vm1330, %v1643, -inf
      %1672 = vmax.xlane.f32.xlu0 %v1671
      %v1673 = vpop.xlane.xlu0 %1672
      %v1674 = vsel %vm1330, %v1648, -inf
      %1675 = vmax.xlane.f32.xlu0 %v1674
      %v1676 = vpop.xlane.xlu0 %1675
      %v1677 = vsel %vm1330, %v1653, -inf
      %1678 = vmax.xlane.f32.xlu0 %v1677
      %v1679 = vpop.xlane.xlu0 %1678
      %v1680 = vsel %vm1330, %v1658, -inf
      %1681 = vmax.xlane.f32.xlu0 %v1680
      %v1682 = vpop.xlane.xlu0 %1681
      %v1683 = vsel %vm1330, %v1663, -inf
      %1684 = vmax.xlane.f32.xlu0 %v1683
      %v1685 = vpop.xlane.xlu0 %1684
      %v1686 = vsel %vm1330, %v1668, -inf
      %1687 = vmax.xlane.f32.xlu0 %v1686
      %v1688 = vpop.xlane.xlu0 %1687
      %v1689 = vsub.f32 %v1643, %v1673
      %v1690 = vsub.f32 %v1648, %v1676
      %v1691 = vsub.f32 %v1653, %v1679
      %v1692 = vsub.f32 %v1658, %v1682
      %v1693 = vsub.f32 %v1663, %v1685
      %v1694 = vsub.f32 %v1668, %v1688
      %v1695 = vmul.f32 %v1689, 1.442695
      %v1696 = vpow.pop %v1695
      %v1697 = vmul.f32 %v1690, 1.442695
      %v1698 = vpow.pop %v1697
      %v1699 = vmul.f32 %v1691, 1.442695
      %v1700 = vpow.pop %v1699
      %v1701 = vmul.f32 %v1692, 1.442695
      %v1702 = vpow.pop %v1701
      %v1703 = vmul.f32 %v1693, 1.442695
      %v1704 = vpow.pop %v1703
      %v1705 = vmul.f32 %v1694, 1.442695
      %v1706 = vpow.pop %v1705
      %v1707 = vsel %vm1330, %v1696, 0.0
      %1708 = vadd.xlane.f32.xlu0 %v1707
      %v1709 = vpop.xlane.xlu0 %1708
      %v1710 = vsel %vm1330, %v1698, 0.0
      %1711 = vadd.xlane.f32.xlu0 %v1710
      %v1712 = vpop.xlane.xlu0 %1711
      %v1713 = vsel %vm1330, %v1700, 0.0
      %1714 = vadd.xlane.f32.xlu0 %v1713
      %v1715 = vpop.xlane.xlu0 %1714
      %v1716 = vsel %vm1330, %v1702, 0.0
      %1717 = vadd.xlane.f32.xlu0 %v1716
      %v1718 = vpop.xlane.xlu0 %1717
      %v1719 = vsel %vm1330, %v1704, 0.0
      %1720 = vadd.xlane.f32.xlu0 %v1719
      %v1721 = vpop.xlane.xlu0 %1720
      %v1722 = vsel %vm1330, %v1706, 0.0
      %1723 = vadd.xlane.f32.xlu0 %v1722
      %v1724 = vpop.xlane.xlu0 %1723
      %v1725 = vrcp.pop %v1709
      %v1726 = vrcp.pop %v1712
      %v1727 = vrcp.pop %v1715
      %v1728 = vrcp.pop %v1718
      %v1729 = vrcp.pop %v1721
      %v1730 = vrcp.pop %v1724
      %v1731 = vmul.f32 %v1696, %v1725
      %v1732 = vmul.f32 %v1698, %v1726
      %v1733 = vmul.f32 %v1700, %v1727
      %v1734 = vmul.f32 %v1702, %v1728
      %v1735 = vmul.f32 %v1704, %v1729
      %v1736 = vmul.f32 %v1706, %v1730
      %1737 = vrot.lane.b32.xlu0 %v1164, 48
      %v1738 = vpop.permute.xlu0 %1737
      %1739 = vrot.lane.b32.xlu0 %v1169, 48
      %v1740 = vpop.permute.xlu0 %1739
      %1741 = vrot.lane.b32.xlu0 %v1174, 48
      %v1742 = vpop.permute.xlu0 %1741
      %1743 = vrot.lane.b32.xlu0 %v1179, 48
      %v1744 = vpop.permute.xlu0 %1743
      %1745 = vrot.lane.b32.xlu0 %v1184, 48
      %v1746 = vpop.permute.xlu0 %1745
      %1747 = vrot.lane.b32.xlu0 %v1189, 48
      %v1748 = vpop.permute.xlu0 %1747
      %v1756 = vsel %vm1330, %v1731, 0
      %v1759 = vsel %vm1330, %v1732, 0
      %v1762 = vsel %vm1330, %v1733, 0
      %v1765 = vsel %vm1330, %v1734, 0
      %v1768 = vsel %vm1330, %v1735, 0
      %v1771 = vsel %vm1330, %v1736, 0
      %1773 = vmatprep.subr.mxu0 0.0
      %1774 = vmatpush1.msra.mxu0 0.0
      %1775 = vmatprep.subr.mxu0 0.0
      %1776 = vmatpush1.msra.mxu0 0.0
      %1777 = vmatprep.subr.mxu0 0.0
      %1778 = vmatpush1.msra.mxu0 0.0
      %1779 = vmatprep.subr.mxu0 0.0
      %1780 = vmatpush1.msra.mxu0 0.0
      %1781 = vmatprep.subr.mxu0 0.0
      %1782 = vmatpush1.msra.mxu0 0.0
      %1783 = vmatprep.subr.mxu0 0.0
      %1784 = vmatpush1.msra.mxu0 0.0
      %1785 = vmatprep.subr.mxu0 0.0
      %1786 = vmatpush1.msra.mxu0 0.0
      %1787 = vmatprep.subr.mxu0 0.0
      %1788 = vmatpush1.msra.mxu0 0.0
      %1789 = vmatprep.subr.mxu0 0.0
      %1790 = vmatpush1.msra.mxu0 0.0
      %1791 = vmatprep.subr.mxu0 0.0
      %1792 = vmatpush1.msra.mxu0 0.0
      %1793 = vmatprep.subr.mxu0 0.0
      %1794 = vmatpush1.msra.mxu0 %v1748
      %1795 = vmatprep.subr.mxu0 0.0
      %1796 = vmatpush1.msra.mxu0 %v1746
      %1797 = vmatprep.subr.mxu0 0.0
      %1798 = vmatpush1.msra.mxu0 %v1744
      %1799 = vmatprep.subr.mxu0 0.0
      %1800 = vmatpush1.msra.mxu0 %v1742
      %1801 = vmatprep.subr.mxu0 0.0
      %1802 = vmatpush1.msra.mxu0 %v1740
      %1803 = vmatprep.subr.mxu0 0.0
      %1804 = vmatpush1.msra.mxu0 %v1738
      %1805 = vmatprep.subr.mxu0 0.0
      %1806 = vmatpush2.msra.mxu0 0.0
      %1807 = vmatprep.subr.mxu0 0.0
      %1808 = vmatpush2.msra.mxu0 0.0
      %1809 = vmatprep.subr.mxu0 0.0
      %1810 = vmatpush2.msra.mxu0 0.0
      %1811 = vmatprep.subr.mxu0 0.0
      %1812 = vmatpush2.msra.mxu0 0.0
      %1813 = vmatprep.subr.mxu0 0.0
      %1814 = vmatpush2.msra.mxu0 0.0
      %1815 = vmatprep.subr.mxu0 0.0
      %1816 = vmatpush2.msra.mxu0 0.0
      %1817 = vmatprep.subr.mxu0 0.0
      %1818 = vmatpush2.msra.mxu0 0.0
      %1819 = vmatprep.subr.mxu0 0.0
      %1820 = vmatpush2.msra.mxu0 0.0
      %1821 = vmatprep.subr.mxu0 0.0
      %1822 = vmatpush2.msra.mxu0 0.0
      %1823 = vmatprep.subr.mxu0 0.0
      %1824 = vmatpush2.msra.mxu0 0.0
      %1825 = vmatprep.subr.mxu0 0.0
      %1826 = vmatpush2.msra.mxu0 0.0
      %1827 = vmatprep.subr.mxu0 0.0
      %1828 = vmatpush2.msra.mxu0 0.0
      %1829 = vmatprep.subr.mxu0 0.0
      %1830 = vmatpush2.msra.mxu0 0.0
      %1831 = vmatprep.subr.mxu0 0.0
      %1832 = vmatpush2.msra.mxu0 0.0
      %1833 = vmatprep.subr.mxu0 0.0
      %1834 = vmatpush2.msra.mxu0 0.0
      %1835 = vmatprep.subr.mxu0 0.0
      %1836 = vmatpush2.msra.mxu0 0.0
      %1837 = vmatprep.mubr.f32.mxu0 0.0
      %1838 = vmatmul.mubr.f32.gmra.mxu0 %v1756
      %v1839 = vpop.f32.mrf.mxu0
      %v1840 = vadd.f32 0.0, %v1839
      %v1841 = vpop.f32.mrf.mxu0
      %1842 = vmatprep.mubr.f32.mxu0 0.0
      %1843 = vmatmul.mubr.f32.gmra.mxu0 %v1759
      %v1844 = vpop.f32.mrf.mxu0
      %v1845 = vadd.f32 0.0, %v1844
      %v1846 = vpop.f32.mrf.mxu0
      %1847 = vmatprep.mubr.f32.mxu0 0.0
      %1848 = vmatmul.mubr.f32.gmra.mxu0 %v1762
      %v1849 = vpop.f32.mrf.mxu0
      %v1850 = vadd.f32 0.0, %v1849
      %v1851 = vpop.f32.mrf.mxu0
      %1852 = vmatprep.mubr.f32.mxu0 0.0
      %1853 = vmatmul.mubr.f32.gmra.mxu0 %v1765
      %v1854 = vpop.f32.mrf.mxu0
      %v1855 = vadd.f32 0.0, %v1854
      %v1856 = vpop.f32.mrf.mxu0
      %1857 = vmatprep.mubr.f32.mxu0 0.0
      %1858 = vmatmul.mubr.f32.gmra.mxu0 %v1768
      %v1859 = vpop.f32.mrf.mxu0
      %v1860 = vadd.f32 0.0, %v1859
      %v1861 = vpop.f32.mrf.mxu0
      %1862 = vmatprep.mubr.f32.mxu0 0.0
      %1863 = vmatmul.mubr.f32.gmra.mxu0 %v1771
      %v1864 = vpop.f32.mrf.mxu0
      %v1865 = vadd.f32 0.0, %v1864
      %v1866 = vpop.f32.mrf.mxu0
      %1867 = vdwg.mxu0
      %1874 = vrot.lane.b32.xlu0 %v1840, 16
      %v1875 = vpop.permute.xlu0 %1874
      %1876 = vrot.lane.b32.xlu0 %v1845, 16
      %v1877 = vpop.permute.xlu0 %1876
      %1878 = vrot.lane.b32.xlu0 %v1850, 16
      %v1879 = vpop.permute.xlu0 %1878
      %1880 = vrot.lane.b32.xlu0 %v1855, 16
      %v1881 = vpop.permute.xlu0 %1880
      %1882 = vrot.lane.b32.xlu0 %v1860, 16
      %v1883 = vpop.permute.xlu0 %1882
      %1884 = vrot.lane.b32.xlu0 %v1865, 16
      %v1885 = vpop.permute.xlu0 %1884
      %v1892 = vsel %vm1210, %v1500, %v1875
      %v1893 = vsel %vm1210, %v1505, %v1877
      %v1894 = vsel %vm1210, %v1510, %v1879
      %v1895 = vsel %vm1210, %v1515, %v1881
      %v1896 = vsel %vm1210, %v1520, %v1883
      %v1897 = vsel %vm1210, %v1525, %v1885
      %v1898 = vld [vmem:[%s9] sm:$0xff]
      %v1899 = vld [vmem:[%s9 + $0x8] sm:$0xff]
      %v1900 = vld [vmem:[%s9 + $0x10] sm:$0xff]
      %v1901 = vld [vmem:[%s9 + $0x18] sm:$0xff]
      %v1902 = vld [vmem:[%s10] sm:$0x1]
      %v1904 = vlaneseq
      %v1905 = vshrl.u32 %v1904, 7
      %v1906 = vsub.s32 0, %v1905
      %v1907 = vrot.slane %v1902, %v1906
      %v1910 = vsel %vm930, %v1892, 0
      %v1913 = vsel %vm930, %v1893, 0
      %v1916 = vsel %vm930, %v1894, 0
      %v1919 = vsel %vm930, %v1895, 0
      %v1922 = vsel %vm930, %v1896, 0
      %v1925 = vsel %vm930, %v1897, 0
      %1927 = vmatprep.subr.mxu0 0.0
      %1928 = vmatpush1.msra.mxu0 0.0
      %1929 = vmatprep.subr.mxu0 0.0
      %1930 = vmatpush1.msra.mxu0 0.0
      %1931 = vmatprep.subr.mxu0 0.0
      %1932 = vmatpush1.msra.mxu0 0.0
      %1933 = vmatprep.subr.mxu0 0.0
      %1934 = vmatpush1.msra.mxu0 0.0
      %1935 = vmatprep.subr.mxu0 0.0
      %1936 = vmatpush1.msra.mxu0 0.0
      %1937 = vmatprep.subr.mxu0 0.0
      %1938 = vmatpush1.msra.mxu0 0.0
      %1939 = vmatprep.subr.mxu0 0.0
      %1940 = vmatpush1.msra.mxu0 0.0
      %1941 = vmatprep.subr.mxu0 0.0
      %1942 = vmatpush1.msra.mxu0 0.0
      %1943 = vmatprep.subr.mxu0 0.0
      %1944 = vmatpush1.msra.mxu0 0.0
      %1945 = vmatprep.subr.mxu0 0.0
      %1946 = vmatpush1.msra.mxu0 0.0
      %1947 = vmatprep.subr.mxu0 0.0
      %1948 = vmatpush1.msra.mxu0 0.0
      %1949 = vmatprep.subr.mxu0 0.0
      %1950 = vmatpush1.msra.mxu0 0.0
      %1951 = vmatprep.subr.mxu0 0.0
      %1952 = vmatpush1.msra.mxu0 %v1901
      %1953 = vmatprep.subr.mxu0 0.0
      %1954 = vmatpush1.msra.mxu0 %v1900
      %1955 = vmatprep.subr.mxu0 0.0
      %1956 = vmatpush1.msra.mxu0 %v1899
      %1957 = vmatprep.subr.mxu0 0.0
      %1958 = vmatpush1.msra.mxu0 %v1898
      %1959 = vmatprep.subr.mxu0 0.0
      %1960 = vmatpush2.msra.mxu0 0.0
      %1961 = vmatprep.subr.mxu0 0.0
      %1962 = vmatpush2.msra.mxu0 0.0
      %1963 = vmatprep.subr.mxu0 0.0
      %1964 = vmatpush2.msra.mxu0 0.0
      %1965 = vmatprep.subr.mxu0 0.0
      %1966 = vmatpush2.msra.mxu0 0.0
      %1967 = vmatprep.subr.mxu0 0.0
      %1968 = vmatpush2.msra.mxu0 0.0
      %1969 = vmatprep.subr.mxu0 0.0
      %1970 = vmatpush2.msra.mxu0 0.0
      %1971 = vmatprep.subr.mxu0 0.0
      %1972 = vmatpush2.msra.mxu0 0.0
      %1973 = vmatprep.subr.mxu0 0.0
      %1974 = vmatpush2.msra.mxu0 0.0
      %1975 = vmatprep.subr.mxu0 0.0
      %1976 = vmatpush2.msra.mxu0 0.0
      %1977 = vmatprep.subr.mxu0 0.0
      %1978 = vmatpush2.msra.mxu0 0.0
      %1979 = vmatprep.subr.mxu0 0.0
      %1980 = vmatpush2.msra.mxu0 0.0
      %1981 = vmatprep.subr.mxu0 0.0
      %1982 = vmatpush2.msra.mxu0 0.0
      %1983 = vmatprep.subr.mxu0 0.0
      %1984 = vmatpush2.msra.mxu0 0.0
      %1985 = vmatprep.subr.mxu0 0.0
      %1986 = vmatpush2.msra.mxu0 0.0
      %1987 = vmatprep.subr.mxu0 0.0
      %1988 = vmatpush2.msra.mxu0 0.0
      %1989 = vmatprep.subr.mxu0 0.0
      %1990 = vmatpush2.msra.mxu0 0.0
      %1991 = vmatprep.mubr.f32.mxu0 0.0
      %1992 = vmatmul.mubr.f32.gmra.mxu0 %v1910
      %v1993 = vpop.f32.mrf.mxu0
      %v1994 = vadd.f32 %v1907, %v1993
      %v1995 = vpop.f32.mrf.mxu0
      %1996 = vmatprep.mubr.f32.mxu0 0.0
      %1997 = vmatmul.mubr.f32.gmra.mxu0 %v1913
      %v1998 = vpop.f32.mrf.mxu0
      %v1999 = vadd.f32 %v1907, %v1998
      %v2000 = vpop.f32.mrf.mxu0
      %2001 = vmatprep.mubr.f32.mxu0 0.0
      %2002 = vmatmul.mubr.f32.gmra.mxu0 %v1916
      %v2003 = vpop.f32.mrf.mxu0
      %v2004 = vadd.f32 %v1907, %v2003
      %v2005 = vpop.f32.mrf.mxu0
      %2006 = vmatprep.mubr.f32.mxu0 0.0
      %2007 = vmatmul.mubr.f32.gmra.mxu0 %v1919
      %v2008 = vpop.f32.mrf.mxu0
      %v2009 = vadd.f32 %v1907, %v2008
      %v2010 = vpop.f32.mrf.mxu0
      %2011 = vmatprep.mubr.f32.mxu0 0.0
      %2012 = vmatmul.mubr.f32.gmra.mxu0 %v1922
      %v2013 = vpop.f32.mrf.mxu0
      %v2014 = vadd.f32 %v1907, %v2013
      %v2015 = vpop.f32.mrf.mxu0
      %2016 = vmatprep.mubr.f32.mxu0 0.0
      %2017 = vmatmul.mubr.f32.gmra.mxu0 %v1925
      %v2018 = vpop.f32.mrf.mxu0
      %v2019 = vadd.f32 %v1907, %v2018
      %v2020 = vpop.f32.mrf.mxu0
      %2021 = vdwg.mxu0
      %v2022 = vadd.f32 %v1062, %v1994
      %v2023 = vadd.f32 %v1063, %v1999
      %v2024 = vadd.f32 %v1064, %v2004
      %v2025 = vadd.f32 %v1065, %v2009
      %v2026 = vadd.f32 %v1066, %v2014
      %v2027 = vadd.f32 %v1067, %v2019
      %v2028 = vld [vmem:[%s11] sm:$0x1]
      %v2029 = vld [vmem:[%s12] sm:$0x1]
      %v2030 = vsel %vm930, %v2022, 0.0
      %2031 = vadd.xlane.f32.xlu0 %v2030
      %v2032 = vpop.xlane.xlu0 %2031
      %v2033 = vsel %vm930, %v2023, 0.0
      %2034 = vadd.xlane.f32.xlu0 %v2033
      %v2035 = vpop.xlane.xlu0 %2034
      %v2036 = vsel %vm930, %v2024, 0.0
      %2037 = vadd.xlane.f32.xlu0 %v2036
      %v2038 = vpop.xlane.xlu0 %2037
      %v2039 = vsel %vm930, %v2025, 0.0
      %2040 = vadd.xlane.f32.xlu0 %v2039
      %v2041 = vpop.xlane.xlu0 %2040
      %v2042 = vsel %vm930, %v2026, 0.0
      %2043 = vadd.xlane.f32.xlu0 %v2042
      %v2044 = vpop.xlane.xlu0 %2043
      %v2045 = vsel %vm930, %v2027, 0.0
      %2046 = vadd.xlane.f32.xlu0 %v2045
      %v2047 = vpop.xlane.xlu0 %2046
      %v2048 = vrcp.pop 32.0
      %v2049 = vmul.f32 %v2032, %v2048
      %v2050 = vmul.f32 %v2035, %v2048
      %v2051 = vmul.f32 %v2038, %v2048
      %v2052 = vmul.f32 %v2041, %v2048
      %v2053 = vmul.f32 %v2044, %v2048
      %v2054 = vmul.f32 %v2047, %v2048
      %v2055 = vsub.f32 %v2022, %v2049
      %v2056 = vsub.f32 %v2023, %v2050
      %v2057 = vsub.f32 %v2024, %v2051
      %v2058 = vsub.f32 %v2025, %v2052
      %v2059 = vsub.f32 %v2026, %v2053
      %v2060 = vsub.f32 %v2027, %v2054
      %v2061 = vmul.f32 %v2055, %v2055
      %v2062 = vmul.f32 %v2056, %v2056
      %v2063 = vmul.f32 %v2057, %v2057
      %v2064 = vmul.f32 %v2058, %v2058
      %v2065 = vmul.f32 %v2059, %v2059
      %v2066 = vmul.f32 %v2060, %v2060
      %v2067 = vsel %vm930, %v2061, 0.0
      %2068 = vadd.xlane.f32.xlu0 %v2067
      %v2069 = vpop.xlane.xlu0 %2068
      %v2070 = vsel %vm930, %v2062, 0.0
      %2071 = vadd.xlane.f32.xlu0 %v2070
      %v2072 = vpop.xlane.xlu0 %2071
      %v2073 = vsel %vm930, %v2063, 0.0
      %2074 = vadd.xlane.f32.xlu0 %v2073
      %v2075 = vpop.xlane.xlu0 %2074
      %v2076 = vsel %vm930, %v2064, 0.0
      %2077 = vadd.xlane.f32.xlu0 %v2076
      %v2078 = vpop.xlane.xlu0 %2077
      %v2079 = vsel %vm930, %v2065, 0.0
      %2080 = vadd.xlane.f32.xlu0 %v2079
      %v2081 = vpop.xlane.xlu0 %2080
      %v2082 = vsel %vm930, %v2066, 0.0
      %2083 = vadd.xlane.f32.xlu0 %v2082
      %v2084 = vpop.xlane.xlu0 %2083
      %v2085 = vmul.f32 %v2069, %v2048
      %v2086 = vmul.f32 %v2072, %v2048
      %v2087 = vmul.f32 %v2075, %v2048
      %v2088 = vmul.f32 %v2078, %v2048
      %v2089 = vmul.f32 %v2081, %v2048
      %v2090 = vmul.f32 %v2084, %v2048
      %v2091 = vadd.f32 %v2085, 1e-05
      %v2092 = vadd.f32 %v2086, 1e-05
      %v2093 = vadd.f32 %v2087, 1e-05
      %v2094 = vadd.f32 %v2088, 1e-05
      %v2095 = vadd.f32 %v2089, 1e-05
      %v2096 = vadd.f32 %v2090, 1e-05
      %v2097 = vrsqrt.pop %v2091
      %v2098 = vrsqrt.pop %v2092
      %v2099 = vrsqrt.pop %v2093
      %v2100 = vrsqrt.pop %v2094
      %v2101 = vrsqrt.pop %v2095
      %v2102 = vrsqrt.pop %v2096
      %v2103 = vmul.f32 %v2055, %v2097
      %v2104 = vmul.f32 %v2056, %v2098
      %v2105 = vmul.f32 %v2057, %v2099
      %v2106 = vmul.f32 %v2058, %v2100
      %v2107 = vmul.f32 %v2059, %v2101
      %v2108 = vmul.f32 %v2060, %v2102
      %v2110 = vlaneseq
      %v2111 = vshrl.u32 %v2110, 7
      %v2112 = vsub.s32 0, %v2111
      %v2113 = vrot.slane %v2028, %v2112
      %v2115 = vmul.f32 %v2103, %v2113
      %v2116 = vmul.f32 %v2104, %v2113
      %v2117 = vmul.f32 %v2105, %v2113
      %v2118 = vmul.f32 %v2106, %v2113
      %v2119 = vmul.f32 %v2107, %v2113
      %v2120 = vmul.f32 %v2108, %v2113
      %v2122 = vlaneseq
      %v2123 = vshrl.u32 %v2122, 7
      %v2124 = vsub.s32 0, %v2123
      %v2125 = vrot.slane %v2029, %v2124
      %v2127 = vadd.f32 %v2115, %v2125
      %v2128 = vadd.f32 %v2116, %v2125
      %v2129 = vadd.f32 %v2117, %v2125
      %v2130 = vadd.f32 %v2118, %v2125
      %v2131 = vadd.f32 %v2119, %v2125
      %v2132 = vadd.f32 %v2120, %v2125
      %v2133 = vld [vmem:[%s13] sm:$0xff]
      %v2134 = vld [vmem:[%s13 + $0x8] sm:$0xff]
      %v2135 = vld [vmem:[%s13 + $0x10] sm:$0xff]
      %v2136 = vld [vmem:[%s13 + $0x18] sm:$0xff]
      %v2137 = vld [vmem:[%s14] sm:$0x1]
      %v2139 = vlaneseq
      %v2140 = vshrl.u32 %v2139, 7
      %v2141 = vsub.s32 0, %v2140
      %v2142 = vrot.slane %v2137, %v2141
      %v2145 = vsel %vm930, %v2127, 0
      %v2148 = vsel %vm930, %v2128, 0
      %v2151 = vsel %vm930, %v2129, 0
      %v2154 = vsel %vm930, %v2130, 0
      %v2157 = vsel %vm930, %v2131, 0
      %v2160 = vsel %vm930, %v2132, 0
      %2162 = vmatprep.subr.mxu0 0.0
      %2163 = vmatpush1.msra.mxu0 0.0
      %2164 = vmatprep.subr.mxu0 0.0
      %2165 = vmatpush1.msra.mxu0 0.0
      %2166 = vmatprep.subr.mxu0 0.0
      %2167 = vmatpush1.msra.mxu0 0.0
      %2168 = vmatprep.subr.mxu0 0.0
      %2169 = vmatpush1.msra.mxu0 0.0
      %2170 = vmatprep.subr.mxu0 0.0
      %2171 = vmatpush1.msra.mxu0 0.0
      %2172 = vmatprep.subr.mxu0 0.0
      %2173 = vmatpush1.msra.mxu0 0.0
      %2174 = vmatprep.subr.mxu0 0.0
      %2175 = vmatpush1.msra.mxu0 0.0
      %2176 = vmatprep.subr.mxu0 0.0
      %2177 = vmatpush1.msra.mxu0 0.0
      %2178 = vmatprep.subr.mxu0 0.0
      %2179 = vmatpush1.msra.mxu0 0.0
      %2180 = vmatprep.subr.mxu0 0.0
      %2181 = vmatpush1.msra.mxu0 0.0
      %2182 = vmatprep.subr.mxu0 0.0
      %2183 = vmatpush1.msra.mxu0 0.0
      %2184 = vmatprep.subr.mxu0 0.0
      %2185 = vmatpush1.msra.mxu0 0.0
      %2186 = vmatprep.subr.mxu0 0.0
      %2187 = vmatpush1.msra.mxu0 %v2136
      %2188 = vmatprep.subr.mxu0 0.0
      %2189 = vmatpush1.msra.mxu0 %v2135
      %2190 = vmatprep.subr.mxu0 0.0
      %2191 = vmatpush1.msra.mxu0 %v2134
      %2192 = vmatprep.subr.mxu0 0.0
      %2193 = vmatpush1.msra.mxu0 %v2133
      %2194 = vmatprep.subr.mxu0 0.0
      %2195 = vmatpush2.msra.mxu0 0.0
      %2196 = vmatprep.subr.mxu0 0.0
      %2197 = vmatpush2.msra.mxu0 0.0
      %2198 = vmatprep.subr.mxu0 0.0
      %2199 = vmatpush2.msra.mxu0 0.0
      %2200 = vmatprep.subr.mxu0 0.0
      %2201 = vmatpush2.msra.mxu0 0.0
      %2202 = vmatprep.subr.mxu0 0.0
      %2203 = vmatpush2.msra.mxu0 0.0
      %2204 = vmatprep.subr.mxu0 0.0
      %2205 = vmatpush2.msra.mxu0 0.0
      %2206 = vmatprep.subr.mxu0 0.0
      %2207 = vmatpush2.msra.mxu0 0.0
      %2208 = vmatprep.subr.mxu0 0.0
      %2209 = vmatpush2.msra.mxu0 0.0
      %2210 = vmatprep.subr.mxu0 0.0
      %2211 = vmatpush2.msra.mxu0 0.0
      %2212 = vmatprep.subr.mxu0 0.0
      %2213 = vmatpush2.msra.mxu0 0.0
      %2214 = vmatprep.subr.mxu0 0.0
      %2215 = vmatpush2.msra.mxu0 0.0
      %2216 = vmatprep.subr.mxu0 0.0
      %2217 = vmatpush2.msra.mxu0 0.0
      %2218 = vmatprep.subr.mxu0 0.0
      %2219 = vmatpush2.msra.mxu0 0.0
      %2220 = vmatprep.subr.mxu0 0.0
      %2221 = vmatpush2.msra.mxu0 0.0
      %2222 = vmatprep.subr.mxu0 0.0
      %2223 = vmatpush2.msra.mxu0 0.0
      %2224 = vmatprep.subr.mxu0 0.0
      %2225 = vmatpush2.msra.mxu0 0.0
      %2226 = vmatprep.mubr.f32.mxu0 0.0
      %2227 = vmatmul.mubr.f32.gmra.mxu0 %v2145
      %v2228 = vpop.f32.mrf.mxu0
      %v2229 = vadd.f32 %v2142, %v2228
      %v2230 = vpop.f32.mrf.mxu0
      %2231 = vmatprep.mubr.f32.mxu0 0.0
      %2232 = vmatmul.mubr.f32.gmra.mxu0 %v2148
      %v2233 = vpop.f32.mrf.mxu0
      %v2234 = vadd.f32 %v2142, %v2233
      %v2235 = vpop.f32.mrf.mxu0
      %2236 = vmatprep.mubr.f32.mxu0 0.0
      %2237 = vmatmul.mubr.f32.gmra.mxu0 %v2151
      %v2238 = vpop.f32.mrf.mxu0
      %v2239 = vadd.f32 %v2142, %v2238
      %v2240 = vpop.f32.mrf.mxu0
      %2241 = vmatprep.mubr.f32.mxu0 0.0
      %2242 = vmatmul.mubr.f32.gmra.mxu0 %v2154
      %v2243 = vpop.f32.mrf.mxu0
      %v2244 = vadd.f32 %v2142, %v2243
      %v2245 = vpop.f32.mrf.mxu0
      %2246 = vmatprep.mubr.f32.mxu0 0.0
      %2247 = vmatmul.mubr.f32.gmra.mxu0 %v2157
      %v2248 = vpop.f32.mrf.mxu0
      %v2249 = vadd.f32 %v2142, %v2248
      %v2250 = vpop.f32.mrf.mxu0
      %2251 = vmatprep.mubr.f32.mxu0 0.0
      %2252 = vmatmul.mubr.f32.gmra.mxu0 %v2160
      %v2253 = vpop.f32.mrf.mxu0
      %v2254 = vadd.f32 %v2142, %v2253
      %v2255 = vpop.f32.mrf.mxu0
      %2256 = vdwg.mxu0
      %v2257 = vmax.f32 %v2229, 0.0
      %v2258 = vmax.f32 %v2234, 0.0
      %v2259 = vmax.f32 %v2239, 0.0
      %v2260 = vmax.f32 %v2244, 0.0
      %v2261 = vmax.f32 %v2249, 0.0
      %v2262 = vmax.f32 %v2254, 0.0
      %v2263 = vld [vmem:[%s15] sm:$0xff]
      %v2264 = vld [vmem:[%s15 + $0x8] sm:$0xff]
      %v2265 = vld [vmem:[%s15 + $0x10] sm:$0xff]
      %v2266 = vld [vmem:[%s15 + $0x18] sm:$0xff]
      %v2267 = vld [vmem:[%s15 + $0x20] sm:$0xff]
      %v2268 = vld [vmem:[%s15 + $0x28] sm:$0xff]
      %v2269 = vld [vmem:[%s15 + $0x30] sm:$0xff]
      %v2270 = vld [vmem:[%s15 + $0x38] sm:$0xff]
      %v2271 = vld [vmem:[%s16] sm:$0x1]
      %v2273 = vlaneseq
      %v2274 = vshrl.u32 %v2273, 7
      %v2275 = vsub.s32 0, %v2274
      %v2276 = vrot.slane %v2271, %v2275
      %vm2278 = vcmask 523264
      %v2280 = vsel %vm2278, %v2257, 0
      %v2283 = vsel %vm2278, %v2258, 0
      %v2286 = vsel %vm2278, %v2259, 0
      %v2289 = vsel %vm2278, %v2260, 0
      %v2292 = vsel %vm2278, %v2261, 0
      %v2295 = vsel %vm2278, %v2262, 0
      %2297 = vmatprep.subr.mxu0 0.0
      %2298 = vmatpush1.msra.mxu0 0.0
      %2299 = vmatprep.subr.mxu0 0.0
      %2300 = vmatpush1.msra.mxu0 0.0
      %2301 = vmatprep.subr.mxu0 0.0
      %2302 = vmatpush1.msra.mxu0 0.0
      %2303 = vmatprep.subr.mxu0 0.0
      %2304 = vmatpush1.msra.mxu0 0.0
      %2305 = vmatprep.subr.mxu0 0.0
      %2306 = vmatpush1.msra.mxu0 0.0
      %2307 = vmatprep.subr.mxu0 0.0
      %2308 = vmatpush1.msra.mxu0 0.0
      %2309 = vmatprep.subr.mxu0 0.0
      %2310 = vmatpush1.msra.mxu0 0.0
      %2311 = vmatprep.subr.mxu0 0.0
      %2312 = vmatpush1.msra.mxu0 0.0
      %2313 = vmatprep.subr.mxu0 0.0
      %2314 = vmatpush1.msra.mxu0 %v2270
      %2315 = vmatprep.subr.mxu0 0.0
      %2316 = vmatpush1.msra.mxu0 %v2269
      %2317 = vmatprep.subr.mxu0 0.0
      %2318 = vmatpush1.msra.mxu0 %v2268
      %2319 = vmatprep.subr.mxu0 0.0
      %2320 = vmatpush1.msra.mxu0 %v2267
      %2321 = vmatprep.subr.mxu0 0.0
      %2322 = vmatpush1.msra.mxu0 %v2266
      %2323 = vmatprep.subr.mxu0 0.0
      %2324 = vmatpush1.msra.mxu0 %v2265
      %2325 = vmatprep.subr.mxu0 0.0
      %2326 = vmatpush1.msra.mxu0 %v2264
      %2327 = vmatprep.subr.mxu0 0.0
      %2328 = vmatpush1.msra.mxu0 %v2263
      %2329 = vmatprep.subr.mxu0 0.0
      %2330 = vmatpush2.msra.mxu0 0.0
      %2331 = vmatprep.subr.mxu0 0.0
      %2332 = vmatpush2.msra.mxu0 0.0
      %2333 = vmatprep.subr.mxu0 0.0
      %2334 = vmatpush2.msra.mxu0 0.0
      %2335 = vmatprep.subr.mxu0 0.0
      %2336 = vmatpush2.msra.mxu0 0.0
      %2337 = vmatprep.subr.mxu0 0.0
      %2338 = vmatpush2.msra.mxu0 0.0
      %2339 = vmatprep.subr.mxu0 0.0
      %2340 = vmatpush2.msra.mxu0 0.0
      %2341 = vmatprep.subr.mxu0 0.0
      %2342 = vmatpush2.msra.mxu0 0.0
      %2343 = vmatprep.subr.mxu0 0.0
      %2344 = vmatpush2.msra.mxu0 0.0
      %2345 = vmatprep.subr.mxu0 0.0
      %2346 = vmatpush2.msra.mxu0 0.0
      %2347 = vmatprep.subr.mxu0 0.0
      %2348 = vmatpush2.msra.mxu0 0.0
      %2349 = vmatprep.subr.mxu0 0.0
      %2350 = vmatpush2.msra.mxu0 0.0
      %2351 = vmatprep.subr.mxu0 0.0
      %2352 = vmatpush2.msra.mxu0 0.0
      %2353 = vmatprep.subr.mxu0 0.0
      %2354 = vmatpush2.msra.mxu0 0.0
      %2355 = vmatprep.subr.mxu0 0.0
      %2356 = vmatpush2.msra.mxu0 0.0
      %2357 = vmatprep.subr.mxu0 0.0
      %2358 = vmatpush2.msra.mxu0 0.0
      %2359 = vmatprep.subr.mxu0 0.0
      %2360 = vmatpush2.msra.mxu0 0.0
      %2361 = vmatprep.mubr.f32.mxu0 0.0
      %2362 = vmatmul.mubr.f32.gmra.mxu0 %v2280
      %v2363 = vpop.f32.mrf.mxu0
      %v2364 = vadd.f32 %v2276, %v2363
      %v2365 = vpop.f32.mrf.mxu0
      %2366 = vmatprep.mubr.f32.mxu0 0.0
      %2367 = vmatmul.mubr.f32.gmra.mxu0 %v2283
      %v2368 = vpop.f32.mrf.mxu0
      %v2369 = vadd.f32 %v2276, %v2368
      %v2370 = vpop.f32.mrf.mxu0
      %2371 = vmatprep.mubr.f32.mxu0 0.0
      %2372 = vmatmul.mubr.f32.gmra.mxu0 %v2286
      %v2373 = vpop.f32.mrf.mxu0
      %v2374 = vadd.f32 %v2276, %v2373
      %v2375 = vpop.f32.mrf.mxu0
      %2376 = vmatprep.mubr.f32.mxu0 0.0
      %2377 = vmatmul.mubr.f32.gmra.mxu0 %v2289
      %v2378 = vpop.f32.mrf.mxu0
      %v2379 = vadd.f32 %v2276, %v2378
      %v2380 = vpop.f32.mrf.mxu0
      %2381 = vmatprep.mubr.f32.mxu0 0.0
      %2382 = vmatmul.mubr.f32.gmra.mxu0 %v2292
      %v2383 = vpop.f32.mrf.mxu0
      %v2384 = vadd.f32 %v2276, %v2383
      %v2385 = vpop.f32.mrf.mxu0
      %2386 = vmatprep.mubr.f32.mxu0 0.0
      %2387 = vmatmul.mubr.f32.gmra.mxu0 %v2295
      %v2388 = vpop.f32.mrf.mxu0
      %v2389 = vadd.f32 %v2276, %v2388
      %v2390 = vpop.f32.mrf.mxu0
      %2391 = vdwg.mxu0
      %v2392 = vadd.f32 %v2127, %v2364
      %v2393 = vadd.f32 %v2128, %v2369
      %v2394 = vadd.f32 %v2129, %v2374
      %v2395 = vadd.f32 %v2130, %v2379
      %v2396 = vadd.f32 %v2131, %v2384
      %v2397 = vadd.f32 %v2132, %v2389
      %v2398 = vld [vmem:[%s17] sm:$0x1]
      %v2399 = vld [vmem:[%s18] sm:$0x1]
      %v2400 = vsel %vm930, %v2392, 0.0
      %2401 = vadd.xlane.f32.xlu0 %v2400
      %v2402 = vpop.xlane.xlu0 %2401
      %v2403 = vsel %vm930, %v2393, 0.0
      %2404 = vadd.xlane.f32.xlu0 %v2403
      %v2405 = vpop.xlane.xlu0 %2404
      %v2406 = vsel %vm930, %v2394, 0.0
      %2407 = vadd.xlane.f32.xlu0 %v2406
      %v2408 = vpop.xlane.xlu0 %2407
      %v2409 = vsel %vm930, %v2395, 0.0
      %2410 = vadd.xlane.f32.xlu0 %v2409
      %v2411 = vpop.xlane.xlu0 %2410
      %v2412 = vsel %vm930, %v2396, 0.0
      %2413 = vadd.xlane.f32.xlu0 %v2412
      %v2414 = vpop.xlane.xlu0 %2413
      %v2415 = vsel %vm930, %v2397, 0.0
      %2416 = vadd.xlane.f32.xlu0 %v2415
      %v2417 = vpop.xlane.xlu0 %2416
      %v2418 = vmul.f32 %v2402, %v2048
      %v2419 = vmul.f32 %v2405, %v2048
      %v2420 = vmul.f32 %v2408, %v2048
      %v2421 = vmul.f32 %v2411, %v2048
      %v2422 = vmul.f32 %v2414, %v2048
      %v2423 = vmul.f32 %v2417, %v2048
      %v2424 = vsub.f32 %v2392, %v2418
      %v2425 = vsub.f32 %v2393, %v2419
      %v2426 = vsub.f32 %v2394, %v2420
      %v2427 = vsub.f32 %v2395, %v2421
      %v2428 = vsub.f32 %v2396, %v2422
      %v2429 = vsub.f32 %v2397, %v2423
      %v2430 = vmul.f32 %v2424, %v2424
      %v2431 = vmul.f32 %v2425, %v2425
      %v2432 = vmul.f32 %v2426, %v2426
      %v2433 = vmul.f32 %v2427, %v2427
      %v2434 = vmul.f32 %v2428, %v2428
      %v2435 = vmul.f32 %v2429, %v2429
      %v2436 = vsel %vm930, %v2430, 0.0
      %2437 = vadd.xlane.f32.xlu0 %v2436
      %v2438 = vpop.xlane.xlu0 %2437
      %v2439 = vsel %vm930, %v2431, 0.0
      %2440 = vadd.xlane.f32.xlu0 %v2439
      %v2441 = vpop.xlane.xlu0 %2440
      %v2442 = vsel %vm930, %v2432, 0.0
      %2443 = vadd.xlane.f32.xlu0 %v2442
      %v2444 = vpop.xlane.xlu0 %2443
      %v2445 = vsel %vm930, %v2433, 0.0
      %2446 = vadd.xlane.f32.xlu0 %v2445
      %v2447 = vpop.xlane.xlu0 %2446
      %v2448 = vsel %vm930, %v2434, 0.0
      %2449 = vadd.xlane.f32.xlu0 %v2448
      %v2450 = vpop.xlane.xlu0 %2449
      %v2451 = vsel %vm930, %v2435, 0.0
      %2452 = vadd.xlane.f32.xlu0 %v2451
      %v2453 = vpop.xlane.xlu0 %2452
      %v2454 = vmul.f32 %v2438, %v2048
      %v2455 = vmul.f32 %v2441, %v2048
      %v2456 = vmul.f32 %v2444, %v2048
      %v2457 = vmul.f32 %v2447, %v2048
      %v2458 = vmul.f32 %v2450, %v2048
      %v2459 = vmul.f32 %v2453, %v2048
      %v2460 = vadd.f32 %v2454, 1e-05
      %v2461 = vadd.f32 %v2455, 1e-05
      %v2462 = vadd.f32 %v2456, 1e-05
      %v2463 = vadd.f32 %v2457, 1e-05
      %v2464 = vadd.f32 %v2458, 1e-05
      %v2465 = vadd.f32 %v2459, 1e-05
      %v2466 = vrsqrt.pop %v2460
      %v2467 = vrsqrt.pop %v2461
      %v2468 = vrsqrt.pop %v2462
      %v2469 = vrsqrt.pop %v2463
      %v2470 = vrsqrt.pop %v2464
      %v2471 = vrsqrt.pop %v2465
      %v2472 = vmul.f32 %v2424, %v2466
      %v2473 = vmul.f32 %v2425, %v2467
      %v2474 = vmul.f32 %v2426, %v2468
      %v2475 = vmul.f32 %v2427, %v2469
      %v2476 = vmul.f32 %v2428, %v2470
      %v2477 = vmul.f32 %v2429, %v2471
      %v2479 = vlaneseq
      %v2480 = vshrl.u32 %v2479, 7
      %v2481 = vsub.s32 0, %v2480
      %v2482 = vrot.slane %v2398, %v2481
      %v2484 = vmul.f32 %v2472, %v2482
      %v2485 = vmul.f32 %v2473, %v2482
      %v2486 = vmul.f32 %v2474, %v2482
      %v2487 = vmul.f32 %v2475, %v2482
      %v2488 = vmul.f32 %v2476, %v2482
      %v2489 = vmul.f32 %v2477, %v2482
      %v2491 = vlaneseq
      %v2492 = vshrl.u32 %v2491, 7
      %v2493 = vsub.s32 0, %v2492
      %v2494 = vrot.slane %v2399, %v2493
      %v2496 = vadd.f32 %v2484, %v2494
      %v2497 = vadd.f32 %v2485, %v2494
      %v2498 = vadd.f32 %v2486, %v2494
      %v2499 = vadd.f32 %v2487, %v2494
      %v2500 = vadd.f32 %v2488, %v2494
      %v2501 = vadd.f32 %v2489, %v2494
      %s2502 = scalar_lea.vmem %s7, 32
      %v2503 = vld [vmem:[%s2502] sm:$0xff]
      %v2504 = vld [vmem:[%s2502 + $0x8] sm:$0xff]
      %v2505 = vld [vmem:[%s2502 + $0x10] sm:$0xff]
      %v2506 = vld [vmem:[%s2502 + $0x18] sm:$0xff]
      %s2507 = scalar_lea.vmem %s8, 1
      %v2508 = vld [vmem:[%s2507] sm:$0x1]
      %v2510 = vlaneseq
      %v2511 = vshrl.u32 %v2510, 7
      %v2512 = vsub.s32 0, %v2511
      %v2513 = vrot.slane %v2508, %v2512
      %v2516 = vsel %vm930, %v2496, 0
      %v2519 = vsel %vm930, %v2497, 0
      %v2522 = vsel %vm930, %v2498, 0
      %v2525 = vsel %vm930, %v2499, 0
      %v2528 = vsel %vm930, %v2500, 0
      %v2531 = vsel %vm930, %v2501, 0
      %2533 = vmatprep.subr.mxu0 0.0
      %2534 = vmatpush1.msra.mxu0 0.0
      %2535 = vmatprep.subr.mxu0 0.0
      %2536 = vmatpush1.msra.mxu0 0.0
      %2537 = vmatprep.subr.mxu0 0.0
      %2538 = vmatpush1.msra.mxu0 0.0
      %2539 = vmatprep.subr.mxu0 0.0
      %2540 = vmatpush1.msra.mxu0 0.0
      %2541 = vmatprep.subr.mxu0 0.0
      %2542 = vmatpush1.msra.mxu0 0.0
      %2543 = vmatprep.subr.mxu0 0.0
      %2544 = vmatpush1.msra.mxu0 0.0
      %2545 = vmatprep.subr.mxu0 0.0
      %2546 = vmatpush1.msra.mxu0 0.0
      %2547 = vmatprep.subr.mxu0 0.0
      %2548 = vmatpush1.msra.mxu0 0.0
      %2549 = vmatprep.subr.mxu0 0.0
      %2550 = vmatpush1.msra.mxu0 0.0
      %2551 = vmatprep.subr.mxu0 0.0
      %2552 = vmatpush1.msra.mxu0 0.0
      %2553 = vmatprep.subr.mxu0 0.0
      %2554 = vmatpush1.msra.mxu0 0.0
      %2555 = vmatprep.subr.mxu0 0.0
      %2556 = vmatpush1.msra.mxu0 0.0
      %2557 = vmatprep.subr.mxu0 0.0
      %2558 = vmatpush1.msra.mxu0 %v2506
      %2559 = vmatprep.subr.mxu0 0.0
      %2560 = vmatpush1.msra.mxu0 %v2505
      %2561 = vmatprep.subr.mxu0 0.0
      %2562 = vmatpush1.msra.mxu0 %v2504
      %2563 = vmatprep.subr.mxu0 0.0
      %2564 = vmatpush1.msra.mxu0 %v2503
      %2565 = vmatprep.subr.mxu0 0.0
      %2566 = vmatpush2.msra.mxu0 0.0
      %2567 = vmatprep.subr.mxu0 0.0
      %2568 = vmatpush2.msra.mxu0 0.0
      %2569 = vmatprep.subr.mxu0 0.0
      %2570 = vmatpush2.msra.mxu0 0.0
      %2571 = vmatprep.subr.mxu0 0.0
      %2572 = vmatpush2.msra.mxu0 0.0
      %2573 = vmatprep.subr.mxu0 0.0
      %2574 = vmatpush2.msra.mxu0 0.0
      %2575 = vmatprep.subr.mxu0 0.0
      %2576 = vmatpush2.msra.mxu0 0.0
      %2577 = vmatprep.subr.mxu0 0.0
      %2578 = vmatpush2.msra.mxu0 0.0
      %2579 = vmatprep.subr.mxu0 0.0
      %2580 = vmatpush2.msra.mxu0 0.0
      %2581 = vmatprep.subr.mxu0 0.0
      %2582 = vmatpush2.msra.mxu0 0.0
      %2583 = vmatprep.subr.mxu0 0.0
      %2584 = vmatpush2.msra.mxu0 0.0
      %2585 = vmatprep.subr.mxu0 0.0
      %2586 = vmatpush2.msra.mxu0 0.0
      %2587 = vmatprep.subr.mxu0 0.0
      %2588 = vmatpush2.msra.mxu0 0.0
      %2589 = vmatprep.subr.mxu0 0.0
      %2590 = vmatpush2.msra.mxu0 0.0
      %2591 = vmatprep.subr.mxu0 0.0
      %2592 = vmatpush2.msra.mxu0 0.0
      %2593 = vmatprep.subr.mxu0 0.0
      %2594 = vmatpush2.msra.mxu0 0.0
      %2595 = vmatprep.subr.mxu0 0.0
      %2596 = vmatpush2.msra.mxu0 0.0
      %2597 = vmatprep.mubr.f32.mxu0 0.0
      %2598 = vmatmul.mubr.f32.gmra.mxu0 %v2516
      %v2599 = vpop.f32.mrf.mxu0
      %v2600 = vadd.f32 %v2513, %v2599
      %v2601 = vpop.f32.mrf.mxu0
      %2602 = vmatprep.mubr.f32.mxu0 0.0
      %2603 = vmatmul.mubr.f32.gmra.mxu0 %v2519
      %v2604 = vpop.f32.mrf.mxu0
      %v2605 = vadd.f32 %v2513, %v2604
      %v2606 = vpop.f32.mrf.mxu0
      %2607 = vmatprep.mubr.f32.mxu0 0.0
      %2608 = vmatmul.mubr.f32.gmra.mxu0 %v2522
      %v2609 = vpop.f32.mrf.mxu0
      %v2610 = vadd.f32 %v2513, %v2609
      %v2611 = vpop.f32.mrf.mxu0
      %2612 = vmatprep.mubr.f32.mxu0 0.0
      %2613 = vmatmul.mubr.f32.gmra.mxu0 %v2525
      %v2614 = vpop.f32.mrf.mxu0
      %v2615 = vadd.f32 %v2513, %v2614
      %v2616 = vpop.f32.mrf.mxu0
      %2617 = vmatprep.mubr.f32.mxu0 0.0
      %2618 = vmatmul.mubr.f32.gmra.mxu0 %v2528
      %v2619 = vpop.f32.mrf.mxu0
      %v2620 = vadd.f32 %v2513, %v2619
      %v2621 = vpop.f32.mrf.mxu0
      %2622 = vmatprep.mubr.f32.mxu0 0.0
      %2623 = vmatmul.mubr.f32.gmra.mxu0 %v2531
      %v2624 = vpop.f32.mrf.mxu0
      %v2625 = vadd.f32 %v2513, %v2624
      %v2626 = vpop.f32.mrf.mxu0
      %2627 = vdwg.mxu0
      %2634 = vrot.lane.b32.xlu0 %v2600, 96
      %v2635 = vpop.permute.xlu0 %2634
      %2636 = vrot.lane.b32.xlu0 %v2605, 96
      %v2637 = vpop.permute.xlu0 %2636
      %2638 = vrot.lane.b32.xlu0 %v2610, 96
      %v2639 = vpop.permute.xlu0 %2638
      %2640 = vrot.lane.b32.xlu0 %v2615, 96
      %v2641 = vpop.permute.xlu0 %2640
      %2642 = vrot.lane.b32.xlu0 %v2620, 96
      %v2643 = vpop.permute.xlu0 %2642
      %2644 = vrot.lane.b32.xlu0 %v2625, 96
      %v2645 = vpop.permute.xlu0 %2644
      %v2646 = vsel %vm1210, %v2600, 0
      %v2648 = vsel %vm1210, %v2605, 0
      %v2650 = vsel %vm1210, %v2610, 0
      %v2652 = vsel %vm1210, %v2615, 0
      %v2654 = vsel %vm1210, %v2620, 0
      %v2656 = vsel %vm1210, %v2625, 0
      %v2658 = vsel %vm1210, %v2635, 0
      %v2660 = vsel %vm1210, %v2637, 0
      %v2662 = vsel %vm1210, %v2639, 0
      %v2664 = vsel %vm1210, %v2641, 0
      %v2666 = vsel %vm1210, %v2643, 0
      %v2668 = vsel %vm1210, %v2645, 0
      %2670 = vmatprep.subr.mxu0 0.0
      %2671 = vmatpush1.xpose.msra.mxu0 0.0
      %2672 = vmatprep.subr.mxu0 0.0
      %2673 = vmatpush1.xpose.msra.mxu0 0.0
      %2674 = vmatprep.subr.mxu0 0.0
      %2675 = vmatpush1.xpose.msra.mxu0 0.0
      %2676 = vmatprep.subr.mxu0 0.0
      %2677 = vmatpush1.xpose.msra.mxu0 0.0
      %2678 = vmatprep.subr.mxu0 0.0
      %2679 = vmatpush1.xpose.msra.mxu0 0.0
      %2680 = vmatprep.subr.mxu0 0.0
      %2681 = vmatpush1.xpose.msra.mxu0 0.0
      %2682 = vmatprep.subr.mxu0 0.0
      %2683 = vmatpush1.xpose.msra.mxu0 0.0
      %2684 = vmatprep.subr.mxu0 0.0
      %2685 = vmatpush1.xpose.msra.mxu0 0.0
      %2686 = vmatprep.subr.mxu0 0.0
      %2687 = vmatpush1.xpose.msra.mxu0 0.0
      %2688 = vmatprep.subr.mxu0 0.0
      %2689 = vmatpush1.xpose.msra.mxu0 0.0
      %2690 = vmatprep.subr.mxu0 0.0
      %2691 = vmatpush1.xpose.msra.mxu0 %v2668
      %2692 = vmatprep.subr.mxu0 0.0
      %2693 = vmatpush1.xpose.msra.mxu0 %v2666
      %2694 = vmatprep.subr.mxu0 0.0
      %2695 = vmatpush1.xpose.msra.mxu0 %v2664
      %2696 = vmatprep.subr.mxu0 0.0
      %2697 = vmatpush1.xpose.msra.mxu0 %v2662
      %2698 = vmatprep.subr.mxu0 0.0
      %2699 = vmatpush1.xpose.msra.mxu0 %v2660
      %2700 = vmatprep.subr.mxu0 0.0
      %2701 = vmatpush1.xpose.msra.mxu0 %v2658
      %2702 = vmatprep.subr.mxu0 0.0
      %2703 = vmatpush2.xpose.msra.mxu0 0.0
      %2704 = vmatprep.subr.mxu0 0.0
      %2705 = vmatpush2.xpose.msra.mxu0 0.0
      %2706 = vmatprep.subr.mxu0 0.0
      %2707 = vmatpush2.xpose.msra.mxu0 0.0
      %2708 = vmatprep.subr.mxu0 0.0
      %2709 = vmatpush2.xpose.msra.mxu0 0.0
      %2710 = vmatprep.subr.mxu0 0.0
      %2711 = vmatpush2.xpose.msra.mxu0 0.0
      %2712 = vmatprep.subr.mxu0 0.0
      %2713 = vmatpush2.xpose.msra.mxu0 0.0
      %2714 = vmatprep.subr.mxu0 0.0
      %2715 = vmatpush2.xpose.msra.mxu0 0.0
      %2716 = vmatprep.subr.mxu0 0.0
      %2717 = vmatpush2.xpose.msra.mxu0 0.0
      %2718 = vmatprep.subr.mxu0 0.0
      %2719 = vmatpush2.xpose.msra.mxu0 0.0
      %2720 = vmatprep.subr.mxu0 0.0
      %2721 = vmatpush2.xpose.msra.mxu0 0.0
      %2722 = vmatprep.subr.mxu0 0.0
      %2723 = vmatpush2.xpose.msra.mxu0 0.0
      %2724 = vmatprep.subr.mxu0 0.0
      %2725 = vmatpush2.xpose.msra.mxu0 0.0
      %2726 = vmatprep.subr.mxu0 0.0
      %2727 = vmatpush2.xpose.msra.mxu0 0.0
      %2728 = vmatprep.subr.mxu0 0.0
      %2729 = vmatpush2.xpose.msra.mxu0 0.0
      %2730 = vmatprep.subr.mxu0 0.0
      %2731 = vmatpush2.xpose.msra.mxu0 0.0
      %2732 = vmatprep.subr.mxu0 0.0
      %2733 = vmatpush2.xpose.msra.mxu0 0.0
      %2734 = vmatprep.mubr.f32.mxu0 0.0
      %2735 = vmatmul.mubr.f32.gmra.mxu0 %v2646
      %v2736 = vpop.f32.mrf.mxu0
      %v2737 = vadd.f32 0.0, %v2736
      %v2738 = vpop.f32.mrf.mxu0
      %2739 = vmatprep.mubr.f32.mxu0 0.0
      %2740 = vmatmul.mubr.f32.gmra.mxu0 %v2648
      %v2741 = vpop.f32.mrf.mxu0
      %v2742 = vadd.f32 0.0, %v2741
      %v2743 = vpop.f32.mrf.mxu0
      %2744 = vmatprep.mubr.f32.mxu0 0.0
      %2745 = vmatmul.mubr.f32.gmra.mxu0 %v2650
      %v2746 = vpop.f32.mrf.mxu0
      %v2747 = vadd.f32 0.0, %v2746
      %v2748 = vpop.f32.mrf.mxu0
      %2749 = vmatprep.mubr.f32.mxu0 0.0
      %2750 = vmatmul.mubr.f32.gmra.mxu0 %v2652
      %v2751 = vpop.f32.mrf.mxu0
      %v2752 = vadd.f32 0.0, %v2751
      %v2753 = vpop.f32.mrf.mxu0
      %2754 = vmatprep.mubr.f32.mxu0 0.0
      %2755 = vmatmul.mubr.f32.gmra.mxu0 %v2654
      %v2756 = vpop.f32.mrf.mxu0
      %v2757 = vadd.f32 0.0, %v2756
      %v2758 = vpop.f32.mrf.mxu0
      %2759 = vmatprep.mubr.f32.mxu0 0.0
      %2760 = vmatmul.mubr.f32.gmra.mxu0 %v2656
      %v2761 = vpop.f32.mrf.mxu0
      %v2762 = vadd.f32 0.0, %v2761
      %v2763 = vpop.f32.mrf.mxu0
      %2764 = vdwg.mxu0
      %v2765 = vsel %vm1330, %v2737, -inf
      %2766 = vmax.xlane.f32.xlu0 %v2765
      %v2767 = vpop.xlane.xlu0 %2766
      %v2768 = vsel %vm1330, %v2742, -inf
      %2769 = vmax.xlane.f32.xlu0 %v2768
      %v2770 = vpop.xlane.xlu0 %2769
      %v2771 = vsel %vm1330, %v2747, -inf
      %2772 = vmax.xlane.f32.xlu0 %v2771
      %v2773 = vpop.xlane.xlu0 %2772
      %v2774 = vsel %vm1330, %v2752, -inf
      %2775 = vmax.xlane.f32.xlu0 %v2774
      %v2776 = vpop.xlane.xlu0 %2775
      %v2777 = vsel %vm1330, %v2757, -inf
      %2778 = vmax.xlane.f32.xlu0 %v2777
      %v2779 = vpop.xlane.xlu0 %2778
      %v2780 = vsel %vm1330, %v2762, -inf
      %2781 = vmax.xlane.f32.xlu0 %v2780
      %v2782 = vpop.xlane.xlu0 %2781
      %v2783 = vsub.f32 %v2737, %v2767
      %v2784 = vsub.f32 %v2742, %v2770
      %v2785 = vsub.f32 %v2747, %v2773
      %v2786 = vsub.f32 %v2752, %v2776
      %v2787 = vsub.f32 %v2757, %v2779
      %v2788 = vsub.f32 %v2762, %v2782
      %v2789 = vmul.f32 %v2783, 1.442695
      %v2790 = vpow.pop %v2789
      %v2791 = vmul.f32 %v2784, 1.442695
      %v2792 = vpow.pop %v2791
      %v2793 = vmul.f32 %v2785, 1.442695
      %v2794 = vpow.pop %v2793
      %v2795 = vmul.f32 %v2786, 1.442695
      %v2796 = vpow.pop %v2795
      %v2797 = vmul.f32 %v2787, 1.442695
      %v2798 = vpow.pop %v2797
      %v2799 = vmul.f32 %v2788, 1.442695
      %v2800 = vpow.pop %v2799
      %v2801 = vsel %vm1330, %v2790, 0.0
      %2802 = vadd.xlane.f32.xlu0 %v2801
      %v2803 = vpop.xlane.xlu0 %2802
      %v2804 = vsel %vm1330, %v2792, 0.0
      %2805 = vadd.xlane.f32.xlu0 %v2804
      %v2806 = vpop.xlane.xlu0 %2805
      %v2807 = vsel %vm1330, %v2794, 0.0
      %2808 = vadd.xlane.f32.xlu0 %v2807
      %v2809 = vpop.xlane.xlu0 %2808
      %v2810 = vsel %vm1330, %v2796, 0.0
      %2811 = vadd.xlane.f32.xlu0 %v2810
      %v2812 = vpop.xlane.xlu0 %2811
      %v2813 = vsel %vm1330, %v2798, 0.0
      %2814 = vadd.xlane.f32.xlu0 %v2813
      %v2815 = vpop.xlane.xlu0 %2814
      %v2816 = vsel %vm1330, %v2800, 0.0
      %2817 = vadd.xlane.f32.xlu0 %v2816
      %v2818 = vpop.xlane.xlu0 %2817
      %v2819 = vrcp.pop %v2803
      %v2820 = vrcp.pop %v2806
      %v2821 = vrcp.pop %v2809
      %v2822 = vrcp.pop %v2812
      %v2823 = vrcp.pop %v2815
      %v2824 = vrcp.pop %v2818
      %v2825 = vmul.f32 %v2790, %v2819
      %v2826 = vmul.f32 %v2792, %v2820
      %v2827 = vmul.f32 %v2794, %v2821
      %v2828 = vmul.f32 %v2796, %v2822
      %v2829 = vmul.f32 %v2798, %v2823
      %v2830 = vmul.f32 %v2800, %v2824
      %2831 = vrot.lane.b32.xlu0 %v2600, 64
      %v2832 = vpop.permute.xlu0 %2831
      %2833 = vrot.lane.b32.xlu0 %v2605, 64
      %v2834 = vpop.permute.xlu0 %2833
      %2835 = vrot.lane.b32.xlu0 %v2610, 64
      %v2836 = vpop.permute.xlu0 %2835
      %2837 = vrot.lane.b32.xlu0 %v2615, 64
      %v2838 = vpop.permute.xlu0 %2837
      %2839 = vrot.lane.b32.xlu0 %v2620, 64
      %v2840 = vpop.permute.xlu0 %2839
      %2841 = vrot.lane.b32.xlu0 %v2625, 64
      %v2842 = vpop.permute.xlu0 %2841
      %v2850 = vsel %vm1330, %v2825, 0
      %v2853 = vsel %vm1330, %v2826, 0
      %v2856 = vsel %vm1330, %v2827, 0
      %v2859 = vsel %vm1330, %v2828, 0
      %v2862 = vsel %vm1330, %v2829, 0
      %v2865 = vsel %vm1330, %v2830, 0
      %2867 = vmatprep.subr.mxu0 0.0
      %2868 = vmatpush1.msra.mxu0 0.0
      %2869 = vmatprep.subr.mxu0 0.0
      %2870 = vmatpush1.msra.mxu0 0.0
      %2871 = vmatprep.subr.mxu0 0.0
      %2872 = vmatpush1.msra.mxu0 0.0
      %2873 = vmatprep.subr.mxu0 0.0
      %2874 = vmatpush1.msra.mxu0 0.0
      %2875 = vmatprep.subr.mxu0 0.0
      %2876 = vmatpush1.msra.mxu0 0.0
      %2877 = vmatprep.subr.mxu0 0.0
      %2878 = vmatpush1.msra.mxu0 0.0
      %2879 = vmatprep.subr.mxu0 0.0
      %2880 = vmatpush1.msra.mxu0 0.0
      %2881 = vmatprep.subr.mxu0 0.0
      %2882 = vmatpush1.msra.mxu0 0.0
      %2883 = vmatprep.subr.mxu0 0.0
      %2884 = vmatpush1.msra.mxu0 0.0
      %2885 = vmatprep.subr.mxu0 0.0
      %2886 = vmatpush1.msra.mxu0 0.0
      %2887 = vmatprep.subr.mxu0 0.0
      %2888 = vmatpush1.msra.mxu0 %v2842
      %2889 = vmatprep.subr.mxu0 0.0
      %2890 = vmatpush1.msra.mxu0 %v2840
      %2891 = vmatprep.subr.mxu0 0.0
      %2892 = vmatpush1.msra.mxu0 %v2838
      %2893 = vmatprep.subr.mxu0 0.0
      %2894 = vmatpush1.msra.mxu0 %v2836
      %2895 = vmatprep.subr.mxu0 0.0
      %2896 = vmatpush1.msra.mxu0 %v2834
      %2897 = vmatprep.subr.mxu0 0.0
      %2898 = vmatpush1.msra.mxu0 %v2832
      %2899 = vmatprep.subr.mxu0 0.0
      %2900 = vmatpush2.msra.mxu0 0.0
      %2901 = vmatprep.subr.mxu0 0.0
      %2902 = vmatpush2.msra.mxu0 0.0
      %2903 = vmatprep.subr.mxu0 0.0
      %2904 = vmatpush2.msra.mxu0 0.0
      %2905 = vmatprep.subr.mxu0 0.0
      %2906 = vmatpush2.msra.mxu0 0.0
      %2907 = vmatprep.subr.mxu0 0.0
      %2908 = vmatpush2.msra.mxu0 0.0
      %2909 = vmatprep.subr.mxu0 0.0
      %2910 = vmatpush2.msra.mxu0 0.0
      %2911 = vmatprep.subr.mxu0 0.0
      %2912 = vmatpush2.msra.mxu0 0.0
      %2913 = vmatprep.subr.mxu0 0.0
      %2914 = vmatpush2.msra.mxu0 0.0
      %2915 = vmatprep.subr.mxu0 0.0
      %2916 = vmatpush2.msra.mxu0 0.0
      %2917 = vmatprep.subr.mxu0 0.0
      %2918 = vmatpush2.msra.mxu0 0.0
      %2919 = vmatprep.subr.mxu0 0.0
      %2920 = vmatpush2.msra.mxu0 0.0
      %2921 = vmatprep.subr.mxu0 0.0
      %2922 = vmatpush2.msra.mxu0 0.0
      %2923 = vmatprep.subr.mxu0 0.0
      %2924 = vmatpush2.msra.mxu0 0.0
      %2925 = vmatprep.subr.mxu0 0.0
      %2926 = vmatpush2.msra.mxu0 0.0
      %2927 = vmatprep.subr.mxu0 0.0
      %2928 = vmatpush2.msra.mxu0 0.0
      %2929 = vmatprep.subr.mxu0 0.0
      %2930 = vmatpush2.msra.mxu0 0.0
      %2931 = vmatprep.mubr.f32.mxu0 0.0
      %2932 = vmatmul.mubr.f32.gmra.mxu0 %v2850
      %v2933 = vpop.f32.mrf.mxu0
      %v2934 = vadd.f32 0.0, %v2933
      %v2935 = vpop.f32.mrf.mxu0
      %2936 = vmatprep.mubr.f32.mxu0 0.0
      %2937 = vmatmul.mubr.f32.gmra.mxu0 %v2853
      %v2938 = vpop.f32.mrf.mxu0
      %v2939 = vadd.f32 0.0, %v2938
      %v2940 = vpop.f32.mrf.mxu0
      %2941 = vmatprep.mubr.f32.mxu0 0.0
      %2942 = vmatmul.mubr.f32.gmra.mxu0 %v2856
      %v2943 = vpop.f32.mrf.mxu0
      %v2944 = vadd.f32 0.0, %v2943
      %v2945 = vpop.f32.mrf.mxu0
      %2946 = vmatprep.mubr.f32.mxu0 0.0
      %2947 = vmatmul.mubr.f32.gmra.mxu0 %v2859
      %v2948 = vpop.f32.mrf.mxu0
      %v2949 = vadd.f32 0.0, %v2948
      %v2950 = vpop.f32.mrf.mxu0
      %2951 = vmatprep.mubr.f32.mxu0 0.0
      %2952 = vmatmul.mubr.f32.gmra.mxu0 %v2862
      %v2953 = vpop.f32.mrf.mxu0
      %v2954 = vadd.f32 0.0, %v2953
      %v2955 = vpop.f32.mrf.mxu0
      %2956 = vmatprep.mubr.f32.mxu0 0.0
      %2957 = vmatmul.mubr.f32.gmra.mxu0 %v2865
      %v2958 = vpop.f32.mrf.mxu0
      %v2959 = vadd.f32 0.0, %v2958
      %v2960 = vpop.f32.mrf.mxu0
      %2961 = vdwg.mxu0
      %2962 = vrot.lane.b32.xlu0 %v2600, 112
      %v2963 = vpop.permute.xlu0 %2962
      %2964 = vrot.lane.b32.xlu0 %v2605, 112
      %v2965 = vpop.permute.xlu0 %2964
      %2966 = vrot.lane.b32.xlu0 %v2610, 112
      %v2967 = vpop.permute.xlu0 %2966
      %2968 = vrot.lane.b32.xlu0 %v2615, 112
      %v2969 = vpop.permute.xlu0 %2968
      %2970 = vrot.lane.b32.xlu0 %v2620, 112
      %v2971 = vpop.permute.xlu0 %2970
      %2972 = vrot.lane.b32.xlu0 %v2625, 112
      %v2973 = vpop.permute.xlu0 %2972
      %2974 = vrot.lane.b32.xlu0 %v2600, 80
      %v2975 = vpop.permute.xlu0 %2974
      %2976 = vrot.lane.b32.xlu0 %v2605, 80
      %v2977 = vpop.permute.xlu0 %2976
      %2978 = vrot.lane.b32.xlu0 %v2610, 80
      %v2979 = vpop.permute.xlu0 %2978
      %2980 = vrot.lane.b32.xlu0 %v2615, 80
      %v2981 = vpop.permute.xlu0 %2980
      %2982 = vrot.lane.b32.xlu0 %v2620, 80
      %v2983 = vpop.permute.xlu0 %2982
      %2984 = vrot.lane.b32.xlu0 %v2625, 80
      %v2985 = vpop.permute.xlu0 %2984
      %v2986 = vsel %vm1210, %v2963, 0
      %v2988 = vsel %vm1210, %v2965, 0
      %v2990 = vsel %vm1210, %v2967, 0
      %v2992 = vsel %vm1210, %v2969, 0
      %v2994 = vsel %vm1210, %v2971, 0
      %v2996 = vsel %vm1210, %v2973, 0
      %v2998 = vsel %vm1210, %v2975, 0
      %v3000 = vsel %vm1210, %v2977, 0
      %v3002 = vsel %vm1210, %v2979, 0
      %v3004 = vsel %vm1210, %v2981, 0
      %v3006 = vsel %vm1210, %v2983, 0
      %v3008 = vsel %vm1210, %v2985, 0
      %3010 = vmatprep.subr.mxu0 0.0
      %3011 = vmatpush1.xpose.msra.mxu0 0.0
      %3012 = vmatprep.subr.mxu0 0.0
      %3013 = vmatpush1.xpose.msra.mxu0 0.0
      %3014 = vmatprep.subr.mxu0 0.0
      %3015 = vmatpush1.xpose.msra.mxu0 0.0
      %3016 = vmatprep.subr.mxu0 0.0
      %3017 = vmatpush1.xpose.msra.mxu0 0.0
      %3018 = vmatprep.subr.mxu0 0.0
      %3019 = vmatpush1.xpose.msra.mxu0 0.0
      %3020 = vmatprep.subr.mxu0 0.0
      %3021 = vmatpush1.xpose.msra.mxu0 0.0
      %3022 = vmatprep.subr.mxu0 0.0
      %3023 = vmatpush1.xpose.msra.mxu0 0.0
      %3024 = vmatprep.subr.mxu0 0.0
      %3025 = vmatpush1.xpose.msra.mxu0 0.0
      %3026 = vmatprep.subr.mxu0 0.0
      %3027 = vmatpush1.xpose.msra.mxu0 0.0
      %3028 = vmatprep.subr.mxu0 0.0
      %3029 = vmatpush1.xpose.msra.mxu0 0.0
      %3030 = vmatprep.subr.mxu0 0.0
      %3031 = vmatpush1.xpose.msra.mxu0 %v3008
      %3032 = vmatprep.subr.mxu0 0.0
      %3033 = vmatpush1.xpose.msra.mxu0 %v3006
      %3034 = vmatprep.subr.mxu0 0.0
      %3035 = vmatpush1.xpose.msra.mxu0 %v3004
      %3036 = vmatprep.subr.mxu0 0.0
      %3037 = vmatpush1.xpose.msra.mxu0 %v3002
      %3038 = vmatprep.subr.mxu0 0.0
      %3039 = vmatpush1.xpose.msra.mxu0 %v3000
      %3040 = vmatprep.subr.mxu0 0.0
      %3041 = vmatpush1.xpose.msra.mxu0 %v2998
      %3042 = vmatprep.subr.mxu0 0.0
      %3043 = vmatpush2.xpose.msra.mxu0 0.0
      %3044 = vmatprep.subr.mxu0 0.0
      %3045 = vmatpush2.xpose.msra.mxu0 0.0
      %3046 = vmatprep.subr.mxu0 0.0
      %3047 = vmatpush2.xpose.msra.mxu0 0.0
      %3048 = vmatprep.subr.mxu0 0.0
      %3049 = vmatpush2.xpose.msra.mxu0 0.0
      %3050 = vmatprep.subr.mxu0 0.0
      %3051 = vmatpush2.xpose.msra.mxu0 0.0
      %3052 = vmatprep.subr.mxu0 0.0
      %3053 = vmatpush2.xpose.msra.mxu0 0.0
      %3054 = vmatprep.subr.mxu0 0.0
      %3055 = vmatpush2.xpose.msra.mxu0 0.0
      %3056 = vmatprep.subr.mxu0 0.0
      %3057 = vmatpush2.xpose.msra.mxu0 0.0
      %3058 = vmatprep.subr.mxu0 0.0
      %3059 = vmatpush2.xpose.msra.mxu0 0.0
      %3060 = vmatprep.subr.mxu0 0.0
      %3061 = vmatpush2.xpose.msra.mxu0 0.0
      %3062 = vmatprep.subr.mxu0 0.0
      %3063 = vmatpush2.xpose.msra.mxu0 0.0
      %3064 = vmatprep.subr.mxu0 0.0
      %3065 = vmatpush2.xpose.msra.mxu0 0.0
      %3066 = vmatprep.subr.mxu0 0.0
      %3067 = vmatpush2.xpose.msra.mxu0 0.0
      %3068 = vmatprep.subr.mxu0 0.0
      %3069 = vmatpush2.xpose.msra.mxu0 0.0
      %3070 = vmatprep.subr.mxu0 0.0
      %3071 = vmatpush2.xpose.msra.mxu0 0.0
      %3072 = vmatprep.subr.mxu0 0.0
      %3073 = vmatpush2.xpose.msra.mxu0 0.0
      %3074 = vmatprep.mubr.f32.mxu0 0.0
      %3075 = vmatmul.mubr.f32.gmra.mxu0 %v2986
      %v3076 = vpop.f32.mrf.mxu0
      %v3077 = vadd.f32 0.0, %v3076
      %v3078 = vpop.f32.mrf.mxu0
      %3079 = vmatprep.mubr.f32.mxu0 0.0
      %3080 = vmatmul.mubr.f32.gmra.mxu0 %v2988
      %v3081 = vpop.f32.mrf.mxu0
      %v3082 = vadd.f32 0.0, %v3081
      %v3083 = vpop.f32.mrf.mxu0
      %3084 = vmatprep.mubr.f32.mxu0 0.0
      %3085 = vmatmul.mubr.f32.gmra.mxu0 %v2990
      %v3086 = vpop.f32.mrf.mxu0
      %v3087 = vadd.f32 0.0, %v3086
      %v3088 = vpop.f32.mrf.mxu0
      %3089 = vmatprep.mubr.f32.mxu0 0.0
      %3090 = vmatmul.mubr.f32.gmra.mxu0 %v2992
      %v3091 = vpop.f32.mrf.mxu0
      %v3092 = vadd.f32 0.0, %v3091
      %v3093 = vpop.f32.mrf.mxu0
      %3094 = vmatprep.mubr.f32.mxu0 0.0
      %3095 = vmatmul.mubr.f32.gmra.mxu0 %v2994
      %v3096 = vpop.f32.mrf.mxu0
      %v3097 = vadd.f32 0.0, %v3096
      %v3098 = vpop.f32.mrf.mxu0
      %3099 = vmatprep.mubr.f32.mxu0 0.0
      %3100 = vmatmul.mubr.f32.gmra.mxu0 %v2996
      %v3101 = vpop.f32.mrf.mxu0
      %v3102 = vadd.f32 0.0, %v3101
      %v3103 = vpop.f32.mrf.mxu0
      %3104 = vdwg.mxu0
      %v3105 = vsel %vm1330, %v3077, -inf
      %3106 = vmax.xlane.f32.xlu0 %v3105
      %v3107 = vpop.xlane.xlu0 %3106
      %v3108 = vsel %vm1330, %v3082, -inf
      %3109 = vmax.xlane.f32.xlu0 %v3108
      %v3110 = vpop.xlane.xlu0 %3109
      %v3111 = vsel %vm1330, %v3087, -inf
      %3112 = vmax.xlane.f32.xlu0 %v3111
      %v3113 = vpop.xlane.xlu0 %3112
      %v3114 = vsel %vm1330, %v3092, -inf
      %3115 = vmax.xlane.f32.xlu0 %v3114
      %v3116 = vpop.xlane.xlu0 %3115
      %v3117 = vsel %vm1330, %v3097, -inf
      %3118 = vmax.xlane.f32.xlu0 %v3117
      %v3119 = vpop.xlane.xlu0 %3118
      %v3120 = vsel %vm1330, %v3102, -inf
      %3121 = vmax.xlane.f32.xlu0 %v3120
      %v3122 = vpop.xlane.xlu0 %3121
      %v3123 = vsub.f32 %v3077, %v3107
      %v3124 = vsub.f32 %v3082, %v3110
      %v3125 = vsub.f32 %v3087, %v3113
      %v3126 = vsub.f32 %v3092, %v3116
      %v3127 = vsub.f32 %v3097, %v3119
      %v3128 = vsub.f32 %v3102, %v3122
      %v3129 = vmul.f32 %v3123, 1.442695
      %v3130 = vpow.pop %v3129
      %v3131 = vmul.f32 %v3124, 1.442695
      %v3132 = vpow.pop %v3131
      %v3133 = vmul.f32 %v3125, 1.442695
      %v3134 = vpow.pop %v3133
      %v3135 = vmul.f32 %v3126, 1.442695
      %v3136 = vpow.pop %v3135
      %v3137 = vmul.f32 %v3127, 1.442695
      %v3138 = vpow.pop %v3137
      %v3139 = vmul.f32 %v3128, 1.442695
      %v3140 = vpow.pop %v3139
      %v3141 = vsel %vm1330, %v3130, 0.0
      %3142 = vadd.xlane.f32.xlu0 %v3141
      %v3143 = vpop.xlane.xlu0 %3142
      %v3144 = vsel %vm1330, %v3132, 0.0
      %3145 = vadd.xlane.f32.xlu0 %v3144
      %v3146 = vpop.xlane.xlu0 %3145
      %v3147 = vsel %vm1330, %v3134, 0.0
      %3148 = vadd.xlane.f32.xlu0 %v3147
      %v3149 = vpop.xlane.xlu0 %3148
      %v3150 = vsel %vm1330, %v3136, 0.0
      %3151 = vadd.xlane.f32.xlu0 %v3150
      %v3152 = vpop.xlane.xlu0 %3151
      %v3153 = vsel %vm1330, %v3138, 0.0
      %3154 = vadd.xlane.f32.xlu0 %v3153
      %v3155 = vpop.xlane.xlu0 %3154
      %v3156 = vsel %vm1330, %v3140, 0.0
      %3157 = vadd.xlane.f32.xlu0 %v3156
      %v3158 = vpop.xlane.xlu0 %3157
      %v3159 = vrcp.pop %v3143
      %v3160 = vrcp.pop %v3146
      %v3161 = vrcp.pop %v3149
      %v3162 = vrcp.pop %v3152
      %v3163 = vrcp.pop %v3155
      %v3164 = vrcp.pop %v3158
      %v3165 = vmul.f32 %v3130, %v3159
      %v3166 = vmul.f32 %v3132, %v3160
      %v3167 = vmul.f32 %v3134, %v3161
      %v3168 = vmul.f32 %v3136, %v3162
      %v3169 = vmul.f32 %v3138, %v3163
      %v3170 = vmul.f32 %v3140, %v3164
      %3171 = vrot.lane.b32.xlu0 %v2600, 48
      %v3172 = vpop.permute.xlu0 %3171
      %3173 = vrot.lane.b32.xlu0 %v2605, 48
      %v3174 = vpop.permute.xlu0 %3173
      %3175 = vrot.lane.b32.xlu0 %v2610, 48
      %v3176 = vpop.permute.xlu0 %3175
      %3177 = vrot.lane.b32.xlu0 %v2615, 48
      %v3178 = vpop.permute.xlu0 %3177
      %3179 = vrot.lane.b32.xlu0 %v2620, 48
      %v3180 = vpop.permute.xlu0 %3179
      %3181 = vrot.lane.b32.xlu0 %v2625, 48
      %v3182 = vpop.permute.xlu0 %3181
      %v3190 = vsel %vm1330, %v3165, 0
      %v3193 = vsel %vm1330, %v3166, 0
      %v3196 = vsel %vm1330, %v3167, 0
      %v3199 = vsel %vm1330, %v3168, 0
      %v3202 = vsel %vm1330, %v3169, 0
      %v3205 = vsel %vm1330, %v3170, 0
      %3207 = vmatprep.subr.mxu0 0.0
      %3208 = vmatpush1.msra.mxu0 0.0
      %3209 = vmatprep.subr.mxu0 0.0
      %3210 = vmatpush1.msra.mxu0 0.0
      %3211 = vmatprep.subr.mxu0 0.0
      %3212 = vmatpush1.msra.mxu0 0.0
      %3213 = vmatprep.subr.mxu0 0.0
      %3214 = vmatpush1.msra.mxu0 0.0
      %3215 = vmatprep.subr.mxu0 0.0
      %3216 = vmatpush1.msra.mxu0 0.0
      %3217 = vmatprep.subr.mxu0 0.0
      %3218 = vmatpush1.msra.mxu0 0.0
      %3219 = vmatprep.subr.mxu0 0.0
      %3220 = vmatpush1.msra.mxu0 0.0
      %3221 = vmatprep.subr.mxu0 0.0
      %3222 = vmatpush1.msra.mxu0 0.0
      %3223 = vmatprep.subr.mxu0 0.0
      %3224 = vmatpush1.msra.mxu0 0.0
      %3225 = vmatprep.subr.mxu0 0.0
      %3226 = vmatpush1.msra.mxu0 0.0
      %3227 = vmatprep.subr.mxu0 0.0
      %3228 = vmatpush1.msra.mxu0 %v3182
      %3229 = vmatprep.subr.mxu0 0.0
      %3230 = vmatpush1.msra.mxu0 %v3180
      %3231 = vmatprep.subr.mxu0 0.0
      %3232 = vmatpush1.msra.mxu0 %v3178
      %3233 = vmatprep.subr.mxu0 0.0
      %3234 = vmatpush1.msra.mxu0 %v3176
      %3235 = vmatprep.subr.mxu0 0.0
      %3236 = vmatpush1.msra.mxu0 %v3174
      %3237 = vmatprep.subr.mxu0 0.0
      %3238 = vmatpush1.msra.mxu0 %v3172
      %3239 = vmatprep.subr.mxu0 0.0
      %3240 = vmatpush2.msra.mxu0 0.0
      %3241 = vmatprep.subr.mxu0 0.0
      %3242 = vmatpush2.msra.mxu0 0.0
      %3243 = vmatprep.subr.mxu0 0.0
      %3244 = vmatpush2.msra.mxu0 0.0
      %3245 = vmatprep.subr.mxu0 0.0
      %3246 = vmatpush2.msra.mxu0 0.0
      %3247 = vmatprep.subr.mxu0 0.0
      %3248 = vmatpush2.msra.mxu0 0.0
      %3249 = vmatprep.subr.mxu0 0.0
      %3250 = vmatpush2.msra.mxu0 0.0
      %3251 = vmatprep.subr.mxu0 0.0
      %3252 = vmatpush2.msra.mxu0 0.0
      %3253 = vmatprep.subr.mxu0 0.0
      %3254 = vmatpush2.msra.mxu0 0.0
      %3255 = vmatprep.subr.mxu0 0.0
      %3256 = vmatpush2.msra.mxu0 0.0
      %3257 = vmatprep.subr.mxu0 0.0
      %3258 = vmatpush2.msra.mxu0 0.0
      %3259 = vmatprep.subr.mxu0 0.0
      %3260 = vmatpush2.msra.mxu0 0.0
      %3261 = vmatprep.subr.mxu0 0.0
      %3262 = vmatpush2.msra.mxu0 0.0
      %3263 = vmatprep.subr.mxu0 0.0
      %3264 = vmatpush2.msra.mxu0 0.0
      %3265 = vmatprep.subr.mxu0 0.0
      %3266 = vmatpush2.msra.mxu0 0.0
      %3267 = vmatprep.subr.mxu0 0.0
      %3268 = vmatpush2.msra.mxu0 0.0
      %3269 = vmatprep.subr.mxu0 0.0
      %3270 = vmatpush2.msra.mxu0 0.0
      %3271 = vmatprep.mubr.f32.mxu0 0.0
      %3272 = vmatmul.mubr.f32.gmra.mxu0 %v3190
      %v3273 = vpop.f32.mrf.mxu0
      %v3274 = vadd.f32 0.0, %v3273
      %v3275 = vpop.f32.mrf.mxu0
      %3276 = vmatprep.mubr.f32.mxu0 0.0
      %3277 = vmatmul.mubr.f32.gmra.mxu0 %v3193
      %v3278 = vpop.f32.mrf.mxu0
      %v3279 = vadd.f32 0.0, %v3278
      %v3280 = vpop.f32.mrf.mxu0
      %3281 = vmatprep.mubr.f32.mxu0 0.0
      %3282 = vmatmul.mubr.f32.gmra.mxu0 %v3196
      %v3283 = vpop.f32.mrf.mxu0
      %v3284 = vadd.f32 0.0, %v3283
      %v3285 = vpop.f32.mrf.mxu0
      %3286 = vmatprep.mubr.f32.mxu0 0.0
      %3287 = vmatmul.mubr.f32.gmra.mxu0 %v3199
      %v3288 = vpop.f32.mrf.mxu0
      %v3289 = vadd.f32 0.0, %v3288
      %v3290 = vpop.f32.mrf.mxu0
      %3291 = vmatprep.mubr.f32.mxu0 0.0
      %3292 = vmatmul.mubr.f32.gmra.mxu0 %v3202
      %v3293 = vpop.f32.mrf.mxu0
      %v3294 = vadd.f32 0.0, %v3293
      %v3295 = vpop.f32.mrf.mxu0
      %3296 = vmatprep.mubr.f32.mxu0 0.0
      %3297 = vmatmul.mubr.f32.gmra.mxu0 %v3205
      %v3298 = vpop.f32.mrf.mxu0
      %v3299 = vadd.f32 0.0, %v3298
      %v3300 = vpop.f32.mrf.mxu0
      %3301 = vdwg.mxu0
      %3308 = vrot.lane.b32.xlu0 %v3274, 16
      %v3309 = vpop.permute.xlu0 %3308
      %3310 = vrot.lane.b32.xlu0 %v3279, 16
      %v3311 = vpop.permute.xlu0 %3310
      %3312 = vrot.lane.b32.xlu0 %v3284, 16
      %v3313 = vpop.permute.xlu0 %3312
      %3314 = vrot.lane.b32.xlu0 %v3289, 16
      %v3315 = vpop.permute.xlu0 %3314
      %3316 = vrot.lane.b32.xlu0 %v3294, 16
      %v3317 = vpop.permute.xlu0 %3316
      %3318 = vrot.lane.b32.xlu0 %v3299, 16
      %v3319 = vpop.permute.xlu0 %3318
      %v3326 = vsel %vm1210, %v2934, %v3309
      %v3327 = vsel %vm1210, %v2939, %v3311
      %v3328 = vsel %vm1210, %v2944, %v3313
      %v3329 = vsel %vm1210, %v2949, %v3315
      %v3330 = vsel %vm1210, %v2954, %v3317
      %v3331 = vsel %vm1210, %v2959, %v3319
      %s3332 = scalar_lea.vmem %s9, 32
      %v3333 = vld [vmem:[%s3332] sm:$0xff]
      %v3334 = vld [vmem:[%s3332 + $0x8] sm:$0xff]
      %v3335 = vld [vmem:[%s3332 + $0x10] sm:$0xff]
      %v3336 = vld [vmem:[%s3332 + $0x18] sm:$0xff]
      %s3337 = scalar_lea.vmem %s10, 1
      %v3338 = vld [vmem:[%s3337] sm:$0x1]
      %v3340 = vlaneseq
      %v3341 = vshrl.u32 %v3340, 7
      %v3342 = vsub.s32 0, %v3341
      %v3343 = vrot.slane %v3338, %v3342
      %v3346 = vsel %vm930, %v3326, 0
      %v3349 = vsel %vm930, %v3327, 0
      %v3352 = vsel %vm930, %v3328, 0
      %v3355 = vsel %vm930, %v3329, 0
      %v3358 = vsel %vm930, %v3330, 0
      %v3361 = vsel %vm930, %v3331, 0
      %3363 = vmatprep.subr.mxu0 0.0
      %3364 = vmatpush1.msra.mxu0 0.0
      %3365 = vmatprep.subr.mxu0 0.0
      %3366 = vmatpush1.msra.mxu0 0.0
      %3367 = vmatprep.subr.mxu0 0.0
      %3368 = vmatpush1.msra.mxu0 0.0
      %3369 = vmatprep.subr.mxu0 0.0
      %3370 = vmatpush1.msra.mxu0 0.0
      %3371 = vmatprep.subr.mxu0 0.0
      %3372 = vmatpush1.msra.mxu0 0.0
      %3373 = vmatprep.subr.mxu0 0.0
      %3374 = vmatpush1.msra.mxu0 0.0
      %3375 = vmatprep.subr.mxu0 0.0
      %3376 = vmatpush1.msra.mxu0 0.0
      %3377 = vmatprep.subr.mxu0 0.0
      %3378 = vmatpush1.msra.mxu0 0.0
      %3379 = vmatprep.subr.mxu0 0.0
      %3380 = vmatpush1.msra.mxu0 0.0
      %3381 = vmatprep.subr.mxu0 0.0
      %3382 = vmatpush1.msra.mxu0 0.0
      %3383 = vmatprep.subr.mxu0 0.0
      %3384 = vmatpush1.msra.mxu0 0.0
      %3385 = vmatprep.subr.mxu0 0.0
      %3386 = vmatpush1.msra.mxu0 0.0
      %3387 = vmatprep.subr.mxu0 0.0
      %3388 = vmatpush1.msra.mxu0 %v3336
      %3389 = vmatprep.subr.mxu0 0.0
      %3390 = vmatpush1.msra.mxu0 %v3335
      %3391 = vmatprep.subr.mxu0 0.0
      %3392 = vmatpush1.msra.mxu0 %v3334
      %3393 = vmatprep.subr.mxu0 0.0
      %3394 = vmatpush1.msra.mxu0 %v3333
      %3395 = vmatprep.subr.mxu0 0.0
      %3396 = vmatpush2.msra.mxu0 0.0
      %3397 = vmatprep.subr.mxu0 0.0
      %3398 = vmatpush2.msra.mxu0 0.0
      %3399 = vmatprep.subr.mxu0 0.0
      %3400 = vmatpush2.msra.mxu0 0.0
      %3401 = vmatprep.subr.mxu0 0.0
      %3402 = vmatpush2.msra.mxu0 0.0
      %3403 = vmatprep.subr.mxu0 0.0
      %3404 = vmatpush2.msra.mxu0 0.0
      %3405 = vmatprep.subr.mxu0 0.0
      %3406 = vmatpush2.msra.mxu0 0.0
      %3407 = vmatprep.subr.mxu0 0.0
      %3408 = vmatpush2.msra.mxu0 0.0
      %3409 = vmatprep.subr.mxu0 0.0
      %3410 = vmatpush2.msra.mxu0 0.0
      %3411 = vmatprep.subr.mxu0 0.0
      %3412 = vmatpush2.msra.mxu0 0.0
      %3413 = vmatprep.subr.mxu0 0.0
      %3414 = vmatpush2.msra.mxu0 0.0
      %3415 = vmatprep.subr.mxu0 0.0
      %3416 = vmatpush2.msra.mxu0 0.0
      %3417 = vmatprep.subr.mxu0 0.0
      %3418 = vmatpush2.msra.mxu0 0.0
      %3419 = vmatprep.subr.mxu0 0.0
      %3420 = vmatpush2.msra.mxu0 0.0
      %3421 = vmatprep.subr.mxu0 0.0
      %3422 = vmatpush2.msra.mxu0 0.0
      %3423 = vmatprep.subr.mxu0 0.0
      %3424 = vmatpush2.msra.mxu0 0.0
      %3425 = vmatprep.subr.mxu0 0.0
      %3426 = vmatpush2.msra.mxu0 0.0
      %3427 = vmatprep.mubr.f32.mxu0 0.0
      %3428 = vmatmul.mubr.f32.gmra.mxu0 %v3346
      %v3429 = vpop.f32.mrf.mxu0
      %v3430 = vadd.f32 %v3343, %v3429
      %v3431 = vpop.f32.mrf.mxu0
      %3432 = vmatprep.mubr.f32.mxu0 0.0
      %3433 = vmatmul.mubr.f32.gmra.mxu0 %v3349
      %v3434 = vpop.f32.mrf.mxu0
      %v3435 = vadd.f32 %v3343, %v3434
      %v3436 = vpop.f32.mrf.mxu0
      %3437 = vmatprep.mubr.f32.mxu0 0.0
      %3438 = vmatmul.mubr.f32.gmra.mxu0 %v3352
      %v3439 = vpop.f32.mrf.mxu0
      %v3440 = vadd.f32 %v3343, %v3439
      %v3441 = vpop.f32.mrf.mxu0
      %3442 = vmatprep.mubr.f32.mxu0 0.0
      %3443 = vmatmul.mubr.f32.gmra.mxu0 %v3355
      %v3444 = vpop.f32.mrf.mxu0
      %v3445 = vadd.f32 %v3343, %v3444
      %v3446 = vpop.f32.mrf.mxu0
      %3447 = vmatprep.mubr.f32.mxu0 0.0
      %3448 = vmatmul.mubr.f32.gmra.mxu0 %v3358
      %v3449 = vpop.f32.mrf.mxu0
      %v3450 = vadd.f32 %v3343, %v3449
      %v3451 = vpop.f32.mrf.mxu0
      %3452 = vmatprep.mubr.f32.mxu0 0.0
      %3453 = vmatmul.mubr.f32.gmra.mxu0 %v3361
      %v3454 = vpop.f32.mrf.mxu0
      %v3455 = vadd.f32 %v3343, %v3454
      %v3456 = vpop.f32.mrf.mxu0
      %3457 = vdwg.mxu0
      %v3458 = vadd.f32 %v2496, %v3430
      %v3459 = vadd.f32 %v2497, %v3435
      %v3460 = vadd.f32 %v2498, %v3440
      %v3461 = vadd.f32 %v2499, %v3445
      %v3462 = vadd.f32 %v2500, %v3450
      %v3463 = vadd.f32 %v2501, %v3455
      %s3464 = scalar_lea.vmem %s11, 1
      %v3465 = vld [vmem:[%s3464] sm:$0x1]
      %s3466 = scalar_lea.vmem %s12, 1
      %v3467 = vld [vmem:[%s3466] sm:$0x1]
      %v3468 = vsel %vm930, %v3458, 0.0
      %3469 = vadd.xlane.f32.xlu0 %v3468
      %v3470 = vpop.xlane.xlu0 %3469
      %v3471 = vsel %vm930, %v3459, 0.0
      %3472 = vadd.xlane.f32.xlu0 %v3471
      %v3473 = vpop.xlane.xlu0 %3472
      %v3474 = vsel %vm930, %v3460, 0.0
      %3475 = vadd.xlane.f32.xlu0 %v3474
      %v3476 = vpop.xlane.xlu0 %3475
      %v3477 = vsel %vm930, %v3461, 0.0
      %3478 = vadd.xlane.f32.xlu0 %v3477
      %v3479 = vpop.xlane.xlu0 %3478
      %v3480 = vsel %vm930, %v3462, 0.0
      %3481 = vadd.xlane.f32.xlu0 %v3480
      %v3482 = vpop.xlane.xlu0 %3481
      %v3483 = vsel %vm930, %v3463, 0.0
      %3484 = vadd.xlane.f32.xlu0 %v3483
      %v3485 = vpop.xlane.xlu0 %3484
      %v3486 = vmul.f32 %v3470, %v2048
      %v3487 = vmul.f32 %v3473, %v2048
      %v3488 = vmul.f32 %v3476, %v2048
      %v3489 = vmul.f32 %v3479, %v2048
      %v3490 = vmul.f32 %v3482, %v2048
      %v3491 = vmul.f32 %v3485, %v2048
      %v3492 = vsub.f32 %v3458, %v3486
      %v3493 = vsub.f32 %v3459, %v3487
      %v3494 = vsub.f32 %v3460, %v3488
      %v3495 = vsub.f32 %v3461, %v3489
      %v3496 = vsub.f32 %v3462, %v3490
      %v3497 = vsub.f32 %v3463, %v3491
      %v3498 = vmul.f32 %v3492, %v3492
      %v3499 = vmul.f32 %v3493, %v3493
      %v3500 = vmul.f32 %v3494, %v3494
      %v3501 = vmul.f32 %v3495, %v3495
      %v3502 = vmul.f32 %v3496, %v3496
      %v3503 = vmul.f32 %v3497, %v3497
      %v3504 = vsel %vm930, %v3498, 0.0
      %3505 = vadd.xlane.f32.xlu0 %v3504
      %v3506 = vpop.xlane.xlu0 %3505
      %v3507 = vsel %vm930, %v3499, 0.0
      %3508 = vadd.xlane.f32.xlu0 %v3507
      %v3509 = vpop.xlane.xlu0 %3508
      %v3510 = vsel %vm930, %v3500, 0.0
      %3511 = vadd.xlane.f32.xlu0 %v3510
      %v3512 = vpop.xlane.xlu0 %3511
      %v3513 = vsel %vm930, %v3501, 0.0
      %3514 = vadd.xlane.f32.xlu0 %v3513
      %v3515 = vpop.xlane.xlu0 %3514
      %v3516 = vsel %vm930, %v3502, 0.0
      %3517 = vadd.xlane.f32.xlu0 %v3516
      %v3518 = vpop.xlane.xlu0 %3517
      %v3519 = vsel %vm930, %v3503, 0.0
      %3520 = vadd.xlane.f32.xlu0 %v3519
      %v3521 = vpop.xlane.xlu0 %3520
      %v3522 = vmul.f32 %v3506, %v2048
      %v3523 = vmul.f32 %v3509, %v2048
      %v3524 = vmul.f32 %v3512, %v2048
      %v3525 = vmul.f32 %v3515, %v2048
      %v3526 = vmul.f32 %v3518, %v2048
      %v3527 = vmul.f32 %v3521, %v2048
      %v3528 = vadd.f32 %v3522, 1e-05
      %v3529 = vadd.f32 %v3523, 1e-05
      %v3530 = vadd.f32 %v3524, 1e-05
      %v3531 = vadd.f32 %v3525, 1e-05
      %v3532 = vadd.f32 %v3526, 1e-05
      %v3533 = vadd.f32 %v3527, 1e-05
      %v3534 = vrsqrt.pop %v3528
      %v3535 = vrsqrt.pop %v3529
      %v3536 = vrsqrt.pop %v3530
      %v3537 = vrsqrt.pop %v3531
      %v3538 = vrsqrt.pop %v3532
      %v3539 = vrsqrt.pop %v3533
      %v3540 = vmul.f32 %v3492, %v3534
      %v3541 = vmul.f32 %v3493, %v3535
      %v3542 = vmul.f32 %v3494, %v3536
      %v3543 = vmul.f32 %v3495, %v3537
      %v3544 = vmul.f32 %v3496, %v3538
      %v3545 = vmul.f32 %v3497, %v3539
      %v3547 = vlaneseq
      %v3548 = vshrl.u32 %v3547, 7
      %v3549 = vsub.s32 0, %v3548
      %v3550 = vrot.slane %v3465, %v3549
      %v3552 = vmul.f32 %v3540, %v3550
      %v3553 = vmul.f32 %v3541, %v3550
      %v3554 = vmul.f32 %v3542, %v3550
      %v3555 = vmul.f32 %v3543, %v3550
      %v3556 = vmul.f32 %v3544, %v3550
      %v3557 = vmul.f32 %v3545, %v3550
      %v3559 = vlaneseq
      %v3560 = vshrl.u32 %v3559, 7
      %v3561 = vsub.s32 0, %v3560
      %v3562 = vrot.slane %v3467, %v3561
      %v3564 = vadd.f32 %v3552, %v3562
      %v3565 = vadd.f32 %v3553, %v3562
      %v3566 = vadd.f32 %v3554, %v3562
      %v3567 = vadd.f32 %v3555, %v3562
      %v3568 = vadd.f32 %v3556, %v3562
      %v3569 = vadd.f32 %v3557, %v3562
      %s3570 = scalar_lea.vmem %s13, 32
      %v3571 = vld [vmem:[%s3570] sm:$0xff]
      %v3572 = vld [vmem:[%s3570 + $0x8] sm:$0xff]
      %v3573 = vld [vmem:[%s3570 + $0x10] sm:$0xff]
      %v3574 = vld [vmem:[%s3570 + $0x18] sm:$0xff]
      %s3575 = scalar_lea.vmem %s14, 1
      %v3576 = vld [vmem:[%s3575] sm:$0x1]
      %v3578 = vlaneseq
      %v3579 = vshrl.u32 %v3578, 7
      %v3580 = vsub.s32 0, %v3579
      %v3581 = vrot.slane %v3576, %v3580
      %v3584 = vsel %vm930, %v3564, 0
      %v3587 = vsel %vm930, %v3565, 0
      %v3590 = vsel %vm930, %v3566, 0
      %v3593 = vsel %vm930, %v3567, 0
      %v3596 = vsel %vm930, %v3568, 0
      %v3599 = vsel %vm930, %v3569, 0
      %3601 = vmatprep.subr.mxu0 0.0
      %3602 = vmatpush1.msra.mxu0 0.0
      %3603 = vmatprep.subr.mxu0 0.0
      %3604 = vmatpush1.msra.mxu0 0.0
      %3605 = vmatprep.subr.mxu0 0.0
      %3606 = vmatpush1.msra.mxu0 0.0
      %3607 = vmatprep.subr.mxu0 0.0
      %3608 = vmatpush1.msra.mxu0 0.0
      %3609 = vmatprep.subr.mxu0 0.0
      %3610 = vmatpush1.msra.mxu0 0.0
      %3611 = vmatprep.subr.mxu0 0.0
      %3612 = vmatpush1.msra.mxu0 0.0
      %3613 = vmatprep.subr.mxu0 0.0
      %3614 = vmatpush1.msra.mxu0 0.0
      %3615 = vmatprep.subr.mxu0 0.0
      %3616 = vmatpush1.msra.mxu0 0.0
      %3617 = vmatprep.subr.mxu0 0.0
      %3618 = vmatpush1.msra.mxu0 0.0
      %3619 = vmatprep.subr.mxu0 0.0
      %3620 = vmatpush1.msra.mxu0 0.0
      %3621 = vmatprep.subr.mxu0 0.0
      %3622 = vmatpush1.msra.mxu0 0.0
      %3623 = vmatprep.subr.mxu0 0.0
      %3624 = vmatpush1.msra.mxu0 0.0
      %3625 = vmatprep.subr.mxu0 0.0
      %3626 = vmatpush1.msra.mxu0 %v3574
      %3627 = vmatprep.subr.mxu0 0.0
      %3628 = vmatpush1.msra.mxu0 %v3573
      %3629 = vmatprep.subr.mxu0 0.0
      %3630 = vmatpush1.msra.mxu0 %v3572
      %3631 = vmatprep.subr.mxu0 0.0
      %3632 = vmatpush1.msra.mxu0 %v3571
      %3633 = vmatprep.subr.mxu0 0.0
      %3634 = vmatpush2.msra.mxu0 0.0
      %3635 = vmatprep.subr.mxu0 0.0
      %3636 = vmatpush2.msra.mxu0 0.0
      %3637 = vmatprep.subr.mxu0 0.0
      %3638 = vmatpush2.msra.mxu0 0.0
      %3639 = vmatprep.subr.mxu0 0.0
      %3640 = vmatpush2.msra.mxu0 0.0
      %3641 = vmatprep.subr.mxu0 0.0
      %3642 = vmatpush2.msra.mxu0 0.0
      %3643 = vmatprep.subr.mxu0 0.0
      %3644 = vmatpush2.msra.mxu0 0.0
      %3645 = vmatprep.subr.mxu0 0.0
      %3646 = vmatpush2.msra.mxu0 0.0
      %3647 = vmatprep.subr.mxu0 0.0
      %3648 = vmatpush2.msra.mxu0 0.0
      %3649 = vmatprep.subr.mxu0 0.0
      %3650 = vmatpush2.msra.mxu0 0.0
      %3651 = vmatprep.subr.mxu0 0.0
      %3652 = vmatpush2.msra.mxu0 0.0
      %3653 = vmatprep.subr.mxu0 0.0
      %3654 = vmatpush2.msra.mxu0 0.0
      %3655 = vmatprep.subr.mxu0 0.0
      %3656 = vmatpush2.msra.mxu0 0.0
      %3657 = vmatprep.subr.mxu0 0.0
      %3658 = vmatpush2.msra.mxu0 0.0
      %3659 = vmatprep.subr.mxu0 0.0
      %3660 = vmatpush2.msra.mxu0 0.0
      %3661 = vmatprep.subr.mxu0 0.0
      %3662 = vmatpush2.msra.mxu0 0.0
      %3663 = vmatprep.subr.mxu0 0.0
      %3664 = vmatpush2.msra.mxu0 0.0
      %3665 = vmatprep.mubr.f32.mxu0 0.0
      %3666 = vmatmul.mubr.f32.gmra.mxu0 %v3584
      %v3667 = vpop.f32.mrf.mxu0
      %v3668 = vadd.f32 %v3581, %v3667
      %v3669 = vpop.f32.mrf.mxu0
      %3670 = vmatprep.mubr.f32.mxu0 0.0
      %3671 = vmatmul.mubr.f32.gmra.mxu0 %v3587
      %v3672 = vpop.f32.mrf.mxu0
      %v3673 = vadd.f32 %v3581, %v3672
      %v3674 = vpop.f32.mrf.mxu0
      %3675 = vmatprep.mubr.f32.mxu0 0.0
      %3676 = vmatmul.mubr.f32.gmra.mxu0 %v3590
      %v3677 = vpop.f32.mrf.mxu0
      %v3678 = vadd.f32 %v3581, %v3677
      %v3679 = vpop.f32.mrf.mxu0
      %3680 = vmatprep.mubr.f32.mxu0 0.0
      %3681 = vmatmul.mubr.f32.gmra.mxu0 %v3593
      %v3682 = vpop.f32.mrf.mxu0
      %v3683 = vadd.f32 %v3581, %v3682
      %v3684 = vpop.f32.mrf.mxu0
      %3685 = vmatprep.mubr.f32.mxu0 0.0
      %3686 = vmatmul.mubr.f32.gmra.mxu0 %v3596
      %v3687 = vpop.f32.mrf.mxu0
      %v3688 = vadd.f32 %v3581, %v3687
      %v3689 = vpop.f32.mrf.mxu0
      %3690 = vmatprep.mubr.f32.mxu0 0.0
      %3691 = vmatmul.mubr.f32.gmra.mxu0 %v3599
      %v3692 = vpop.f32.mrf.mxu0
      %v3693 = vadd.f32 %v3581, %v3692
      %v3694 = vpop.f32.mrf.mxu0
      %3695 = vdwg.mxu0
      %v3696 = vmax.f32 %v3668, 0.0
      %v3697 = vmax.f32 %v3673, 0.0
      %v3698 = vmax.f32 %v3678, 0.0
      %v3699 = vmax.f32 %v3683, 0.0
      %v3700 = vmax.f32 %v3688, 0.0
      %v3701 = vmax.f32 %v3693, 0.0
      %s3702 = scalar_lea.vmem %s15, 64
      %v3703 = vld [vmem:[%s3702] sm:$0xff]
      %v3704 = vld [vmem:[%s3702 + $0x8] sm:$0xff]
      %v3705 = vld [vmem:[%s3702 + $0x10] sm:$0xff]
      %v3706 = vld [vmem:[%s3702 + $0x18] sm:$0xff]
      %v3707 = vld [vmem:[%s3702 + $0x20] sm:$0xff]
      %v3708 = vld [vmem:[%s3702 + $0x28] sm:$0xff]
      %v3709 = vld [vmem:[%s3702 + $0x30] sm:$0xff]
      %v3710 = vld [vmem:[%s3702 + $0x38] sm:$0xff]
      %s3711 = scalar_lea.vmem %s16, 1
      %v3712 = vld [vmem:[%s3711] sm:$0x1]
      %v3714 = vlaneseq
      %v3715 = vshrl.u32 %v3714, 7
      %v3716 = vsub.s32 0, %v3715
      %v3717 = vrot.slane %v3712, %v3716
      %v3720 = vsel %vm2278, %v3696, 0
      %v3723 = vsel %vm2278, %v3697, 0
      %v3726 = vsel %vm2278, %v3698, 0
      %v3729 = vsel %vm2278, %v3699, 0
      %v3732 = vsel %vm2278, %v3700, 0
      %v3735 = vsel %vm2278, %v3701, 0
      %3737 = vmatprep.subr.mxu0 0.0
      %3738 = vmatpush1.msra.mxu0 0.0
      %3739 = vmatprep.subr.mxu0 0.0
      %3740 = vmatpush1.msra.mxu0 0.0
      %3741 = vmatprep.subr.mxu0 0.0
      %3742 = vmatpush1.msra.mxu0 0.0
      %3743 = vmatprep.subr.mxu0 0.0
      %3744 = vmatpush1.msra.mxu0 0.0
      %3745 = vmatprep.subr.mxu0 0.0
      %3746 = vmatpush1.msra.mxu0 0.0
      %3747 = vmatprep.subr.mxu0 0.0
      %3748 = vmatpush1.msra.mxu0 0.0
      %3749 = vmatprep.subr.mxu0 0.0
      %3750 = vmatpush1.msra.mxu0 0.0
      %3751 = vmatprep.subr.mxu0 0.0
      %3752 = vmatpush1.msra.mxu0 0.0
      %3753 = vmatprep.subr.mxu0 0.0
      %3754 = vmatpush1.msra.mxu0 %v3710
      %3755 = vmatprep.subr.mxu0 0.0
      %3756 = vmatpush1.msra.mxu0 %v3709
      %3757 = vmatprep.subr.mxu0 0.0
      %3758 = vmatpush1.msra.mxu0 %v3708
      %3759 = vmatprep.subr.mxu0 0.0
      %3760 = vmatpush1.msra.mxu0 %v3707
      %3761 = vmatprep.subr.mxu0 0.0
      %3762 = vmatpush1.msra.mxu0 %v3706
      %3763 = vmatprep.subr.mxu0 0.0
      %3764 = vmatpush1.msra.mxu0 %v3705
      %3765 = vmatprep.subr.mxu0 0.0
      %3766 = vmatpush1.msra.mxu0 %v3704
      %3767 = vmatprep.subr.mxu0 0.0
      %3768 = vmatpush1.msra.mxu0 %v3703
      %3769 = vmatprep.subr.mxu0 0.0
      %3770 = vmatpush2.msra.mxu0 0.0
      %3771 = vmatprep.subr.mxu0 0.0
      %3772 = vmatpush2.msra.mxu0 0.0
      %3773 = vmatprep.subr.mxu0 0.0
      %3774 = vmatpush2.msra.mxu0 0.0
      %3775 = vmatprep.subr.mxu0 0.0
      %3776 = vmatpush2.msra.mxu0 0.0
      %3777 = vmatprep.subr.mxu0 0.0
      %3778 = vmatpush2.msra.mxu0 0.0
      %3779 = vmatprep.subr.mxu0 0.0
      %3780 = vmatpush2.msra.mxu0 0.0
      %3781 = vmatprep.subr.mxu0 0.0
      %3782 = vmatpush2.msra.mxu0 0.0
      %3783 = vmatprep.subr.mxu0 0.0
      %3784 = vmatpush2.msra.mxu0 0.0
      %3785 = vmatprep.subr.mxu0 0.0
      %3786 = vmatpush2.msra.mxu0 0.0
      %3787 = vmatprep.subr.mxu0 0.0
      %3788 = vmatpush2.msra.mxu0 0.0
      %3789 = vmatprep.subr.mxu0 0.0
      %3790 = vmatpush2.msra.mxu0 0.0
      %3791 = vmatprep.subr.mxu0 0.0
      %3792 = vmatpush2.msra.mxu0 0.0
      %3793 = vmatprep.subr.mxu0 0.0
      %3794 = vmatpush2.msra.mxu0 0.0
      %3795 = vmatprep.subr.mxu0 0.0
      %3796 = vmatpush2.msra.mxu0 0.0
      %3797 = vmatprep.subr.mxu0 0.0
      %3798 = vmatpush2.msra.mxu0 0.0
      %3799 = vmatprep.subr.mxu0 0.0
      %3800 = vmatpush2.msra.mxu0 0.0
      %3801 = vmatprep.mubr.f32.mxu0 0.0
      %3802 = vmatmul.mubr.f32.gmra.mxu0 %v3720
      %v3803 = vpop.f32.mrf.mxu0
      %v3804 = vadd.f32 %v3717, %v3803
      %v3805 = vpop.f32.mrf.mxu0
      %3806 = vmatprep.mubr.f32.mxu0 0.0
      %3807 = vmatmul.mubr.f32.gmra.mxu0 %v3723
      %v3808 = vpop.f32.mrf.mxu0
      %v3809 = vadd.f32 %v3717, %v3808
      %v3810 = vpop.f32.mrf.mxu0
      %3811 = vmatprep.mubr.f32.mxu0 0.0
      %3812 = vmatmul.mubr.f32.gmra.mxu0 %v3726
      %v3813 = vpop.f32.mrf.mxu0
      %v3814 = vadd.f32 %v3717, %v3813
      %v3815 = vpop.f32.mrf.mxu0
      %3816 = vmatprep.mubr.f32.mxu0 0.0
      %3817 = vmatmul.mubr.f32.gmra.mxu0 %v3729
      %v3818 = vpop.f32.mrf.mxu0
      %v3819 = vadd.f32 %v3717, %v3818
      %v3820 = vpop.f32.mrf.mxu0
      %3821 = vmatprep.mubr.f32.mxu0 0.0
      %3822 = vmatmul.mubr.f32.gmra.mxu0 %v3732
      %v3823 = vpop.f32.mrf.mxu0
      %v3824 = vadd.f32 %v3717, %v3823
      %v3825 = vpop.f32.mrf.mxu0
      %3826 = vmatprep.mubr.f32.mxu0 0.0
      %3827 = vmatmul.mubr.f32.gmra.mxu0 %v3735
      %v3828 = vpop.f32.mrf.mxu0
      %v3829 = vadd.f32 %v3717, %v3828
      %v3830 = vpop.f32.mrf.mxu0
      %3831 = vdwg.mxu0
      %v3832 = vadd.f32 %v3564, %v3804
      %v3833 = vadd.f32 %v3565, %v3809
      %v3834 = vadd.f32 %v3566, %v3814
      %v3835 = vadd.f32 %v3567, %v3819
      %v3836 = vadd.f32 %v3568, %v3824
      %v3837 = vadd.f32 %v3569, %v3829
      %s3838 = scalar_lea.vmem %s17, 1
      %v3839 = vld [vmem:[%s3838] sm:$0x1]
      %s3840 = scalar_lea.vmem %s18, 1
      %v3841 = vld [vmem:[%s3840] sm:$0x1]
      %v3842 = vsel %vm930, %v3832, 0.0
      %3843 = vadd.xlane.f32.xlu0 %v3842
      %v3844 = vpop.xlane.xlu0 %3843
      %v3845 = vsel %vm930, %v3833, 0.0
      %3846 = vadd.xlane.f32.xlu0 %v3845
      %v3847 = vpop.xlane.xlu0 %3846
      %v3848 = vsel %vm930, %v3834, 0.0
      %3849 = vadd.xlane.f32.xlu0 %v3848
      %v3850 = vpop.xlane.xlu0 %3849
      %v3851 = vsel %vm930, %v3835, 0.0
      %3852 = vadd.xlane.f32.xlu0 %v3851
      %v3853 = vpop.xlane.xlu0 %3852
      %v3854 = vsel %vm930, %v3836, 0.0
      %3855 = vadd.xlane.f32.xlu0 %v3854
      %v3856 = vpop.xlane.xlu0 %3855
      %v3857 = vsel %vm930, %v3837, 0.0
      %3858 = vadd.xlane.f32.xlu0 %v3857
      %v3859 = vpop.xlane.xlu0 %3858
      %v3860 = vmul.f32 %v3844, %v2048
      %v3861 = vmul.f32 %v3847, %v2048
      %v3862 = vmul.f32 %v3850, %v2048
      %v3863 = vmul.f32 %v3853, %v2048
      %v3864 = vmul.f32 %v3856, %v2048
      %v3865 = vmul.f32 %v3859, %v2048
      %v3866 = vsub.f32 %v3832, %v3860
      %v3867 = vsub.f32 %v3833, %v3861
      %v3868 = vsub.f32 %v3834, %v3862
      %v3869 = vsub.f32 %v3835, %v3863
      %v3870 = vsub.f32 %v3836, %v3864
      %v3871 = vsub.f32 %v3837, %v3865
      %v3872 = vmul.f32 %v3866, %v3866
      %v3873 = vmul.f32 %v3867, %v3867
      %v3874 = vmul.f32 %v3868, %v3868
      %v3875 = vmul.f32 %v3869, %v3869
      %v3876 = vmul.f32 %v3870, %v3870
      %v3877 = vmul.f32 %v3871, %v3871
      %v3878 = vsel %vm930, %v3872, 0.0
      %3879 = vadd.xlane.f32.xlu0 %v3878
      %v3880 = vpop.xlane.xlu0 %3879
      %v3881 = vsel %vm930, %v3873, 0.0
      %3882 = vadd.xlane.f32.xlu0 %v3881
      %v3883 = vpop.xlane.xlu0 %3882
      %v3884 = vsel %vm930, %v3874, 0.0
      %3885 = vadd.xlane.f32.xlu0 %v3884
      %v3886 = vpop.xlane.xlu0 %3885
      %v3887 = vsel %vm930, %v3875, 0.0
      %3888 = vadd.xlane.f32.xlu0 %v3887
      %v3889 = vpop.xlane.xlu0 %3888
      %v3890 = vsel %vm930, %v3876, 0.0
      %3891 = vadd.xlane.f32.xlu0 %v3890
      %v3892 = vpop.xlane.xlu0 %3891
      %v3893 = vsel %vm930, %v3877, 0.0
      %3894 = vadd.xlane.f32.xlu0 %v3893
      %v3895 = vpop.xlane.xlu0 %3894
      %v3896 = vmul.f32 %v3880, %v2048
      %v3897 = vmul.f32 %v3883, %v2048
      %v3898 = vmul.f32 %v3886, %v2048
      %v3899 = vmul.f32 %v3889, %v2048
      %v3900 = vmul.f32 %v3892, %v2048
      %v3901 = vmul.f32 %v3895, %v2048
      %v3902 = vadd.f32 %v3896, 1e-05
      %v3903 = vadd.f32 %v3897, 1e-05
      %v3904 = vadd.f32 %v3898, 1e-05
      %v3905 = vadd.f32 %v3899, 1e-05
      %v3906 = vadd.f32 %v3900, 1e-05
      %v3907 = vadd.f32 %v3901, 1e-05
      %v3908 = vrsqrt.pop %v3902
      %v3909 = vrsqrt.pop %v3903
      %v3910 = vrsqrt.pop %v3904
      %v3911 = vrsqrt.pop %v3905
      %v3912 = vrsqrt.pop %v3906
      %v3913 = vrsqrt.pop %v3907
      %v3914 = vmul.f32 %v3866, %v3908
      %v3915 = vmul.f32 %v3867, %v3909
      %v3916 = vmul.f32 %v3868, %v3910
      %v3917 = vmul.f32 %v3869, %v3911
      %v3918 = vmul.f32 %v3870, %v3912
      %v3919 = vmul.f32 %v3871, %v3913
      %v3921 = vlaneseq
      %v3922 = vshrl.u32 %v3921, 7
      %v3923 = vsub.s32 0, %v3922
      %v3924 = vrot.slane %v3839, %v3923
      %v3926 = vmul.f32 %v3914, %v3924
      %v3927 = vmul.f32 %v3915, %v3924
      %v3928 = vmul.f32 %v3916, %v3924
      %v3929 = vmul.f32 %v3917, %v3924
      %v3930 = vmul.f32 %v3918, %v3924
      %v3931 = vmul.f32 %v3919, %v3924
      %v3933 = vlaneseq
      %v3934 = vshrl.u32 %v3933, 7
      %v3935 = vsub.s32 0, %v3934
      %v3936 = vrot.slane %v3841, %v3935
      %v3938 = vadd.f32 %v3926, %v3936
      %v3939 = vadd.f32 %v3927, %v3936
      %v3940 = vadd.f32 %v3928, %v3936
      %v3941 = vadd.f32 %v3929, %v3936
      %v3942 = vadd.f32 %v3930, %v3936
      %v3943 = vadd.f32 %v3931, %v3936
      %v3944 = vld [vmem:[%s19] sm:$0xff]
      %v3945 = vld [vmem:[%s19 + $0x8] sm:$0xff]
      %v3946 = vld [vmem:[%s19 + $0x10] sm:$0xff]
      %v3947 = vld [vmem:[%s19 + $0x18] sm:$0xff]
      %v3948 = vld [vmem:[%s20] sm:$0x1]
      %v3950 = vlaneseq
      %v3951 = vshrl.u32 %v3950, 7
      %v3952 = vsub.s32 0, %v3951
      %v3953 = vrot.slane %v3948, %v3952
      %v3956 = vsel %vm930, %v3938, 0
      %v3959 = vsel %vm930, %v3939, 0
      %v3962 = vsel %vm930, %v3940, 0
      %v3965 = vsel %vm930, %v3941, 0
      %v3968 = vsel %vm930, %v3942, 0
      %v3971 = vsel %vm930, %v3943, 0
      %3973 = vmatprep.subr.mxu0 0.0
      %3974 = vmatpush1.msra.mxu0 0.0
      %3975 = vmatprep.subr.mxu0 0.0
      %3976 = vmatpush1.msra.mxu0 0.0
      %3977 = vmatprep.subr.mxu0 0.0
      %3978 = vmatpush1.msra.mxu0 0.0
      %3979 = vmatprep.subr.mxu0 0.0
      %3980 = vmatpush1.msra.mxu0 0.0
      %3981 = vmatprep.subr.mxu0 0.0
      %3982 = vmatpush1.msra.mxu0 0.0
      %3983 = vmatprep.subr.mxu0 0.0
      %3984 = vmatpush1.msra.mxu0 0.0
      %3985 = vmatprep.subr.mxu0 0.0
      %3986 = vmatpush1.msra.mxu0 0.0
      %3987 = vmatprep.subr.mxu0 0.0
      %3988 = vmatpush1.msra.mxu0 0.0
      %3989 = vmatprep.subr.mxu0 0.0
      %3990 = vmatpush1.msra.mxu0 0.0
      %3991 = vmatprep.subr.mxu0 0.0
      %3992 = vmatpush1.msra.mxu0 0.0
      %3993 = vmatprep.subr.mxu0 0.0
      %3994 = vmatpush1.msra.mxu0 0.0
      %3995 = vmatprep.subr.mxu0 0.0
      %3996 = vmatpush1.msra.mxu0 0.0
      %3997 = vmatprep.subr.mxu0 0.0
      %3998 = vmatpush1.msra.mxu0 %v3947
      %3999 = vmatprep.subr.mxu0 0.0
      %4000 = vmatpush1.msra.mxu0 %v3946
      %4001 = vmatprep.subr.mxu0 0.0
      %4002 = vmatpush1.msra.mxu0 %v3945
      %4003 = vmatprep.subr.mxu0 0.0
      %4004 = vmatpush1.msra.mxu0 %v3944
      %4005 = vmatprep.subr.mxu0 0.0
      %4006 = vmatpush2.msra.mxu0 0.0
      %4007 = vmatprep.subr.mxu0 0.0
      %4008 = vmatpush2.msra.mxu0 0.0
      %4009 = vmatprep.subr.mxu0 0.0
      %4010 = vmatpush2.msra.mxu0 0.0
      %4011 = vmatprep.subr.mxu0 0.0
      %4012 = vmatpush2.msra.mxu0 0.0
      %4013 = vmatprep.subr.mxu0 0.0
      %4014 = vmatpush2.msra.mxu0 0.0
      %4015 = vmatprep.subr.mxu0 0.0
      %4016 = vmatpush2.msra.mxu0 0.0
      %4017 = vmatprep.subr.mxu0 0.0
      %4018 = vmatpush2.msra.mxu0 0.0
      %4019 = vmatprep.subr.mxu0 0.0
      %4020 = vmatpush2.msra.mxu0 0.0
      %4021 = vmatprep.subr.mxu0 0.0
      %4022 = vmatpush2.msra.mxu0 0.0
      %4023 = vmatprep.subr.mxu0 0.0
      %4024 = vmatpush2.msra.mxu0 0.0
      %4025 = vmatprep.subr.mxu0 0.0
      %4026 = vmatpush2.msra.mxu0 0.0
      %4027 = vmatprep.subr.mxu0 0.0
      %4028 = vmatpush2.msra.mxu0 0.0
      %4029 = vmatprep.subr.mxu0 0.0
      %4030 = vmatpush2.msra.mxu0 0.0
      %4031 = vmatprep.subr.mxu0 0.0
      %4032 = vmatpush2.msra.mxu0 0.0
      %4033 = vmatprep.subr.mxu0 0.0
      %4034 = vmatpush2.msra.mxu0 0.0
      %4035 = vmatprep.subr.mxu0 0.0
      %4036 = vmatpush2.msra.mxu0 0.0
      %4037 = vmatprep.mubr.f32.mxu0 0.0
      %4038 = vmatmul.mubr.f32.gmra.mxu0 %v3956
      %v4039 = vpop.f32.mrf.mxu0
      %v4040 = vadd.f32 %v3953, %v4039
      %v4041 = vpop.f32.mrf.mxu0
      %4042 = vmatprep.mubr.f32.mxu0 0.0
      %4043 = vmatmul.mubr.f32.gmra.mxu0 %v3959
      %v4044 = vpop.f32.mrf.mxu0
      %v4045 = vadd.f32 %v3953, %v4044
      %v4046 = vpop.f32.mrf.mxu0
      %4047 = vmatprep.mubr.f32.mxu0 0.0
      %4048 = vmatmul.mubr.f32.gmra.mxu0 %v3962
      %v4049 = vpop.f32.mrf.mxu0
      %v4050 = vadd.f32 %v3953, %v4049
      %v4051 = vpop.f32.mrf.mxu0
      %4052 = vmatprep.mubr.f32.mxu0 0.0
      %4053 = vmatmul.mubr.f32.gmra.mxu0 %v3965
      %v4054 = vpop.f32.mrf.mxu0
      %v4055 = vadd.f32 %v3953, %v4054
      %v4056 = vpop.f32.mrf.mxu0
      %4057 = vmatprep.mubr.f32.mxu0 0.0
      %4058 = vmatmul.mubr.f32.gmra.mxu0 %v3968
      %v4059 = vpop.f32.mrf.mxu0
      %v4060 = vadd.f32 %v3953, %v4059
      %v4061 = vpop.f32.mrf.mxu0
      %4062 = vmatprep.mubr.f32.mxu0 0.0
      %4063 = vmatmul.mubr.f32.gmra.mxu0 %v3971
      %v4064 = vpop.f32.mrf.mxu0
      %v4065 = vadd.f32 %v3953, %v4064
      %v4066 = vpop.f32.mrf.mxu0
      %4067 = vdwg.mxu0
      %v4068 = vmax.f32 %v4040, 0.0
      %v4069 = vmax.f32 %v4045, 0.0
      %v4070 = vmax.f32 %v4050, 0.0
      %v4071 = vmax.f32 %v4055, 0.0
      %v4072 = vmax.f32 %v4060, 0.0
      %v4073 = vmax.f32 %v4065, 0.0
      %v4074 = vld [vmem:[%s21] sm:$0xff]
      %v4075 = vld [vmem:[%s21 + $0x8] sm:$0xff]
      %v4076 = vld [vmem:[%s21 + $0x10] sm:$0xff]
      %v4077 = vld [vmem:[%s21 + $0x18] sm:$0xff]
      %v4078 = vld [vmem:[%s21 + $0x20] sm:$0xff]
      %v4079 = vld [vmem:[%s21 + $0x28] sm:$0xff]
      %v4080 = vld [vmem:[%s21 + $0x30] sm:$0xff]
      %v4081 = vld [vmem:[%s21 + $0x38] sm:$0xff]
      %v4082 = vld [vmem:[%s21 + $0x40] sm:$0xff]
      %v4083 = vld [vmem:[%s21 + $0x48] sm:$0xff]
      %v4084 = vld [vmem:[%s21 + $0x50] sm:$0xff]
      %v4085 = vld [vmem:[%s21 + $0x58] sm:$0xff]
      %v4086 = vld [vmem:[%s22] sm:$0x1]
      %v4088 = vlaneseq
      %v4089 = vshrl.u32 %v4088, 7
      %v4090 = vsub.s32 0, %v4089
      %v4091 = vrot.slane %v4086, %v4090
      %vm4093 = vcmask 785408
      %v4095 = vsel %vm4093, %v4068, 0
      %v4098 = vsel %vm4093, %v4069, 0
      %v4101 = vsel %vm4093, %v4070, 0
      %v4104 = vsel %vm4093, %v4071, 0
      %v4107 = vsel %vm4093, %v4072, 0
      %v4110 = vsel %vm4093, %v4073, 0
      %4112 = vmatprep.subr.mxu0 0.0
      %4113 = vmatpush1.msra.mxu0 0.0
      %4114 = vmatprep.subr.mxu0 0.0
      %4115 = vmatpush1.msra.mxu0 0.0
      %4116 = vmatprep.subr.mxu0 0.0
      %4117 = vmatpush1.msra.mxu0 0.0
      %4118 = vmatprep.subr.mxu0 0.0
      %4119 = vmatpush1.msra.mxu0 0.0
      %4120 = vmatprep.subr.mxu0 0.0
      %4121 = vmatpush1.msra.mxu0 %v4085
      %4122 = vmatprep.subr.mxu0 0.0
      %4123 = vmatpush1.msra.mxu0 %v4084
      %4124 = vmatprep.subr.mxu0 0.0
      %4125 = vmatpush1.msra.mxu0 %v4083
      %4126 = vmatprep.subr.mxu0 0.0
      %4127 = vmatpush1.msra.mxu0 %v4082
      %4128 = vmatprep.subr.mxu0 0.0
      %4129 = vmatpush1.msra.mxu0 %v4081
      %4130 = vmatprep.subr.mxu0 0.0
      %4131 = vmatpush1.msra.mxu0 %v4080
      %4132 = vmatprep.subr.mxu0 0.0
      %4133 = vmatpush1.msra.mxu0 %v4079
      %4134 = vmatprep.subr.mxu0 0.0
      %4135 = vmatpush1.msra.mxu0 %v4078
      %4136 = vmatprep.subr.mxu0 0.0
      %4137 = vmatpush1.msra.mxu0 %v4077
      %4138 = vmatprep.subr.mxu0 0.0
      %4139 = vmatpush1.msra.mxu0 %v4076
      %4140 = vmatprep.subr.mxu0 0.0
      %4141 = vmatpush1.msra.mxu0 %v4075
      %4142 = vmatprep.subr.mxu0 0.0
      %4143 = vmatpush1.msra.mxu0 %v4074
      %4144 = vmatprep.subr.mxu0 0.0
      %4145 = vmatpush2.msra.mxu0 0.0
      %4146 = vmatprep.subr.mxu0 0.0
      %4147 = vmatpush2.msra.mxu0 0.0
      %4148 = vmatprep.subr.mxu0 0.0
      %4149 = vmatpush2.msra.mxu0 0.0
      %4150 = vmatprep.subr.mxu0 0.0
      %4151 = vmatpush2.msra.mxu0 0.0
      %4152 = vmatprep.subr.mxu0 0.0
      %4153 = vmatpush2.msra.mxu0 0.0
      %4154 = vmatprep.subr.mxu0 0.0
      %4155 = vmatpush2.msra.mxu0 0.0
      %4156 = vmatprep.subr.mxu0 0.0
      %4157 = vmatpush2.msra.mxu0 0.0
      %4158 = vmatprep.subr.mxu0 0.0
      %4159 = vmatpush2.msra.mxu0 0.0
      %4160 = vmatprep.subr.mxu0 0.0
      %4161 = vmatpush2.msra.mxu0 0.0
      %4162 = vmatprep.subr.mxu0 0.0
      %4163 = vmatpush2.msra.mxu0 0.0
      %4164 = vmatprep.subr.mxu0 0.0
      %4165 = vmatpush2.msra.mxu0 0.0
      %4166 = vmatprep.subr.mxu0 0.0
      %4167 = vmatpush2.msra.mxu0 0.0
      %4168 = vmatprep.subr.mxu0 0.0
      %4169 = vmatpush2.msra.mxu0 0.0
      %4170 = vmatprep.subr.mxu0 0.0
      %4171 = vmatpush2.msra.mxu0 0.0
      %4172 = vmatprep.subr.mxu0 0.0
      %4173 = vmatpush2.msra.mxu0 0.0
      %4174 = vmatprep.subr.mxu0 0.0
      %4175 = vmatpush2.msra.mxu0 0.0
      %4176 = vmatprep.mubr.f32.mxu0 0.0
      %4177 = vmatmul.mubr.f32.gmra.mxu0 %v4095
      %v4178 = vpop.f32.mrf.mxu0
      %v4179 = vadd.f32 %v4091, %v4178
      %v4180 = vpop.f32.mrf.mxu0
      %4181 = vmatprep.mubr.f32.mxu0 0.0
      %4182 = vmatmul.mubr.f32.gmra.mxu0 %v4098
      %v4183 = vpop.f32.mrf.mxu0
      %v4184 = vadd.f32 %v4091, %v4183
      %v4185 = vpop.f32.mrf.mxu0
      %4186 = vmatprep.mubr.f32.mxu0 0.0
      %4187 = vmatmul.mubr.f32.gmra.mxu0 %v4101
      %v4188 = vpop.f32.mrf.mxu0
      %v4189 = vadd.f32 %v4091, %v4188
      %v4190 = vpop.f32.mrf.mxu0
      %4191 = vmatprep.mubr.f32.mxu0 0.0
      %4192 = vmatmul.mubr.f32.gmra.mxu0 %v4104
      %v4193 = vpop.f32.mrf.mxu0
      %v4194 = vadd.f32 %v4091, %v4193
      %v4195 = vpop.f32.mrf.mxu0
      %4196 = vmatprep.mubr.f32.mxu0 0.0
      %4197 = vmatmul.mubr.f32.gmra.mxu0 %v4107
      %v4198 = vpop.f32.mrf.mxu0
      %v4199 = vadd.f32 %v4091, %v4198
      %v4200 = vpop.f32.mrf.mxu0
      %4201 = vmatprep.mubr.f32.mxu0 0.0
      %4202 = vmatmul.mubr.f32.gmra.mxu0 %v4110
      %v4203 = vpop.f32.mrf.mxu0
      %v4204 = vadd.f32 %v4091, %v4203
      %v4205 = vpop.f32.mrf.mxu0
      %4206 = vdwg.mxu0
      %v4207 = vmax.f32 %v4179, 0.0
      %v4208 = vmax.f32 %v4184, 0.0
      %v4209 = vmax.f32 %v4189, 0.0
      %v4210 = vmax.f32 %v4194, 0.0
      %v4211 = vmax.f32 %v4199, 0.0
      %v4212 = vmax.f32 %v4204, 0.0
      %v4213 = vld [vmem:[%s23] sm:$0xff]
      %v4214 = vld [vmem:[%s23 + $0x8] sm:$0xff]
      %v4215 = vld [vmem:[%s23 + $0x10] sm:$0xff]
      %v4216 = vld [vmem:[%s23 + $0x18] sm:$0xff]
      %v4217 = vld [vmem:[%s23 + $0x20] sm:$0xff]
      %v4218 = vld [vmem:[%s23 + $0x28] sm:$0xff]
      %v4219 = vld [vmem:[%s23 + $0x30] sm:$0xff]
      %v4220 = vld [vmem:[%s23 + $0x38] sm:$0xff]
      %v4221 = vld [vmem:[%s23 + $0x40] sm:$0xff]
      %v4222 = vld [vmem:[%s23 + $0x48] sm:$0xff]
      %v4223 = vld [vmem:[%s23 + $0x50] sm:$0xff]
      %v4224 = vld [vmem:[%s23 + $0x58] sm:$0xff]
      %v4225 = vld [vmem:[%s24] sm:$0x1]
      %v4227 = vlaneseq
      %v4228 = vshrl.u32 %v4227, 7
      %v4229 = vsub.s32 0, %v4228
      %v4230 = vrot.slane %v4225, %v4229
      %v4233 = vsel %vm4093, %v4207, 0
      %v4236 = vsel %vm4093, %v4208, 0
      %v4239 = vsel %vm4093, %v4209, 0
      %v4242 = vsel %vm4093, %v4210, 0
      %v4245 = vsel %vm4093, %v4211, 0
      %v4248 = vsel %vm4093, %v4212, 0
      %4250 = vmatprep.subr.mxu0 0.0
      %4251 = vmatpush1.msra.mxu0 0.0
      %4252 = vmatprep.subr.mxu0 0.0
      %4253 = vmatpush1.msra.mxu0 0.0
      %4254 = vmatprep.subr.mxu0 0.0
      %4255 = vmatpush1.msra.mxu0 0.0
      %4256 = vmatprep.subr.mxu0 0.0
      %4257 = vmatpush1.msra.mxu0 0.0
      %4258 = vmatprep.subr.mxu0 0.0
      %4259 = vmatpush1.msra.mxu0 %v4224
      %4260 = vmatprep.subr.mxu0 0.0
      %4261 = vmatpush1.msra.mxu0 %v4223
      %4262 = vmatprep.subr.mxu0 0.0
      %4263 = vmatpush1.msra.mxu0 %v4222
      %4264 = vmatprep.subr.mxu0 0.0
      %4265 = vmatpush1.msra.mxu0 %v4221
      %4266 = vmatprep.subr.mxu0 0.0
      %4267 = vmatpush1.msra.mxu0 %v4220
      %4268 = vmatprep.subr.mxu0 0.0
      %4269 = vmatpush1.msra.mxu0 %v4219
      %4270 = vmatprep.subr.mxu0 0.0
      %4271 = vmatpush1.msra.mxu0 %v4218
      %4272 = vmatprep.subr.mxu0 0.0
      %4273 = vmatpush1.msra.mxu0 %v4217
      %4274 = vmatprep.subr.mxu0 0.0
      %4275 = vmatpush1.msra.mxu0 %v4216
      %4276 = vmatprep.subr.mxu0 0.0
      %4277 = vmatpush1.msra.mxu0 %v4215
      %4278 = vmatprep.subr.mxu0 0.0
      %4279 = vmatpush1.msra.mxu0 %v4214
      %4280 = vmatprep.subr.mxu0 0.0
      %4281 = vmatpush1.msra.mxu0 %v4213
      %4282 = vmatprep.subr.mxu0 0.0
      %4283 = vmatpush2.msra.mxu0 0.0
      %4284 = vmatprep.subr.mxu0 0.0
      %4285 = vmatpush2.msra.mxu0 0.0
      %4286 = vmatprep.subr.mxu0 0.0
      %4287 = vmatpush2.msra.mxu0 0.0
      %4288 = vmatprep.subr.mxu0 0.0
      %4289 = vmatpush2.msra.mxu0 0.0
      %4290 = vmatprep.subr.mxu0 0.0
      %4291 = vmatpush2.msra.mxu0 0.0
      %4292 = vmatprep.subr.mxu0 0.0
      %4293 = vmatpush2.msra.mxu0 0.0
      %4294 = vmatprep.subr.mxu0 0.0
      %4295 = vmatpush2.msra.mxu0 0.0
      %4296 = vmatprep.subr.mxu0 0.0
      %4297 = vmatpush2.msra.mxu0 0.0
      %4298 = vmatprep.subr.mxu0 0.0
      %4299 = vmatpush2.msra.mxu0 0.0
      %4300 = vmatprep.subr.mxu0 0.0
      %4301 = vmatpush2.msra.mxu0 0.0
      %4302 = vmatprep.subr.mxu0 0.0
      %4303 = vmatpush2.msra.mxu0 0.0
      %4304 = vmatprep.subr.mxu0 0.0
      %4305 = vmatpush2.msra.mxu0 0.0
      %4306 = vmatprep.subr.mxu0 0.0
      %4307 = vmatpush2.msra.mxu0 0.0
      %4308 = vmatprep.subr.mxu0 0.0
      %4309 = vmatpush2.msra.mxu0 0.0
      %4310 = vmatprep.subr.mxu0 0.0
      %4311 = vmatpush2.msra.mxu0 0.0
      %4312 = vmatprep.subr.mxu0 0.0
      %4313 = vmatpush2.msra.mxu0 0.0
      %4314 = vmatprep.mubr.f32.mxu0 0.0
      %4315 = vmatmul.mubr.f32.gmra.mxu0 %v4233
      %v4316 = vpop.f32.mrf.mxu0
      %v4317 = vadd.f32 %v4230, %v4316
      %v4318 = vpop.f32.mrf.mxu0
      %4319 = vmatprep.mubr.f32.mxu0 0.0
      %4320 = vmatmul.mubr.f32.gmra.mxu0 %v4236
      %v4321 = vpop.f32.mrf.mxu0
      %v4322 = vadd.f32 %v4230, %v4321
      %v4323 = vpop.f32.mrf.mxu0
      %4324 = vmatprep.mubr.f32.mxu0 0.0
      %4325 = vmatmul.mubr.f32.gmra.mxu0 %v4239
      %v4326 = vpop.f32.mrf.mxu0
      %v4327 = vadd.f32 %v4230, %v4326
      %v4328 = vpop.f32.mrf.mxu0
      %4329 = vmatprep.mubr.f32.mxu0 0.0
      %4330 = vmatmul.mubr.f32.gmra.mxu0 %v4242
      %v4331 = vpop.f32.mrf.mxu0
      %v4332 = vadd.f32 %v4230, %v4331
      %v4333 = vpop.f32.mrf.mxu0
      %4334 = vmatprep.mubr.f32.mxu0 0.0
      %4335 = vmatmul.mubr.f32.gmra.mxu0 %v4245
      %v4336 = vpop.f32.mrf.mxu0
      %v4337 = vadd.f32 %v4230, %v4336
      %v4338 = vpop.f32.mrf.mxu0
      %4339 = vmatprep.mubr.f32.mxu0 0.0
      %4340 = vmatmul.mubr.f32.gmra.mxu0 %v4248
      %v4341 = vpop.f32.mrf.mxu0
      %v4342 = vadd.f32 %v4230, %v4341
      %v4343 = vpop.f32.mrf.mxu0
      %4344 = vdwg.mxu0
      %v4345 = vmax.f32 %v4317, 0.0
      %v4346 = vmax.f32 %v4322, 0.0
      %v4347 = vmax.f32 %v4327, 0.0
      %v4348 = vmax.f32 %v4332, 0.0
      %v4349 = vmax.f32 %v4337, 0.0
      %v4350 = vmax.f32 %v4342, 0.0
      %v4351 = vand.u32 2147483647, %v4317
      %v4352 = vand.u32 2147483647, %v4322
      %v4353 = vand.u32 2147483647, %v4327
      %v4354 = vand.u32 2147483647, %v4332
      %v4355 = vand.u32 2147483647, %v4337
      %v4356 = vand.u32 2147483647, %v4342
      %v4357 = vsub.f32 0.0, %v4351
      %v4358 = vsub.f32 0.0, %v4352
      %v4359 = vsub.f32 0.0, %v4353
      %v4360 = vsub.f32 0.0, %v4354
      %v4361 = vsub.f32 0.0, %v4355
      %v4362 = vsub.f32 0.0, %v4356
      %v4363 = vmul.f32 %v4357, 1.442695
      %v4364 = vpow.pop %v4363
      %v4365 = vmul.f32 %v4358, 1.442695
      %v4366 = vpow.pop %v4365
      %v4367 = vmul.f32 %v4359, 1.442695
      %v4368 = vpow.pop %v4367
      %v4369 = vmul.f32 %v4360, 1.442695
      %v4370 = vpow.pop %v4369
      %v4371 = vmul.f32 %v4361, 1.442695
      %v4372 = vpow.pop %v4371
      %v4373 = vmul.f32 %v4362, 1.442695
      %v4374 = vpow.pop %v4373
      %v4375 = vadd.f32 %v4364, 1.0
      %v4376 = vadd.f32 %v4366, 1.0
      %v4377 = vadd.f32 %v4368, 1.0
      %v4378 = vadd.f32 %v4370, 1.0
      %v4379 = vadd.f32 %v4372, 1.0
      %v4380 = vadd.f32 %v4374, 1.0
      %v4381 = vlog2.pop %v4375
      %v4382 = vmul.f32 %v4381, 0.6931472
      %v4383 = vlog2.pop %v4376
      %v4384 = vmul.f32 %v4383, 0.6931472
      %v4385 = vlog2.pop %v4377
      %v4386 = vmul.f32 %v4385, 0.6931472
      %v4387 = vlog2.pop %v4378
      %v4388 = vmul.f32 %v4387, 0.6931472
      %v4389 = vlog2.pop %v4379
      %v4390 = vmul.f32 %v4389, 0.6931472
      %v4391 = vlog2.pop %v4380
      %v4392 = vmul.f32 %v4391, 0.6931472
      %v4393 = vadd.f32 %v4345, %v4382
      %v4394 = vadd.f32 %v4346, %v4384
      %v4395 = vadd.f32 %v4347, %v4386
      %v4396 = vadd.f32 %v4348, %v4388
      %v4397 = vadd.f32 %v4349, %v4390
      %v4398 = vadd.f32 %v4350, %v4392
      %v4399 = vadd.f32 %v4393, 0.01
      %v4400 = vadd.f32 %v4394, 0.01
      %v4401 = vadd.f32 %v4395, 0.01
      %v4402 = vadd.f32 %v4396, 0.01
      %v4403 = vadd.f32 %v4397, 0.01
      %v4404 = vadd.f32 %v4398, 0.01
      %v4405 = vmul.f32 %v4317, 0.02
      %v4406 = vmul.f32 %v4322, 0.02
      %v4407 = vmul.f32 %v4327, 0.02
      %v4408 = vmul.f32 %v4332, 0.02
      %v4409 = vmul.f32 %v4337, 0.02
      %v4410 = vmul.f32 %v4342, 0.02
      %v4411 = vtanh.pop %v4405
      %v4412 = vtanh.pop %v4406
      %v4413 = vtanh.pop %v4407
      %v4414 = vtanh.pop %v4408
      %v4415 = vtanh.pop %v4409
      %v4416 = vtanh.pop %v4410
      %v4417 = vmul.f32 %v4411, 50.0
      %v4418 = vmul.f32 %v4412, 50.0
      %v4419 = vmul.f32 %v4413, 50.0
      %v4420 = vmul.f32 %v4414, 50.0
      %v4421 = vmul.f32 %v4415, 50.0
      %v4422 = vmul.f32 %v4416, 50.0
      %4429 = vrot.lane.b32.xlu0 %v4399, 127
      %v4430 = vpop.permute.xlu0 %4429
      %4431 = vrot.lane.b32.xlu0 %v4400, 127
      %v4432 = vpop.permute.xlu0 %4431
      %4433 = vrot.lane.b32.xlu0 %v4401, 127
      %v4434 = vpop.permute.xlu0 %4433
      %4435 = vrot.lane.b32.xlu0 %v4402, 127
      %v4436 = vpop.permute.xlu0 %4435
      %4437 = vrot.lane.b32.xlu0 %v4403, 127
      %v4438 = vpop.permute.xlu0 %4437
      %4439 = vrot.lane.b32.xlu0 %v4404, 127
      %v4440 = vpop.permute.xlu0 %4439
      %v4447 = vrcp.pop %v4430
      %v4448 = vmul.f32 %v840, %v4447
      %v4449 = vrcp.pop %v4432
      %v4450 = vmul.f32 %v841, %v4449
      %v4451 = vrcp.pop %v4434
      %v4452 = vmul.f32 %v842, %v4451
      %v4453 = vrcp.pop %v4436
      %v4454 = vmul.f32 %v843, %v4453
      %v4455 = vrcp.pop %v4438
      %v4456 = vmul.f32 %v844, %v4455
      %v4457 = vrcp.pop %v4440
      %v4458 = vmul.f32 %v845, %v4457
      %v4459 = vsub.f32 %v834, %v4317
      %v4460 = vsub.f32 %v835, %v4322
      %v4461 = vsub.f32 %v836, %v4327
      %v4462 = vsub.f32 %v837, %v4332
      %v4463 = vsub.f32 %v838, %v4337
      %v4464 = vsub.f32 %v839, %v4342
      %v4465 = vmul.f32 %v4459, %v840
      %v4466 = vmul.f32 %v4460, %v841
      %v4467 = vmul.f32 %v4461, %v842
      %v4468 = vmul.f32 %v4462, %v843
      %v4469 = vmul.f32 %v4463, %v844
      %v4470 = vmul.f32 %v4464, %v845
      %4472 = vset.pattern.permute.xlu0 0
      %4473 = vperm.xlu0 %4472, %v4448
      %v4474 = vpop.permute.xlu0 %4473
      %4477 = vset.pattern.permute.xlu0 0
      %4478 = vperm.xlu0 %4477, %v4450
      %v4479 = vpop.permute.xlu0 %4478
      %4482 = vset.pattern.permute.xlu0 0
      %4483 = vperm.xlu0 %4482, %v4452
      %v4484 = vpop.permute.xlu0 %4483
      %4487 = vset.pattern.permute.xlu0 0
      %4488 = vperm.xlu0 %4487, %v4454
      %v4489 = vpop.permute.xlu0 %4488
      %4492 = vset.pattern.permute.xlu0 0
      %4493 = vperm.xlu0 %4492, %v4456
      %v4494 = vpop.permute.xlu0 %4493
      %4497 = vset.pattern.permute.xlu0 0
      %4498 = vperm.xlu0 %4497, %v4458
      %v4499 = vpop.permute.xlu0 %4498
      %v4501 = vmul.f32 %v4417, %v4474
      %v4502 = vmul.f32 %v4418, %v4479
      %v4503 = vmul.f32 %v4419, %v4484
      %v4504 = vmul.f32 %v4420, %v4489
      %v4505 = vmul.f32 %v4421, %v4494
      %v4506 = vmul.f32 %v4422, %v4499
      %4508 = vset.pattern.permute.xlu0 2
      %4509 = vperm.xlu0 %4508, %v4501
      %v4510 = vpop.permute.xlu0 %4509
      %4513 = vset.pattern.permute.xlu0 2
      %4514 = vperm.xlu0 %4513, %v4502
      %v4515 = vpop.permute.xlu0 %4514
      %4518 = vset.pattern.permute.xlu0 2
      %4519 = vperm.xlu0 %4518, %v4503
      %v4520 = vpop.permute.xlu0 %4519
      %4523 = vset.pattern.permute.xlu0 2
      %4524 = vperm.xlu0 %4523, %v4504
      %v4525 = vpop.permute.xlu0 %4524
      %4528 = vset.pattern.permute.xlu0 2
      %4529 = vperm.xlu0 %4528, %v4505
      %v4530 = vpop.permute.xlu0 %4529
      %4533 = vset.pattern.permute.xlu0 2
      %4534 = vperm.xlu0 %4533, %v4506
      %v4535 = vpop.permute.xlu0 %4534
      %v4537 = vmul.f32 %v4510, %v4417
      %v4538 = vmul.f32 %v4515, %v4418
      %v4539 = vmul.f32 %v4520, %v4419
      %v4540 = vmul.f32 %v4525, %v4420
      %v4541 = vmul.f32 %v4530, %v4421
      %v4542 = vmul.f32 %v4535, %v4422
      %vm4543 = vcmask 48144
      %v4544 = vsel %vm4543, %v4537, 0.0
      %v4545 = vsel %vm4543, %v4538, 0.0
      %v4546 = vadd.f32 %v4544, %v4545
      %v4547 = vsel %vm4543, %v4539, 0.0
      %v4548 = vadd.f32 %v4546, %v4547
      %v4549 = vsel %vm4543, %v4540, 0.0
      %v4550 = vadd.f32 %v4548, %v4549
      %v4551 = vsel %vm4543, %v4541, 0.0
      %v4552 = vadd.f32 %v4550, %v4551
      %v4553 = vsel %vm4543, %v4542, 0.0
      %v4554 = vadd.f32 %v4552, %v4553
      %v4555 = vrot.slane %v4554, 4
      %v4556 = vadd.f32 %v4554, %v4555
      %v4557 = vrot.slane %v4556, 2
      %v4558 = vadd.f32 %v4556, %v4557
      %v4559 = vrot.slane %v4558, 1
      %v4560 = vadd.f32 %v4558, %v4559
      %4561 = vset.pattern.permute.xlu0 3
      %4562 = vperm.xlu0 %4561, %v4501
      %v4563 = vpop.permute.xlu0 %4562
      %4565 = vset.pattern.permute.xlu0 3
      %4566 = vperm.xlu0 %4565, %v4502
      %v4567 = vpop.permute.xlu0 %4566
      %4569 = vset.pattern.permute.xlu0 3
      %4570 = vperm.xlu0 %4569, %v4503
      %v4571 = vpop.permute.xlu0 %4570
      %4573 = vset.pattern.permute.xlu0 3
      %4574 = vperm.xlu0 %4573, %v4504
      %v4575 = vpop.permute.xlu0 %4574
      %4577 = vset.pattern.permute.xlu0 3
      %4578 = vperm.xlu0 %4577, %v4505
      %v4579 = vpop.permute.xlu0 %4578
      %4581 = vset.pattern.permute.xlu0 3
      %4582 = vperm.xlu0 %4581, %v4506
      %v4583 = vpop.permute.xlu0 %4582
      %v4585 = vmul.f32 %v4563, %v4417
      %v4586 = vmul.f32 %v4567, %v4418
      %v4587 = vmul.f32 %v4571, %v4419
      %v4588 = vmul.f32 %v4575, %v4420
      %v4589 = vmul.f32 %v4579, %v4421
      %v4590 = vmul.f32 %v4583, %v4422
      %v4591 = vsel %vm4543, %v4585, 0.0
      %v4592 = vsel %vm4543, %v4586, 0.0
      %v4593 = vadd.f32 %v4591, %v4592
      %v4594 = vsel %vm4543, %v4587, 0.0
      %v4595 = vadd.f32 %v4593, %v4594
      %v4596 = vsel %vm4543, %v4588, 0.0
      %v4597 = vadd.f32 %v4595, %v4596
      %v4598 = vsel %vm4543, %v4589, 0.0
      %v4599 = vadd.f32 %v4597, %v4598
      %v4600 = vsel %vm4543, %v4590, 0.0
      %v4601 = vadd.f32 %v4599, %v4600
      %v4602 = vrot.slane %v4601, 4
      %v4603 = vadd.f32 %v4601, %v4602
      %v4604 = vrot.slane %v4603, 2
      %v4605 = vadd.f32 %v4603, %v4604
      %v4606 = vrot.slane %v4605, 1
      %v4607 = vadd.f32 %v4605, %v4606
      %4608 = vset.pattern.permute.xlu0 4
      %4609 = vperm.xlu0 %4608, %v4501
      %v4610 = vpop.permute.xlu0 %4609
      %4612 = vset.pattern.permute.xlu0 4
      %4613 = vperm.xlu0 %4612, %v4502
      %v4614 = vpop.permute.xlu0 %4613
      %4616 = vset.pattern.permute.xlu0 4
      %4617 = vperm.xlu0 %4616, %v4503
      %v4618 = vpop.permute.xlu0 %4617
      %4620 = vset.pattern.permute.xlu0 4
      %4621 = vperm.xlu0 %4620, %v4504
      %v4622 = vpop.permute.xlu0 %4621
      %4624 = vset.pattern.permute.xlu0 4
      %4625 = vperm.xlu0 %4624, %v4505
      %v4626 = vpop.permute.xlu0 %4625
      %4628 = vset.pattern.permute.xlu0 4
      %4629 = vperm.xlu0 %4628, %v4506
      %v4630 = vpop.permute.xlu0 %4629
      %v4632 = vmul.f32 %v4610, %v4417
      %v4633 = vmul.f32 %v4614, %v4418
      %v4634 = vmul.f32 %v4618, %v4419
      %v4635 = vmul.f32 %v4622, %v4420
      %v4636 = vmul.f32 %v4626, %v4421
      %v4637 = vmul.f32 %v4630, %v4422
      %v4638 = vsel %vm4543, %v4632, 0.0
      %v4639 = vsel %vm4543, %v4633, 0.0
      %v4640 = vadd.f32 %v4638, %v4639
      %v4641 = vsel %vm4543, %v4634, 0.0
      %v4642 = vadd.f32 %v4640, %v4641
      %v4643 = vsel %vm4543, %v4635, 0.0
      %v4644 = vadd.f32 %v4642, %v4643
      %v4645 = vsel %vm4543, %v4636, 0.0
      %v4646 = vadd.f32 %v4644, %v4645
      %v4647 = vsel %vm4543, %v4637, 0.0
      %v4648 = vadd.f32 %v4646, %v4647
      %v4649 = vrot.slane %v4648, 4
      %v4650 = vadd.f32 %v4648, %v4649
      %v4651 = vrot.slane %v4650, 2
      %v4652 = vadd.f32 %v4650, %v4651
      %v4653 = vrot.slane %v4652, 1
      %v4654 = vadd.f32 %v4652, %v4653
      %4655 = vset.pattern.permute.xlu0 5
      %4656 = vperm.xlu0 %4655, %v4501
      %v4657 = vpop.permute.xlu0 %4656
      %4659 = vset.pattern.permute.xlu0 5
      %4660 = vperm.xlu0 %4659, %v4502
      %v4661 = vpop.permute.xlu0 %4660
      %4663 = vset.pattern.permute.xlu0 5
      %4664 = vperm.xlu0 %4663, %v4503
      %v4665 = vpop.permute.xlu0 %4664
      %4667 = vset.pattern.permute.xlu0 5
      %4668 = vperm.xlu0 %4667, %v4504
      %v4669 = vpop.permute.xlu0 %4668
      %4671 = vset.pattern.permute.xlu0 5
      %4672 = vperm.xlu0 %4671, %v4505
      %v4673 = vpop.permute.xlu0 %4672
      %4675 = vset.pattern.permute.xlu0 5
      %4676 = vperm.xlu0 %4675, %v4506
      %v4677 = vpop.permute.xlu0 %4676
      %v4679 = vmul.f32 %v4657, %v4417
      %v4680 = vmul.f32 %v4661, %v4418
      %v4681 = vmul.f32 %v4665, %v4419
      %v4682 = vmul.f32 %v4669, %v4420
      %v4683 = vmul.f32 %v4673, %v4421
      %v4684 = vmul.f32 %v4677, %v4422
      %v4685 = vsel %vm4543, %v4679, 0.0
      %v4686 = vsel %vm4543, %v4680, 0.0
      %v4687 = vadd.f32 %v4685, %v4686
      %v4688 = vsel %vm4543, %v4681, 0.0
      %v4689 = vadd.f32 %v4687, %v4688
      %v4690 = vsel %vm4543, %v4682, 0.0
      %v4691 = vadd.f32 %v4689, %v4690
      %v4692 = vsel %vm4543, %v4683, 0.0
      %v4693 = vadd.f32 %v4691, %v4692
      %v4694 = vsel %vm4543, %v4684, 0.0
      %v4695 = vadd.f32 %v4693, %v4694
      %v4696 = vrot.slane %v4695, 4
      %v4697 = vadd.f32 %v4695, %v4696
      %v4698 = vrot.slane %v4697, 2
      %v4699 = vadd.f32 %v4697, %v4698
      %v4700 = vrot.slane %v4699, 1
      %v4701 = vadd.f32 %v4699, %v4700
      %vm4702 = vcmask 1040384
      %v4703 = vsel %vm4702, %v4560, %v4607
      %vm4704 = vcmask 1041408
      %v4705 = vsel %vm4704, %v4703, %v4654
      %vm4706 = vcmask 1042432
      %v4707 = vsel %vm4706, %v4705, %v4701
      %4709 = vset.pattern.permute.xlu0 0
      %4710 = vperm.xlu0 %4709, %v4465
      %v4711 = vpop.permute.xlu0 %4710
      %4714 = vset.pattern.permute.xlu0 0
      %4715 = vperm.xlu0 %4714, %v4466
      %v4716 = vpop.permute.xlu0 %4715
      %4719 = vset.pattern.permute.xlu0 0
      %4720 = vperm.xlu0 %4719, %v4467
      %v4721 = vpop.permute.xlu0 %4720
      %4724 = vset.pattern.permute.xlu0 0
      %4725 = vperm.xlu0 %4724, %v4468
      %v4726 = vpop.permute.xlu0 %4725
      %4729 = vset.pattern.permute.xlu0 0
      %4730 = vperm.xlu0 %4729, %v4469
      %v4731 = vpop.permute.xlu0 %4730
      %4734 = vset.pattern.permute.xlu0 0
      %4735 = vperm.xlu0 %4734, %v4470
      %v4736 = vpop.permute.xlu0 %4735
      %v4738 = vmul.f32 %v4501, %v4711
      %v4739 = vmul.f32 %v4502, %v4716
      %v4740 = vmul.f32 %v4503, %v4721
      %v4741 = vmul.f32 %v4504, %v4726
      %v4742 = vmul.f32 %v4505, %v4731
      %v4743 = vmul.f32 %v4506, %v4736
      %v4744 = vsel %vm4543, %v4738, 0.0
      %v4745 = vsel %vm4543, %v4739, 0.0
      %v4746 = vadd.f32 %v4744, %v4745
      %v4747 = vsel %vm4543, %v4740, 0.0
      %v4748 = vadd.f32 %v4746, %v4747
      %v4749 = vsel %vm4543, %v4741, 0.0
      %v4750 = vadd.f32 %v4748, %v4749
      %v4751 = vsel %vm4543, %v4742, 0.0
      %v4752 = vadd.f32 %v4750, %v4751
      %v4753 = vsel %vm4543, %v4743, 0.0
      %v4754 = vadd.f32 %v4752, %v4753
      %v4755 = vrot.slane %v4754, 4
      %v4756 = vadd.f32 %v4754, %v4755
      %v4757 = vrot.slane %v4756, 2
      %v4758 = vadd.f32 %v4756, %v4757
      %v4759 = vrot.slane %v4758, 1
      %v4760 = vadd.f32 %v4758, %v4759
      %v4761 = vmul.f32 %v4465, %v4465
      %v4762 = vmul.f32 %v4466, %v4466
      %v4763 = vmul.f32 %v4467, %v4467
      %v4764 = vmul.f32 %v4468, %v4468
      %v4765 = vmul.f32 %v4469, %v4469
      %v4766 = vmul.f32 %v4470, %v4470
      %v4767 = vmul.f32 %v4761, %v4448
      %v4768 = vmul.f32 %v4762, %v4450
      %v4769 = vmul.f32 %v4763, %v4452
      %v4770 = vmul.f32 %v4764, %v4454
      %v4771 = vmul.f32 %v4765, %v4456
      %v4772 = vmul.f32 %v4766, %v4458
      %vm4773 = vcmask 7168
      %v4774 = vsel %vm4773, %v4767, 0.0
      %v4775 = vsel %vm4773, %v4768, 0.0
      %v4776 = vadd.f32 %v4774, %v4775
      %v4777 = vsel %vm4773, %v4769, 0.0
      %v4778 = vadd.f32 %v4776, %v4777
      %v4779 = vsel %vm4773, %v4770, 0.0
      %v4780 = vadd.f32 %v4778, %v4779
      %v4781 = vsel %vm4773, %v4771, 0.0
      %v4782 = vadd.f32 %v4780, %v4781
      %v4783 = vsel %vm4773, %v4772, 0.0
      %v4784 = vadd.f32 %v4782, %v4783
      %v4785 = vrot.slane %v4784, 4
      %v4786 = vadd.f32 %v4784, %v4785
      %v4787 = vrot.slane %v4786, 2
      %v4788 = vadd.f32 %v4786, %v4787
      %v4789 = vrot.slane %v4788, 1
      %v4790 = vadd.f32 %v4788, %v4789
      %v4791 = vlog2.pop %v4399
      %v4792 = vmul.f32 %v4791, 0.6931472
      %v4793 = vlog2.pop %v4400
      %v4794 = vmul.f32 %v4793, 0.6931472
      %v4795 = vlog2.pop %v4401
      %v4796 = vmul.f32 %v4795, 0.6931472
      %v4797 = vlog2.pop %v4402
      %v4798 = vmul.f32 %v4797, 0.6931472
      %v4799 = vlog2.pop %v4403
      %v4800 = vmul.f32 %v4799, 0.6931472
      %v4801 = vlog2.pop %v4404
      %v4802 = vmul.f32 %v4801, 0.6931472
      %4809 = vrot.lane.b32.xlu0 %v4792, 127
      %v4810 = vpop.permute.xlu0 %4809
      %4811 = vrot.lane.b32.xlu0 %v4794, 127
      %v4812 = vpop.permute.xlu0 %4811
      %4813 = vrot.lane.b32.xlu0 %v4796, 127
      %v4814 = vpop.permute.xlu0 %4813
      %4815 = vrot.lane.b32.xlu0 %v4798, 127
      %v4816 = vpop.permute.xlu0 %4815
      %4817 = vrot.lane.b32.xlu0 %v4800, 127
      %v4818 = vpop.permute.xlu0 %4817
      %4819 = vrot.lane.b32.xlu0 %v4802, 127
      %v4820 = vpop.permute.xlu0 %4819
      %v4827 = vmul.f32 %v840, %v4810
      %v4828 = vmul.f32 %v841, %v4812
      %v4829 = vmul.f32 %v842, %v4814
      %v4830 = vmul.f32 %v843, %v4816
      %v4831 = vmul.f32 %v844, %v4818
      %v4832 = vmul.f32 %v845, %v4820
      %v4833 = vsel %vm4773, %v4827, 0.0
      %v4834 = vsel %vm4773, %v4828, 0.0
      %v4835 = vadd.f32 %v4833, %v4834
      %v4836 = vsel %vm4773, %v4829, 0.0
      %v4837 = vadd.f32 %v4835, %v4836
      %v4838 = vsel %vm4773, %v4830, 0.0
      %v4839 = vadd.f32 %v4837, %v4838
      %v4840 = vsel %vm4773, %v4831, 0.0
      %v4841 = vadd.f32 %v4839, %v4840
      %v4842 = vsel %vm4773, %v4832, 0.0
      %v4843 = vadd.f32 %v4841, %v4842
      %v4844 = vrot.slane %v4843, 4
      %v4845 = vadd.f32 %v4843, %v4844
      %v4846 = vrot.slane %v4845, 2
      %v4847 = vadd.f32 %v4845, %v4846
      %v4848 = vrot.slane %v4847, 1
      %v4849 = vadd.f32 %v4847, %v4848
      %4851 = vrot.lane.b32.xlu0 %v4707, 126
      %v4852 = vpop.permute.xlu0 %4851
      %vm4854 = vcmask 27648
      %4855 = vst.msk [vmem:[%s827] sm:$0xf] %vm4854, %v4852
      %4857 = vrot.lane.b32.xlu0 %v4760, 126
      %v4858 = vpop.permute.xlu0 %4857
      %vm4860 = vcmask 24576
      %4861 = vst.msk [vmem:[%s830] sm:$0x1] %vm4860, %v4858
      %4863 = vrot.lane.b32.xlu0 %v4849, 1
      %v4864 = vpop.permute.xlu0 %4863
      %v4866 = vsel %vm4773, %v4790, %v4864
      %vm4867 = vcmask 8192
      %4868 = vst.msk [vmem:[%s833] sm:$0x1] %vm4867, %v4866
      %p4869 = scmp.lt.s32.totalorder %s39, 1
      %s4870 = scalar_select %p4869, %s39, 1
      %s4871 = smul.addr %s4870, 4
      %s4872 = scalar_lea.vmem %s25, %s4871
      %p4873 = scmp.lt.s32.totalorder %s39, 1
      %s4874 = scalar_select %p4873, %s39, 1
      %s4875 = scalar_lea.vmem %s26, %s4874
      %p4876 = scmp.lt.s32.totalorder %s39, 1
      %s4877 = scalar_select %p4876, %s39, 1
      %s4878 = scalar_lea.vmem %s27, %s4877
      // Predicated region
      $region121: #{tactis_training_loss.1} parent=119 // pred_check
        %p4879 = pneg %p587
      $region122: #{tactis_training_loss.1} parent=119 // pred_check_branch
        %4881 = sbr.rel (%p4879) target = $region124
      $region123: #{tactis_training_loss.1} parent=119 // pred_region
        _
      $region124: #{tactis_training_loss.1} parent=119 // pred_fallthru
        _
      // Predicated region
      $region125: #{tactis_training_loss.1} parent=119 // pred_check
        %p4882 = pneg %p613
      $region126: #{tactis_training_loss.1} parent=119 // pred_check_branch
        %4884 = sbr.rel (%p4882) target = $region128
      $region127: #{tactis_training_loss.1} parent=119 // pred_region
        _
      $region128: #{tactis_training_loss.1} parent=119 // pred_fallthru
        _
      // Predicated region
      $region129: #{tactis_training_loss.1} parent=119 // pred_check
        %p4885 = pneg %p639
      $region130: #{tactis_training_loss.1} parent=119 // pred_check_branch
        %4887 = sbr.rel (%p4885) target = $region132
      $region131: #{tactis_training_loss.1} parent=119 // pred_region
        _
      $region132: #{tactis_training_loss.1} parent=119 // pred_fallthru
        _
    $region120: #{tactis_training_loss.1} parent=5 // pred_fallthru
      _
    %p4888 = scmp.le.s32.totalorder 2, %s34
    // Predicated region
    $region133: #{tactis_training_loss.1} parent=5 // pred_check
      %p4889 = pneg %p4888
    $region134: #{tactis_training_loss.1} parent=5 // pred_check_branch
      %4891 = sbr.rel (%p4889) target = $region136
    $region135: #{tactis_training_loss.1} parent=5 // pred_region
      %s4892 = ssub.s32 %s34, 2
      // Predicated region
      $region137: #{tactis_training_loss.1} parent=135 // pred_check
        %p4893 = pneg %p593
      $region138: #{tactis_training_loss.1} parent=135 // pred_check_branch
        %4895 = sbr.rel (%p4893) target = $region140
      $region139: #{tactis_training_loss.1} parent=135 // pred_region
        %p4896 = scmp.lt.s32.totalorder %s40, 1
        %s4897 = scalar_select %p4896, %s40, 1
        %s4898 = smul.addr %s4897, 4
        %s4899 = scalar_lea.vmem %s25, %s4898
      $region140: #{tactis_training_loss.1} parent=135 // pred_fallthru
        _
      // Predicated region
      $region141: #{tactis_training_loss.1} parent=135 // pred_check
        %p4900 = pneg %p619
      $region142: #{tactis_training_loss.1} parent=135 // pred_check_branch
        %4902 = sbr.rel (%p4900) target = $region144
      $region143: #{tactis_training_loss.1} parent=135 // pred_region
        %p4903 = scmp.lt.s32.totalorder %s40, 1
        %s4904 = scalar_select %p4903, %s40, 1
        %s4905 = scalar_lea.vmem %s26, %s4904
      $region144: #{tactis_training_loss.1} parent=135 // pred_fallthru
        _
      // Predicated region
      $region145: #{tactis_training_loss.1} parent=135 // pred_check
        %p4906 = pneg %p645
      $region146: #{tactis_training_loss.1} parent=135 // pred_check_branch
        %4908 = sbr.rel (%p4906) target = $region148
      $region147: #{tactis_training_loss.1} parent=135 // pred_region
        %p4909 = scmp.lt.s32.totalorder %s40, 1
        %s4910 = scalar_select %p4909, %s40, 1
        %s4911 = scalar_lea.vmem %s27, %s4910
      $region148: #{tactis_training_loss.1} parent=135 // pred_fallthru
        _
    $region136: #{tactis_training_loss.1} parent=5 // pred_fallthru
      _
  $region6: #{tactis_training_loss.1} parent=0 // loop_footer
    %s38 = sadd.s32 1, %s34
  $region7: #{tactis_training_loss.1} parent=0 // loop_footer_branch
    %33 = sbr.rel target = $region3
  $region8: #{tactis_training_loss.1} parent=0 // loop_exit
    _

</llo_original>
